<compile_context>
chip_gen: v7x
topology: tpu7x:2x2x1
jax: 0.10.0
libtpu: 0.0.40
codegen_flags: <defaults>
</compile_context>

<pallas_src>
import functools

import jax
import jax.numpy as jnp
from jax.experimental import pallas as pl
from jax.experimental.pallas import tpu as pltpu


# -----------------------------------------------------------------------------
# Fused kernel: intra-sentence attention + aggregation + classification head
# for one tile of Bt batch elements.  valid_l1 / valid_l2 are the un-padded
# sequence lengths (static Python ints, bound via functools.partial).
# -----------------------------------------------------------------------------
def fused_attn_head_kernel(s1_ref, s2_ref,
                           wf1_ref, bf1_ref, wf2_ref, bf2_ref,
                           wg1a_ref, wg1b_ref, bg1_ref, wg2_ref, bg2_ref,
                           wh1a_ref, wh1b_ref, bh1_ref, wh2_ref, bh2_ref,
                           wec_ref, bec_ref,
                           out_ref,
                           *, valid_l1, valid_l2):
    Bt, L1p, Hp = s1_ref.shape
    L2p = s2_ref.shape[1]
    bf16 = jnp.bfloat16
    f32 = jnp.float32

    s1b = s1_ref[...]                         # (Bt, L1p, Hp) bf16
    s2b = s2_ref[...]                         # (Bt, L2p, Hp) bf16
    s1 = s1b.reshape(Bt * L1p, Hp)            # fold batch into the matmul M dim
    s2 = s2b.reshape(Bt * L2p, Hp)

    def mlp2(x, w1, b1, w2, b2):
        # bf16 operands, f32 accumulation, f32 bias/ReLU, re-cast for next layer.
        h = jnp.maximum(
            jnp.dot(x, w1[...], preferred_element_type=f32) + b1[...], 0.0)
        h = h.astype(bf16)
        return jnp.maximum(
            jnp.dot(h, w2[...], preferred_element_type=f32) + b2[...], 0.0)

    # ---- attend (mlp_f) ----
    f1 = mlp2(s1, wf1_ref, bf1_ref, wf2_ref, bf2_ref).astype(bf16).reshape(Bt, L1p, Hp)
    f2 = mlp2(s2, wf1_ref, bf1_ref, wf2_ref, bf2_ref).astype(bf16).reshape(Bt, L2p, Hp)

    # score1[b] = f1[b] @ f2[b]^T ; score2 is its own MXU matmul (no XLU
    # transpose / materialized score1.T).
    score1 = jnp.einsum('bik,bjk->bij', f1, f2,
                        preferred_element_type=f32)           # (Bt, L1p, L2p)
    score2 = jnp.einsum('bik,bjk->bij', f2, f1,
                        preferred_element_type=f32)           # (Bt, L2p, L1p)

    # Mask padded key columns to -inf before softmax (compiles away if no pad).
    if L2p != valid_l2:
        kmask1 = jax.lax.broadcasted_iota(jnp.int32, (Bt, L1p, L2p), 2) < valid_l2
        score1 = jnp.where(kmask1, score1, -jnp.inf)
    if L1p != valid_l1:
        kmask2 = jax.lax.broadcasted_iota(jnp.int32, (Bt, L2p, L1p), 2) < valid_l1
        score2 = jnp.where(kmask2, score2, -jnp.inf)

    def softmax_last(x):                      # exact softmax in f32
        m = jnp.max(x, axis=-1, keepdims=True)
        e = jnp.exp(x - m)
        return e / jnp.sum(e, axis=-1, keepdims=True)

    prob1 = softmax_last(score1).astype(bf16)
    prob2 = softmax_last(score2).astype(bf16)

    align1 = jnp.einsum('bij,bjk->bik', prob1, s2b,
                        preferred_element_type=f32).astype(bf16).reshape(Bt * L1p, Hp)
    align2 = jnp.einsum('bij,bjk->bik', prob2, s1b,
                        preferred_element_type=f32).astype(bf16).reshape(Bt * L2p, Hp)

    # ---- compare + aggregate (mlp_g); concat realized as a split matmul ----
    def mlp_g(x_orig, x_align):
        h = jnp.maximum(
            jnp.dot(x_orig, wg1a_ref[...], preferred_element_type=f32)
            + jnp.dot(x_align, wg1b_ref[...], preferred_element_type=f32)
            + bg1_ref[...], 0.0)
        h = h.astype(bf16)
        return jnp.maximum(
            jnp.dot(h, wg2_ref[...], preferred_element_type=f32)
            + bg2_ref[...], 0.0)

    g1 = mlp_g(s1, align1).reshape(Bt, L1p, Hp)   # f32
    g2 = mlp_g(s2, align2).reshape(Bt, L2p, Hp)

    # Zero padded query rows before the length sum (compiles away if no pad).
    if L1p != valid_l1:
        rmask1 = jax.lax.broadcasted_iota(jnp.int32, (Bt, L1p, Hp), 1) < valid_l1
        g1 = jnp.where(rmask1, g1, 0.0)
    if L2p != valid_l2:
        rmask2 = jax.lax.broadcasted_iota(jnp.int32, (Bt, L2p, Hp), 1) < valid_l2
        g2 = jnp.where(rmask2, g2, 0.0)

    o1 = jnp.sum(g1, axis=1).astype(bf16)         # (Bt, Hp)
    o2 = jnp.sum(g2, axis=1).astype(bf16)

    # ---- classification head (fused; mlp_h + entail/contradict linears) ----
    h = jnp.maximum(
        jnp.dot(o1, wh1a_ref[...], preferred_element_type=f32)
        + jnp.dot(o2, wh1b_ref[...], preferred_element_type=f32)
        + bh1_ref[...], 0.0).astype(bf16)
    h = jnp.maximum(
        jnp.dot(h, wh2_ref[...], preferred_element_type=f32)
        + bh2_ref[...], 0.0).astype(bf16)

    # we|wc concatenated into a single (Hp, 4) projection.
    ec = jnp.dot(h, wec_ref[...], preferred_element_type=f32) + bec_ref[...]  # (Bt,4)

    # Grouped log-softmax over lane pairs {0,1} (entail) and {2,3} (contradict)
    # on the single 4-wide tile: one output store, no sub-lane slicing.
    lane = jax.lax.broadcasted_iota(jnp.int32, ec.shape, 1)
    is_ent = lane < 2
    m_e = jnp.max(jnp.where(is_ent, ec, -jnp.inf), axis=-1, keepdims=True)
    m_c = jnp.max(jnp.where(is_ent, -jnp.inf, ec), axis=-1, keepdims=True)
    s = ec - jnp.where(is_ent, m_e, m_c)
    e = jnp.exp(s)
    z_e = jnp.sum(jnp.where(is_ent, e, 0.0), axis=-1, keepdims=True)
    z_c = jnp.sum(jnp.where(is_ent, 0.0, e), axis=-1, keepdims=True)
    out_ref[...] = s - jnp.log(jnp.where(is_ent, z_e, z_c))


# -----------------------------------------------------------------------------
# Wrapper helpers
# -----------------------------------------------------------------------------
def _round_up(x, m):
    return ((x + m - 1) // m) * m


def _tpu_vmem_capacity():
    try:
        return int(pltpu.get_tpu_info().vmem_capacity_bytes)
    except Exception:
        return 64 << 20   # conservative default (v7x per-TensorCore VMEM)


def _choose_batch_tile(B, Lmax, row_cap):
    """Largest legal divisor of B whose Bt*Lmax rows fit row_cap; output block
    (Bt, 4) stays legal (Bt == B or Bt % 8 == 0); prefer an even grid length
    once each step has >= 128 matmul rows (v7x 2-TC megacore sharding)."""
    legal = [d for d in range(1, B + 1) if B % d == 0 and (d == B or d % 8 == 0)]
    fits = [d for d in legal if d * Lmax <= row_cap]
    if not fits:
        return min(legal)             # safety: smallest legal tile
    even = [d for d in fits if (B // d) % 2 == 0 and d * Lmax >= 128]
    if even:
        return max(even)
    return max(fits)


def _weight_spec(shape, single_buffer):
    index_map = lambda i: (0,) * len(shape)
    if single_buffer:
        try:
            # Grid-invariant operands: no need for double buffering.
            return pl.BlockSpec(shape, index_map, pipeline_mode=pl.Buffered(1))
        except Exception:
            pass
    return pl.BlockSpec(shape, index_map)


def _vmem_limit_bytes(Bt, L1p, L2p, Hp, vmem_cap):
    # bf16 weights (x2 headroom in case Buffered(1) is not honored and the
    # pipeline double-buffers them) + f32 biases.
    w_bytes = 2 * (8 * Hp * Hp + Hp * 4) * 2
    b_bytes = 2 * (6 * Hp + 4) * 4
    # Double-buffered bf16 sentence tiles.
    in_bytes = 2 * Bt * (L1p + L2p) * Hp * 2
    # Live f32/bf16 temporaries of the fused body (f, align, g, hidden, ...).
    act_bytes = 14 * Bt * max(L1p, L2p) * Hp * 4
    attn_bytes = 6 * Bt * L1p * L2p * 4
    budget = w_bytes + b_bytes + in_bytes + act_bytes + attn_bytes + (4 << 20)
    return int(min(int(0.9 * vmem_cap), max(budget, 32 << 20)))


def prepare_params(p, hidden_size):
    """One-time (eager, outside jit) padding/concatenation/casting of weights.

    Square weights -> (Hp, Hp) bf16, biases -> (1, Hp) f32, entail/contradict
    projections concatenated into a single (Hp, 4) bf16 matrix.  Zero padding
    is exact: padded lanes stay 0 through the ReLU layers and contribute 0 to
    every dot product."""
    H = hidden_size
    Hp = _round_up(H, 128)
    f32, bf16 = jnp.float32, jnp.bfloat16

    def pw(name):
        return jnp.pad(p[name].astype(f32), ((0, Hp - H), (0, Hp - H))).astype(bf16)

    def pb(name):
        return jnp.pad(p[name].astype(f32), ((0, 0), (0, Hp - H)))

    wec = jnp.pad(jnp.concatenate([p["we"], p["wc"]], axis=1).astype(f32),
                  ((0, Hp - H), (0, 0))).astype(bf16)
    bec = jnp.concatenate([p["be"], p["bc"]], axis=1).astype(f32)

    return {
        "wf1": pw("wf1"), "bf1": pb("bf1"), "wf2": pw("wf2"), "bf2": pb("bf2"),
        "wg1a": pw("wg1a"), "wg1b": pw("wg1b"), "bg1": pb("bg1"),
        "wg2": pw("wg2"), "bg2": pb("bg2"),
        "wh1a": pw("wh1a"), "wh1b": pw("wh1b"), "bh1": pb("bh1"),
        "wh2": pw("wh2"), "bh2": pb("bh2"),
        "wec": wec, "bec": bec,
    }


# -----------------------------------------------------------------------------
# Forward
# -----------------------------------------------------------------------------
@functools.partial(jax.jit, static_argnames=("single_buffer_weights",))
def binary_label_atten_forward(sent1, sent2, prepared, *, single_buffer_weights=True):
    B, L1, H = sent1.shape
    L2 = sent2.shape[1]
    f32, bf16 = jnp.float32, jnp.bfloat16

    Hp = prepared["wf1"].shape[0]
    L1p = _round_up(L1, 8)      # sublane-aligned reshapes inside the kernel
    L2p = _round_up(L2, 8)

    s1 = jnp.pad(sent1.astype(f32), ((0, 0), (0, L1p - L1), (0, Hp - H))).astype(bf16)
    s2 = jnp.pad(sent2.astype(f32), ((0, 0), (0, L2p - L2), (0, Hp - H))).astype(bf16)

    vmem_cap = _tpu_vmem_capacity()
    row_cap = 1024 if vmem_cap >= (100 << 20) else 512   # v5e/v6e vs. v7x
    Bt = _choose_batch_tile(B, max(L1p, L2p), row_cap)
    grid = (B // Bt,)
    vmem_limit = _vmem_limit_bytes(Bt, L1p, L2p, Hp, vmem_cap)

    ws = lambda shape: _weight_spec(shape, single_buffer_weights)

    in_specs = [
        pl.BlockSpec((Bt, L1p, Hp), lambda i: (i, 0, 0)),   # sent1 tile
        pl.BlockSpec((Bt, L2p, Hp), lambda i: (i, 0, 0)),   # sent2 tile
        ws((Hp, Hp)), ws((1, Hp)), ws((Hp, Hp)), ws((1, Hp)),                # mlp_f
        ws((Hp, Hp)), ws((Hp, Hp)), ws((1, Hp)), ws((Hp, Hp)), ws((1, Hp)),  # mlp_g
        ws((Hp, Hp)), ws((Hp, Hp)), ws((1, Hp)), ws((Hp, Hp)), ws((1, Hp)),  # mlp_h
        ws((Hp, 4)), ws((1, 4)),                                             # heads
    ]
    out_specs = pl.BlockSpec((Bt, 4), lambda i: (i, 0))

    # Advisory cost estimate for the XLA scheduler.
    M1, M2 = B * L1p, B * L2p
    flops = (4 * (M1 + M2) * Hp * Hp          # mlp_f (2 square matmuls)
             + 6 * (M1 + M2) * Hp * Hp        # mlp_g (3 square matmuls)
             + 6 * B * Hp * Hp                # mlp_h
             + 8 * B * L1p * L2p * Hp         # score1/2 + align1/2
             + 2 * B * Hp * 4)                # head projection
    transcendentals = B * (2 * L1p * L2p + 4)
    bytes_accessed = (B * (L1p + L2p) * Hp * 2
                      + (8 * Hp * Hp + Hp * 4) * 2
                      + (6 * Hp + 4) * 4
                      + B * 4 * 4)
    cost = pl.CostEstimate(flops=int(flops),
                           transcendentals=int(transcendentals),
                           bytes_accessed=int(bytes_accessed))

    kernel = functools.partial(fused_attn_head_kernel, valid_l1=L1, valid_l2=L2)

    out = pl.pallas_call(
        kernel,
        grid=grid,
        in_specs=in_specs,
        out_specs=out_specs,
        out_shape=jax.ShapeDtypeStruct((B, 4), f32),
        compiler_params=pltpu.CompilerParams(
            dimension_semantics=("parallel",),
            vmem_limit_bytes=vmem_limit),
        cost_estimate=cost,
    )(s1, s2,
      prepared["wf1"], prepared["bf1"], prepared["wf2"], prepared["bf2"],
      prepared["wg1a"], prepared["wg1b"], prepared["bg1"],
      prepared["wg2"], prepared["bg2"],
      prepared["wh1a"], prepared["wh1b"], prepared["bh1"],
      prepared["wh2"], prepared["bh2"],
      prepared["wec"], prepared["bec"])

    return out[:, 0:2], out[:, 2:4]


# -----------------------------------------------------------------------------
# Pure-JAX reference (f32, sanity check)
# -----------------------------------------------------------------------------
def reference_forward(sent1, sent2, p):
    B, L1, H = sent1.shape
    L2 = sent2.shape[1]

    def mlp2(x, w1, b1, w2, b2):
        h = jnp.maximum(x @ w1 + b1, 0.0)
        return jnp.maximum(h @ w2 + b2, 0.0)

    f1 = mlp2(sent1.reshape(-1, H), p["wf1"], p["bf1"], p["wf2"], p["bf2"]).reshape(B, L1, H)
    f2 = mlp2(sent2.reshape(-1, H), p["wf1"], p["bf1"], p["wf2"], p["bf2"]).reshape(B, L2, H)
    score1 = jnp.einsum("bik,bjk->bij", f1, f2)
    prob1 = jax.nn.softmax(score1, axis=-1)
    prob2 = jax.nn.softmax(jnp.swapaxes(score1, 1, 2), axis=-1)
    comb1 = jnp.concatenate([sent1, jnp.einsum("bij,bjk->bik", prob1, sent2)], -1)
    comb2 = jnp.concatenate([sent2, jnp.einsum("bij,bjk->bik", prob2, sent1)], -1)
    wg1 = jnp.concatenate([p["wg1a"], p["wg1b"]], 0)
    g1 = mlp2(comb1.reshape(-1, 2 * H), wg1, p["bg1"], p["wg2"], p["bg2"]).reshape(B, L1, H)
    g2 = mlp2(comb2.reshape(-1, 2 * H), wg1, p["bg1"], p["wg2"], p["bg2"]).reshape(B, L2, H)
    o1 = jnp.sum(g1, axis=1)
    o2 = jnp.sum(g2, axis=1)
    wh1 = jnp.concatenate([p["wh1a"], p["wh1b"]], 0)
    h = mlp2(jnp.concatenate([o1, o2], -1), wh1, p["bh1"], p["wh2"], p["bh2"])
    ent = jax.nn.log_softmax(h @ p["we"] + p["be"], axis=-1)
    contr = jax.nn.log_softmax(h @ p["wc"] + p["bc"], axis=-1)
    return ent, contr


# -----------------------------------------------------------------------------
# Deterministic parameter init (normal(0, para_init), same as the module)
# -----------------------------------------------------------------------------
def init_params(key, hidden_size, para_init=0.01):
    H = hidden_size
    shapes = {
        "wf1": (H, H), "bf1": (1, H), "wf2": (H, H), "bf2": (1, H),
        "wg1a": (H, H), "wg1b": (H, H), "bg1": (1, H),
        "wg2": (H, H), "bg2": (1, H),
        "wh1a": (H, H), "wh1b": (H, H), "bh1": (1, H),
        "wh2": (H, H), "bh2": (1, H),
        "we": (H, 2), "be": (1, 2),
        "wc": (H, 2), "bc": (1, 2),
    }
    keys = jax.random.split(key, len(shapes))
    return {name: para_init * jax.random.normal(k, shape, dtype=jnp.float32)
            for (name, shape), k in zip(shapes.items(), keys)}


if __name__ == "__main__":
    B, L1, L2, H = 2, 8, 8, 32

    key = jax.random.PRNGKey(0)
    k1, k2, kp = jax.random.split(key, 3)
    sent1 = jax.random.normal(k1, (B, L1, H), dtype=jnp.float32)
    sent2 = jax.random.normal(k2, (B, L2, H), dtype=jnp.float32)
    params = init_params(kp, H, para_init=0.01)

    # One-time padded/cast weight pytree (reused across all forward calls).
    prepared = prepare_params(params, H)

    try:
        h_ent, h_contr = binary_label_atten_forward(sent1, sent2, prepared)
        jax.block_until_ready((h_ent, h_contr))
    except Exception:
        # Fallback for jax builds where Buffered(1) is not honored by the
        # pallas_call pipeline; identical math, default (double) buffering.
        h_ent, h_contr = binary_label_atten_forward(
            sent1, sent2, prepared, single_buffer_weights=False)
        jax.block_until_ready((h_ent, h_contr))

    r_ent, r_contr = reference_forward(sent1, sent2, params)
    assert h_ent.shape == (B, 2) and h_contr.shape == (B, 2)
    # bf16 MXU matmuls (f32 accumulation) -> relaxed tolerance vs. f32 reference.
    assert bool(jnp.all(jnp.isfinite(h_ent))) and bool(jnp.all(jnp.isfinite(h_contr)))
    assert jnp.allclose(h_ent, r_ent, atol=2e-2, rtol=2e-2)
    assert jnp.allclose(h_contr, r_contr, atol=2e-2, rtol=2e-2)

    print("KERNEL_OK")
</pallas_src>

<mosaic_0001>
module attributes {stable_mosaic.version = 11 : i64} {
  func.func @fused_attn_head_kernel(%arg0: i32, %arg1: memref<2x8x128xbf16, #tpu.memory_space<vmem>>, %arg2: memref<2x8x128xbf16, #tpu.memory_space<vmem>>, %arg3: memref<128x128xbf16, #tpu.memory_space<vmem>>, %arg4: memref<1x128xf32, #tpu.memory_space<vmem>>, %arg5: memref<128x128xbf16, #tpu.memory_space<vmem>>, %arg6: memref<1x128xf32, #tpu.memory_space<vmem>>, %arg7: memref<128x128xbf16, #tpu.memory_space<vmem>>, %arg8: memref<128x128xbf16, #tpu.memory_space<vmem>>, %arg9: memref<1x128xf32, #tpu.memory_space<vmem>>, %arg10: memref<128x128xbf16, #tpu.memory_space<vmem>>, %arg11: memref<1x128xf32, #tpu.memory_space<vmem>>, %arg12: memref<128x128xbf16, #tpu.memory_space<vmem>>, %arg13: memref<128x128xbf16, #tpu.memory_space<vmem>>, %arg14: memref<1x128xf32, #tpu.memory_space<vmem>>, %arg15: memref<128x128xbf16, #tpu.memory_space<vmem>>, %arg16: memref<1x128xf32, #tpu.memory_space<vmem>>, %arg17: memref<128x4xbf16, #tpu.memory_space<vmem>>, %arg18: memref<1x4xf32, #tpu.memory_space<vmem>>, %arg19: memref<2x4xf32, #tpu.memory_space<vmem>>) attributes {dimension_semantics = [#tpu.dimension_semantics<parallel>], iteration_bounds = array<i64: 1>, scalar_prefetch = 0 : i64, scratch_operands = 0 : i64, tpu.core_type = #tpu.core_type<tc>, window_params = [{transform_indices = @transform_0, window_bounds = array<i64: 2, 8, 128>}, {transform_indices = @transform_1, window_bounds = array<i64: 2, 8, 128>}, {pipeline_mode = #tpu.pipeline_mode<synchronous>, transform_indices = @transform_2, window_bounds = array<i64: 128, 128>}, {pipeline_mode = #tpu.pipeline_mode<synchronous>, transform_indices = @transform_3, window_bounds = array<i64: 1, 128>}, {pipeline_mode = #tpu.pipeline_mode<synchronous>, transform_indices = @transform_4, window_bounds = array<i64: 128, 128>}, {pipeline_mode = #tpu.pipeline_mode<synchronous>, transform_indices = @transform_5, window_bounds = array<i64: 1, 128>}, {pipeline_mode = #tpu.pipeline_mode<synchronous>, transform_indices = @transform_6, window_bounds = array<i64: 128, 128>}, {pipeline_mode = #tpu.pipeline_mode<synchronous>, transform_indices = @transform_7, window_bounds = array<i64: 128, 128>}, {pipeline_mode = #tpu.pipeline_mode<synchronous>, transform_indices = @transform_8, window_bounds = array<i64: 1, 128>}, {pipeline_mode = #tpu.pipeline_mode<synchronous>, transform_indices = @transform_9, window_bounds = array<i64: 128, 128>}, {pipeline_mode = #tpu.pipeline_mode<synchronous>, transform_indices = @transform_10, window_bounds = array<i64: 1, 128>}, {pipeline_mode = #tpu.pipeline_mode<synchronous>, transform_indices = @transform_11, window_bounds = array<i64: 128, 128>}, {pipeline_mode = #tpu.pipeline_mode<synchronous>, transform_indices = @transform_12, window_bounds = array<i64: 128, 128>}, {pipeline_mode = #tpu.pipeline_mode<synchronous>, transform_indices = @transform_13, window_bounds = array<i64: 1, 128>}, {pipeline_mode = #tpu.pipeline_mode<synchronous>, transform_indices = @transform_14, window_bounds = array<i64: 128, 128>}, {pipeline_mode = #tpu.pipeline_mode<synchronous>, transform_indices = @transform_15, window_bounds = array<i64: 1, 128>}, {pipeline_mode = #tpu.pipeline_mode<synchronous>, transform_indices = @transform_16, window_bounds = array<i64: 128, 4>}, {pipeline_mode = #tpu.pipeline_mode<synchronous>, transform_indices = @transform_17, window_bounds = array<i64: 1, 4>}, {transform_indices = @transform_18, window_bounds = array<i64: 2, 4>}]} {
    %c0 = arith.constant 0 : index
    %c0_0 = arith.constant 0 : index
    %c0_1 = arith.constant 0 : index
    %0 = vector.load %arg1[%c0, %c0_0, %c0_1] : memref<2x8x128xbf16, #tpu.memory_space<vmem>>, vector<2x8x128xbf16>
    %c0_2 = arith.constant 0 : index
    %c0_3 = arith.constant 0 : index
    %c0_4 = arith.constant 0 : index
    %1 = vector.load %arg2[%c0_2, %c0_3, %c0_4] : memref<2x8x128xbf16, #tpu.memory_space<vmem>>, vector<2x8x128xbf16>
    %2 = vector.shape_cast %0 : vector<2x8x128xbf16> to vector<16x128xbf16>
    %3 = vector.shape_cast %1 : vector<2x8x128xbf16> to vector<16x128xbf16>
    %c0_5 = arith.constant 0 : index
    %c0_6 = arith.constant 0 : index
    %4 = vector.load %arg3[%c0_5, %c0_6] : memref<128x128xbf16, #tpu.memory_space<vmem>>, vector<128x128xbf16>
    %cst = arith.constant dense<0.000000e+00> : vector<16x128xf32>
    %5 = tpu.matmul %2, %4, %cst {dimension_numbers = #tpu.dot_dimension_numbers<[1], [0], [0], [1], [0, 0, 1, 1], [], []>} : vector<16x128xbf16>, vector<128x128xbf16>, vector<16x128xf32> -> vector<16x128xf32>
    %c0_7 = arith.constant 0 : index
    %c0_8 = arith.constant 0 : index
    %6 = vector.load %arg4[%c0_7, %c0_8] : memref<1x128xf32, #tpu.memory_space<vmem>>, vector<1x128xf32>
    %7 = vector.broadcast %6 : vector<1x128xf32> to vector<16x128xf32>
    %8 = arith.addf %5, %7 : vector<16x128xf32>
    %cst_9 = arith.constant 0.000000e+00 : f32
    %9 = vector.broadcast %cst_9 : f32 to vector<16x128xf32>
    %10 = arith.maximumf %8, %9 : vector<16x128xf32>
    %11 = arith.truncf %10 : vector<16x128xf32> to vector<16x128xbf16>
    %c0_10 = arith.constant 0 : index
    %c0_11 = arith.constant 0 : index
    %12 = vector.load %arg5[%c0_10, %c0_11] : memref<128x128xbf16, #tpu.memory_space<vmem>>, vector<128x128xbf16>
    %cst_12 = arith.constant dense<0.000000e+00> : vector<16x128xf32>
    %13 = tpu.matmul %11, %12, %cst_12 {dimension_numbers = #tpu.dot_dimension_numbers<[1], [0], [0], [1], [0, 0, 1, 1], [], []>} : vector<16x128xbf16>, vector<128x128xbf16>, vector<16x128xf32> -> vector<16x128xf32>
    %c0_13 = arith.constant 0 : index
    %c0_14 = arith.constant 0 : index
    %14 = vector.load %arg6[%c0_13, %c0_14] : memref<1x128xf32, #tpu.memory_space<vmem>>, vector<1x128xf32>
    %15 = vector.broadcast %14 : vector<1x128xf32> to vector<16x128xf32>
    %16 = arith.addf %13, %15 : vector<16x128xf32>
    %cst_15 = arith.constant 0.000000e+00 : f32
    %17 = vector.broadcast %cst_15 : f32 to vector<16x128xf32>
    %18 = arith.maximumf %16, %17 : vector<16x128xf32>
    %19 = arith.truncf %18 : vector<16x128xf32> to vector<16x128xbf16>
    %20 = vector.shape_cast %19 : vector<16x128xbf16> to vector<2x8x128xbf16>
    %c0_16 = arith.constant 0 : index
    %c0_17 = arith.constant 0 : index
    %21 = vector.load %arg3[%c0_16, %c0_17] : memref<128x128xbf16, #tpu.memory_space<vmem>>, vector<128x128xbf16>
    %cst_18 = arith.constant dense<0.000000e+00> : vector<16x128xf32>
    %22 = tpu.matmul %3, %21, %cst_18 {dimension_numbers = #tpu.dot_dimension_numbers<[1], [0], [0], [1], [0, 0, 1, 1], [], []>} : vector<16x128xbf16>, vector<128x128xbf16>, vector<16x128xf32> -> vector<16x128xf32>
    %c0_19 = arith.constant 0 : index
    %c0_20 = arith.constant 0 : index
    %23 = vector.load %arg4[%c0_19, %c0_20] : memref<1x128xf32, #tpu.memory_space<vmem>>, vector<1x128xf32>
    %24 = vector.broadcast %23 : vector<1x128xf32> to vector<16x128xf32>
    %25 = arith.addf %22, %24 : vector<16x128xf32>
    %cst_21 = arith.constant 0.000000e+00 : f32
    %26 = vector.broadcast %cst_21 : f32 to vector<16x128xf32>
    %27 = arith.maximumf %25, %26 : vector<16x128xf32>
    %28 = arith.truncf %27 : vector<16x128xf32> to vector<16x128xbf16>
    %c0_22 = arith.constant 0 : index
    %c0_23 = arith.constant 0 : index
    %29 = vector.load %arg5[%c0_22, %c0_23] : memref<128x128xbf16, #tpu.memory_space<vmem>>, vector<128x128xbf16>
    %cst_24 = arith.constant dense<0.000000e+00> : vector<16x128xf32>
    %30 = tpu.matmul %28, %29, %cst_24 {dimension_numbers = #tpu.dot_dimension_numbers<[1], [0], [0], [1], [0, 0, 1, 1], [], []>} : vector<16x128xbf16>, vector<128x128xbf16>, vector<16x128xf32> -> vector<16x128xf32>
    %c0_25 = arith.constant 0 : index
    %c0_26 = arith.constant 0 : index
    %31 = vector.load %arg6[%c0_25, %c0_26] : memref<1x128xf32, #tpu.memory_space<vmem>>, vector<1x128xf32>
    %32 = vector.broadcast %31 : vector<1x128xf32> to vector<16x128xf32>
    %33 = arith.addf %30, %32 : vector<16x128xf32>
    %cst_27 = arith.constant 0.000000e+00 : f32
    %34 = vector.broadcast %cst_27 : f32 to vector<16x128xf32>
    %35 = arith.maximumf %33, %34 : vector<16x128xf32>
    %36 = arith.truncf %35 : vector<16x128xf32> to vector<16x128xbf16>
    %37 = vector.shape_cast %36 : vector<16x128xbf16> to vector<2x8x128xbf16>
    "tpu.trace_start"() <{level = 10 : i32, message = "bik,bjk->bij"}> : () -> ()
    %cst_28 = arith.constant dense<0.000000e+00> : vector<2x8x8xf32>
    %38 = tpu.matmul %20, %37, %cst_28 {dimension_numbers = #tpu.dot_dimension_numbers<[2], [2], [1], [1], [0, 0, 0, 1, 1, 1], [0], [0]>} : vector<2x8x128xbf16>, vector<2x8x128xbf16>, vector<2x8x8xf32> -> vector<2x8x8xf32>
    %cst_29 = arith.constant dense<0.000000e+00> : vector<2x8x8xf32>
    %39 = tpu.matmul %37, %20, %cst_29 {dimension_numbers = #tpu.dot_dimension_numbers<[2], [2], [1], [1], [0, 0, 0, 1, 1, 1], [0], [0]>} : vector<2x8x128xbf16>, vector<2x8x128xbf16>, vector<2x8x8xf32> -> vector<2x8x8xf32>
    "tpu.trace_stop"() : () -> ()
    %cst_30 = arith.constant dense<0xFF800000> : vector<2x8xf32>
    %40 = vector.multi_reduction <maximumf>, %38, %cst_30 [2] : vector<2x8x8xf32> to vector<2x8xf32>
    %41 = vector.shape_cast %40 : vector<2x8xf32> to vector<2x8x1xf32>
    %42 = vector.broadcast %41 : vector<2x8x1xf32> to vector<2x8x8xf32>
    %43 = arith.subf %38, %42 : vector<2x8x8xf32>
    %44 = math.exp %43 : vector<2x8x8xf32>
    %cst_31 = arith.constant dense<0.000000e+00> : vector<2x8xf32>
    %45 = vector.multi_reduction <add>, %44, %cst_31 [2] : vector<2x8x8xf32> to vector<2x8xf32>
    %46 = vector.shape_cast %45 : vector<2x8xf32> to vector<2x8x1xf32>
    %47 = vector.broadcast %46 : vector<2x8x1xf32> to vector<2x8x8xf32>
    %48 = arith.divf %44, %47 : vector<2x8x8xf32>
    %49 = arith.truncf %48 : vector<2x8x8xf32> to vector<2x8x8xbf16>
    %cst_32 = arith.constant dense<0xFF800000> : vector<2x8xf32>
    %50 = vector.multi_reduction <maximumf>, %39, %cst_32 [2] : vector<2x8x8xf32> to vector<2x8xf32>
    %51 = vector.shape_cast %50 : vector<2x8xf32> to vector<2x8x1xf32>
    %52 = vector.broadcast %51 : vector<2x8x1xf32> to vector<2x8x8xf32>
    %53 = arith.subf %39, %52 : vector<2x8x8xf32>
    %54 = math.exp %53 : vector<2x8x8xf32>
    %cst_33 = arith.constant dense<0.000000e+00> : vector<2x8xf32>
    %55 = vector.multi_reduction <add>, %54, %cst_33 [2] : vector<2x8x8xf32> to vector<2x8xf32>
    %56 = vector.shape_cast %55 : vector<2x8xf32> to vector<2x8x1xf32>
    %57 = vector.broadcast %56 : vector<2x8x1xf32> to vector<2x8x8xf32>
    %58 = arith.divf %54, %57 : vector<2x8x8xf32>
    %59 = arith.truncf %58 : vector<2x8x8xf32> to vector<2x8x8xbf16>
    "tpu.trace_start"() <{level = 10 : i32, message = "bij,bjk->bik"}> : () -> ()
    %cst_34 = arith.constant dense<0.000000e+00> : vector<2x8x128xf32>
    %60 = tpu.matmul %49, %1, %cst_34 {dimension_numbers = #tpu.dot_dimension_numbers<[2], [1], [1], [2], [0, 0, 0, 1, 1, 2], [0], [0]>} : vector<2x8x8xbf16>, vector<2x8x128xbf16>, vector<2x8x128xf32> -> vector<2x8x128xf32>
    "tpu.trace_stop"() : () -> ()
    %61 = arith.truncf %60 : vector<2x8x128xf32> to vector<2x8x128xbf16>
    %62 = vector.shape_cast %61 : vector<2x8x128xbf16> to vector<16x128xbf16>
    "tpu.trace_start"() <{level = 10 : i32, message = "bij,bjk->bik"}> : () -> ()
    %cst_35 = arith.constant dense<0.000000e+00> : vector<2x8x128xf32>
    %63 = tpu.matmul %59, %0, %cst_35 {dimension_numbers = #tpu.dot_dimension_numbers<[2], [1], [1], [2], [0, 0, 0, 1, 1, 2], [0], [0]>} : vector<2x8x8xbf16>, vector<2x8x128xbf16>, vector<2x8x128xf32> -> vector<2x8x128xf32>
    "tpu.trace_stop"() : () -> ()
    %64 = arith.truncf %63 : vector<2x8x128xf32> to vector<2x8x128xbf16>
    %65 = vector.shape_cast %64 : vector<2x8x128xbf16> to vector<16x128xbf16>
    %c0_36 = arith.constant 0 : index
    %c0_37 = arith.constant 0 : index
    %66 = vector.load %arg7[%c0_36, %c0_37] : memref<128x128xbf16, #tpu.memory_space<vmem>>, vector<128x128xbf16>
    %cst_38 = arith.constant dense<0.000000e+00> : vector<16x128xf32>
    %67 = tpu.matmul %2, %66, %cst_38 {dimension_numbers = #tpu.dot_dimension_numbers<[1], [0], [0], [1], [0, 0, 1, 1], [], []>} : vector<16x128xbf16>, vector<128x128xbf16>, vector<16x128xf32> -> vector<16x128xf32>
    %c0_39 = arith.constant 0 : index
    %c0_40 = arith.constant 0 : index
    %68 = vector.load %arg8[%c0_39, %c0_40] : memref<128x128xbf16, #tpu.memory_space<vmem>>, vector<128x128xbf16>
    %cst_41 = arith.constant dense<0.000000e+00> : vector<16x128xf32>
    %69 = tpu.matmul %62, %68, %cst_41 {dimension_numbers = #tpu.dot_dimension_numbers<[1], [0], [0], [1], [0, 0, 1, 1], [], []>} : vector<16x128xbf16>, vector<128x128xbf16>, vector<16x128xf32> -> vector<16x128xf32>
    %70 = arith.addf %67, %69 : vector<16x128xf32>
    %c0_42 = arith.constant 0 : index
    %c0_43 = arith.constant 0 : index
    %71 = vector.load %arg9[%c0_42, %c0_43] : memref<1x128xf32, #tpu.memory_space<vmem>>, vector<1x128xf32>
    %72 = vector.broadcast %71 : vector<1x128xf32> to vector<16x128xf32>
    %73 = arith.addf %70, %72 : vector<16x128xf32>
    %cst_44 = arith.constant 0.000000e+00 : f32
    %74 = vector.broadcast %cst_44 : f32 to vector<16x128xf32>
    %75 = arith.maximumf %73, %74 : vector<16x128xf32>
    %76 = arith.truncf %75 : vector<16x128xf32> to vector<16x128xbf16>
    %c0_45 = arith.constant 0 : index
    %c0_46 = arith.constant 0 : index
    %77 = vector.load %arg10[%c0_45, %c0_46] : memref<128x128xbf16, #tpu.memory_space<vmem>>, vector<128x128xbf16>
    %cst_47 = arith.constant dense<0.000000e+00> : vector<16x128xf32>
    %78 = tpu.matmul %76, %77, %cst_47 {dimension_numbers = #tpu.dot_dimension_numbers<[1], [0], [0], [1], [0, 0, 1, 1], [], []>} : vector<16x128xbf16>, vector<128x128xbf16>, vector<16x128xf32> -> vector<16x128xf32>
    %c0_48 = arith.constant 0 : index
    %c0_49 = arith.constant 0 : index
    %79 = vector.load %arg11[%c0_48, %c0_49] : memref<1x128xf32, #tpu.memory_space<vmem>>, vector<1x128xf32>
    %80 = vector.broadcast %79 : vector<1x128xf32> to vector<16x128xf32>
    %81 = arith.addf %78, %80 : vector<16x128xf32>
    %cst_50 = arith.constant 0.000000e+00 : f32
    %82 = vector.broadcast %cst_50 : f32 to vector<16x128xf32>
    %83 = arith.maximumf %81, %82 : vector<16x128xf32>
    %84 = vector.shape_cast %83 : vector<16x128xf32> to vector<2x8x128xf32>
    %c0_51 = arith.constant 0 : index
    %c0_52 = arith.constant 0 : index
    %85 = vector.load %arg7[%c0_51, %c0_52] : memref<128x128xbf16, #tpu.memory_space<vmem>>, vector<128x128xbf16>
    %cst_53 = arith.constant dense<0.000000e+00> : vector<16x128xf32>
    %86 = tpu.matmul %3, %85, %cst_53 {dimension_numbers = #tpu.dot_dimension_numbers<[1], [0], [0], [1], [0, 0, 1, 1], [], []>} : vector<16x128xbf16>, vector<128x128xbf16>, vector<16x128xf32> -> vector<16x128xf32>
    %c0_54 = arith.constant 0 : index
    %c0_55 = arith.constant 0 : index
    %87 = vector.load %arg8[%c0_54, %c0_55] : memref<128x128xbf16, #tpu.memory_space<vmem>>, vector<128x128xbf16>
    %cst_56 = arith.constant dense<0.000000e+00> : vector<16x128xf32>
    %88 = tpu.matmul %65, %87, %cst_56 {dimension_numbers = #tpu.dot_dimension_numbers<[1], [0], [0], [1], [0, 0, 1, 1], [], []>} : vector<16x128xbf16>, vector<128x128xbf16>, vector<16x128xf32> -> vector<16x128xf32>
    %89 = arith.addf %86, %88 : vector<16x128xf32>
    %c0_57 = arith.constant 0 : index
    %c0_58 = arith.constant 0 : index
    %90 = vector.load %arg9[%c0_57, %c0_58] : memref<1x128xf32, #tpu.memory_space<vmem>>, vector<1x128xf32>
    %91 = vector.broadcast %90 : vector<1x128xf32> to vector<16x128xf32>
    %92 = arith.addf %89, %91 : vector<16x128xf32>
    %cst_59 = arith.constant 0.000000e+00 : f32
    %93 = vector.broadcast %cst_59 : f32 to vector<16x128xf32>
    %94 = arith.maximumf %92, %93 : vector<16x128xf32>
    %95 = arith.truncf %94 : vector<16x128xf32> to vector<16x128xbf16>
    %c0_60 = arith.constant 0 : index
    %c0_61 = arith.constant 0 : index
    %96 = vector.load %arg10[%c0_60, %c0_61] : memref<128x128xbf16, #tpu.memory_space<vmem>>, vector<128x128xbf16>
    %cst_62 = arith.constant dense<0.000000e+00> : vector<16x128xf32>
    %97 = tpu.matmul %95, %96, %cst_62 {dimension_numbers = #tpu.dot_dimension_numbers<[1], [0], [0], [1], [0, 0, 1, 1], [], []>} : vector<16x128xbf16>, vector<128x128xbf16>, vector<16x128xf32> -> vector<16x128xf32>
    %c0_63 = arith.constant 0 : index
    %c0_64 = arith.constant 0 : index
    %98 = vector.load %arg11[%c0_63, %c0_64] : memref<1x128xf32, #tpu.memory_space<vmem>>, vector<1x128xf32>
    %99 = vector.broadcast %98 : vector<1x128xf32> to vector<16x128xf32>
    %100 = arith.addf %97, %99 : vector<16x128xf32>
    %cst_65 = arith.constant 0.000000e+00 : f32
    %101 = vector.broadcast %cst_65 : f32 to vector<16x128xf32>
    %102 = arith.maximumf %100, %101 : vector<16x128xf32>
    %103 = vector.shape_cast %102 : vector<16x128xf32> to vector<2x8x128xf32>
    %cst_66 = arith.constant dense<0.000000e+00> : vector<2x128xf32>
    %104 = vector.multi_reduction <add>, %84, %cst_66 [1] : vector<2x8x128xf32> to vector<2x128xf32>
    %105 = arith.truncf %104 : vector<2x128xf32> to vector<2x128xbf16>
    %cst_67 = arith.constant dense<0.000000e+00> : vector<2x128xf32>
    %106 = vector.multi_reduction <add>, %103, %cst_67 [1] : vector<2x8x128xf32> to vector<2x128xf32>
    %107 = arith.truncf %106 : vector<2x128xf32> to vector<2x128xbf16>
    %c0_68 = arith.constant 0 : index
    %c0_69 = arith.constant 0 : index
    %108 = vector.load %arg12[%c0_68, %c0_69] : memref<128x128xbf16, #tpu.memory_space<vmem>>, vector<128x128xbf16>
    %cst_70 = arith.constant dense<0.000000e+00> : vector<2x128xf32>
    %109 = tpu.matmul %105, %108, %cst_70 {dimension_numbers = #tpu.dot_dimension_numbers<[1], [0], [0], [1], [0, 0, 1, 1], [], []>} : vector<2x128xbf16>, vector<128x128xbf16>, vector<2x128xf32> -> vector<2x128xf32>
    %c0_71 = arith.constant 0 : index
    %c0_72 = arith.constant 0 : index
    %110 = vector.load %arg13[%c0_71, %c0_72] : memref<128x128xbf16, #tpu.memory_space<vmem>>, vector<128x128xbf16>
    %cst_73 = arith.constant dense<0.000000e+00> : vector<2x128xf32>
    %111 = tpu.matmul %107, %110, %cst_73 {dimension_numbers = #tpu.dot_dimension_numbers<[1], [0], [0], [1], [0, 0, 1, 1], [], []>} : vector<2x128xbf16>, vector<128x128xbf16>, vector<2x128xf32> -> vector<2x128xf32>
    %112 = arith.addf %109, %111 : vector<2x128xf32>
    %c0_74 = arith.constant 0 : index
    %c0_75 = arith.constant 0 : index
    %113 = vector.load %arg14[%c0_74, %c0_75] : memref<1x128xf32, #tpu.memory_space<vmem>>, vector<1x128xf32>
    %114 = vector.broadcast %113 : vector<1x128xf32> to vector<2x128xf32>
    %115 = arith.addf %112, %114 : vector<2x128xf32>
    %cst_76 = arith.constant 0.000000e+00 : f32
    %116 = vector.broadcast %cst_76 : f32 to vector<2x128xf32>
    %117 = arith.maximumf %115, %116 : vector<2x128xf32>
    %118 = arith.truncf %117 : vector<2x128xf32> to vector<2x128xbf16>
    %c0_77 = arith.constant 0 : index
    %c0_78 = arith.constant 0 : index
    %119 = vector.load %arg15[%c0_77, %c0_78] : memref<128x128xbf16, #tpu.memory_space<vmem>>, vector<128x128xbf16>
    %cst_79 = arith.constant dense<0.000000e+00> : vector<2x128xf32>
    %120 = tpu.matmul %118, %119, %cst_79 {dimension_numbers = #tpu.dot_dimension_numbers<[1], [0], [0], [1], [0, 0, 1, 1], [], []>} : vector<2x128xbf16>, vector<128x128xbf16>, vector<2x128xf32> -> vector<2x128xf32>
    %c0_80 = arith.constant 0 : index
    %c0_81 = arith.constant 0 : index
    %121 = vector.load %arg16[%c0_80, %c0_81] : memref<1x128xf32, #tpu.memory_space<vmem>>, vector<1x128xf32>
    %122 = vector.broadcast %121 : vector<1x128xf32> to vector<2x128xf32>
    %123 = arith.addf %120, %122 : vector<2x128xf32>
    %cst_82 = arith.constant 0.000000e+00 : f32
    %124 = vector.broadcast %cst_82 : f32 to vector<2x128xf32>
    %125 = arith.maximumf %123, %124 : vector<2x128xf32>
    %126 = arith.truncf %125 : vector<2x128xf32> to vector<2x128xbf16>
    %c0_83 = arith.constant 0 : index
    %c0_84 = arith.constant 0 : index
    %127 = vector.load %arg17[%c0_83, %c0_84] : memref<128x4xbf16, #tpu.memory_space<vmem>>, vector<128x4xbf16>
    %cst_85 = arith.constant dense<0.000000e+00> : vector<2x4xf32>
    %128 = tpu.matmul %126, %127, %cst_85 {dimension_numbers = #tpu.dot_dimension_numbers<[1], [0], [0], [1], [0, 0, 1, 1], [], []>} : vector<2x128xbf16>, vector<128x4xbf16>, vector<2x4xf32> -> vector<2x4xf32>
    %c0_86 = arith.constant 0 : index
    %c0_87 = arith.constant 0 : index
    %129 = vector.load %arg18[%c0_86, %c0_87] : memref<1x4xf32, #tpu.memory_space<vmem>>, vector<1x4xf32>
    %130 = vector.broadcast %129 : vector<1x4xf32> to vector<2x4xf32>
    %131 = arith.addf %128, %130 : vector<2x4xf32>
    %132 = tpu.iota {dimensions = array<i32: 1>} : vector<2x4xi32>
    %c2_i32 = arith.constant 2 : i32
    %133 = vector.broadcast %c2_i32 : i32 to vector<2x4xi32>
    %134 = arith.cmpi slt, %132, %133 : vector<2x4xi32>
    %cst_88 = arith.constant 0xFF800000 : f32
    %135 = vector.broadcast %cst_88 : f32 to vector<2x4xf32>
    %136 = arith.select %134, %131, %135 : vector<2x4xi1>, vector<2x4xf32>
    %cst_89 = arith.constant dense<0xFF800000> : vector<2xf32>
    %137 = vector.multi_reduction <maximumf>, %136, %cst_89 [1] : vector<2x4xf32> to vector<2xf32>
    %138 = vector.shape_cast %137 : vector<2xf32> to vector<2x1xf32>
    %cst_90 = arith.constant 0xFF800000 : f32
    %139 = vector.broadcast %cst_90 : f32 to vector<2x4xf32>
    %140 = arith.select %134, %139, %131 : vector<2x4xi1>, vector<2x4xf32>
    %cst_91 = arith.constant dense<0xFF800000> : vector<2xf32>
    %141 = vector.multi_reduction <maximumf>, %140, %cst_91 [1] : vector<2x4xf32> to vector<2xf32>
    %142 = vector.shape_cast %141 : vector<2xf32> to vector<2x1xf32>
    %143 = vector.shape_cast %138 : vector<2x1xf32> to vector<2x1xf32>
    %144 = vector.broadcast %143 : vector<2x1xf32> to vector<2x4xf32>
    %145 = vector.shape_cast %142 : vector<2x1xf32> to vector<2x1xf32>
    %146 = vector.broadcast %145 : vector<2x1xf32> to vector<2x4xf32>
    %147 = arith.select %134, %144, %146 : vector<2x4xi1>, vector<2x4xf32>
    %148 = arith.subf %131, %147 : vector<2x4xf32>
    %149 = math.exp %148 : vector<2x4xf32>
    %cst_92 = arith.constant 0.000000e+00 : f32
    %150 = vector.broadcast %cst_92 : f32 to vector<2x4xf32>
    %151 = arith.select %134, %149, %150 : vector<2x4xi1>, vector<2x4xf32>
    %cst_93 = arith.constant dense<0.000000e+00> : vector<2xf32>
    %152 = vector.multi_reduction <add>, %151, %cst_93 [1] : vector<2x4xf32> to vector<2xf32>
    %153 = vector.shape_cast %152 : vector<2xf32> to vector<2x1xf32>
    %cst_94 = arith.constant 0.000000e+00 : f32
    %154 = vector.broadcast %cst_94 : f32 to vector<2x4xf32>
    %155 = arith.select %134, %154, %149 : vector<2x4xi1>, vector<2x4xf32>
    %cst_95 = arith.constant dense<0.000000e+00> : vector<2xf32>
    %156 = vector.multi_reduction <add>, %155, %cst_95 [1] : vector<2x4xf32> to vector<2xf32>
    %157 = vector.shape_cast %156 : vector<2xf32> to vector<2x1xf32>
    %158 = vector.shape_cast %153 : vector<2x1xf32> to vector<2x1xf32>
    %159 = vector.broadcast %158 : vector<2x1xf32> to vector<2x4xf32>
    %160 = vector.shape_cast %157 : vector<2x1xf32> to vector<2x1xf32>
    %161 = vector.broadcast %160 : vector<2x1xf32> to vector<2x4xf32>
    %162 = arith.select %134, %159, %161 : vector<2x4xi1>, vector<2x4xf32>
    %163 = math.log %162 : vector<2x4xf32>
    %164 = arith.subf %148, %163 : vector<2x4xf32>
    %c0_96 = arith.constant 0 : index
    %c0_97 = arith.constant 0 : index
    %165 = vector.load %arg19[%c0_96, %c0_97] : memref<2x4xf32, #tpu.memory_space<vmem>>, vector<2x4xf32>
    tpu.vector_store %arg19[%c0_96, %c0_97], %164 {strides = array<i32>} : memref<2x4xf32, #tpu.memory_space<vmem>>, vector<2x4xf32>,
    return
  }
  func.func @transform_0(%arg0: i32) -> (i32, i32, i32) {
    %c0_i32 = arith.constant 0 : i32
    %c0_i32_0 = arith.constant 0 : i32
    %c0_i32_1 = arith.constant 0 : i32
    return %arg0, %c0_i32, %c0_i32_0 : i32, i32, i32
  }
  func.func @transform_1(%arg0: i32) -> (i32, i32, i32) {
    %c0_i32 = arith.constant 0 : i32
    %c0_i32_0 = arith.constant 0 : i32
    %c0_i32_1 = arith.constant 0 : i32
    return %arg0, %c0_i32, %c0_i32_0 : i32, i32, i32
  }
  func.func @transform_2(%arg0: i32) -> (i32, i32) {
    %c0_i32 = arith.constant 0 : i32
    %c0_i32_0 = arith.constant 0 : i32
    %c0_i32_1 = arith.constant 0 : i32
    return %c0_i32, %c0_i32_0 : i32, i32
  }
  func.func @transform_3(%arg0: i32) -> (i32, i32) {
    %c0_i32 = arith.constant 0 : i32
    %c0_i32_0 = arith.constant 0 : i32
    %c0_i32_1 = arith.constant 0 : i32
    return %c0_i32, %c0_i32_0 : i32, i32
  }
  func.func @transform_4(%arg0: i32) -> (i32, i32) {
    %c0_i32 = arith.constant 0 : i32
    %c0_i32_0 = arith.constant 0 : i32
    %c0_i32_1 = arith.constant 0 : i32
    return %c0_i32, %c0_i32_0 : i32, i32
  }
  func.func @transform_5(%arg0: i32) -> (i32, i32) {
    %c0_i32 = arith.constant 0 : i32
    %c0_i32_0 = arith.constant 0 : i32
    %c0_i32_1 = arith.constant 0 : i32
    return %c0_i32, %c0_i32_0 : i32, i32
  }
  func.func @transform_6(%arg0: i32) -> (i32, i32) {
    %c0_i32 = arith.constant 0 : i32
    %c0_i32_0 = arith.constant 0 : i32
    %c0_i32_1 = arith.constant 0 : i32
    return %c0_i32, %c0_i32_0 : i32, i32
  }
  func.func @transform_7(%arg0: i32) -> (i32, i32) {
    %c0_i32 = arith.constant 0 : i32
    %c0_i32_0 = arith.constant 0 : i32
    %c0_i32_1 = arith.constant 0 : i32
    return %c0_i32, %c0_i32_0 : i32, i32
  }
  func.func @transform_8(%arg0: i32) -> (i32, i32) {
    %c0_i32 = arith.constant 0 : i32
    %c0_i32_0 = arith.constant 0 : i32
    %c0_i32_1 = arith.constant 0 : i32
    return %c0_i32, %c0_i32_0 : i32, i32
  }
  func.func @transform_9(%arg0: i32) -> (i32, i32) {
    %c0_i32 = arith.constant 0 : i32
    %c0_i32_0 = arith.constant 0 : i32
    %c0_i32_1 = arith.constant 0 : i32
    return %c0_i32, %c0_i32_0 : i32, i32
  }
  func.func @transform_10(%arg0: i32) -> (i32, i32) {
    %c0_i32 = arith.constant 0 : i32
    %c0_i32_0 = arith.constant 0 : i32
    %c0_i32_1 = arith.constant 0 : i32
    return %c0_i32, %c0_i32_0 : i32, i32
  }
  func.func @transform_11(%arg0: i32) -> (i32, i32) {
    %c0_i32 = arith.constant 0 : i32
    %c0_i32_0 = arith.constant 0 : i32
    %c0_i32_1 = arith.constant 0 : i32
    return %c0_i32, %c0_i32_0 : i32, i32
  }
  func.func @transform_12(%arg0: i32) -> (i32, i32) {
    %c0_i32 = arith.constant 0 : i32
    %c0_i32_0 = arith.constant 0 : i32
    %c0_i32_1 = arith.constant 0 : i32
    return %c0_i32, %c0_i32_0 : i32, i32
  }
  func.func @transform_13(%arg0: i32) -> (i32, i32) {
    %c0_i32 = arith.constant 0 : i32
    %c0_i32_0 = arith.constant 0 : i32
    %c0_i32_1 = arith.constant 0 : i32
    return %c0_i32, %c0_i32_0 : i32, i32
  }
  func.func @transform_14(%arg0: i32) -> (i32, i32) {
    %c0_i32 = arith.constant 0 : i32
    %c0_i32_0 = arith.constant 0 : i32
    %c0_i32_1 = arith.constant 0 : i32
    return %c0_i32, %c0_i32_0 : i32, i32
  }
  func.func @transform_15(%arg0: i32) -> (i32, i32) {
    %c0_i32 = arith.constant 0 : i32
    %c0_i32_0 = arith.constant 0 : i32
    %c0_i32_1 = arith.constant 0 : i32
    return %c0_i32, %c0_i32_0 : i32, i32
  }
  func.func @transform_16(%arg0: i32) -> (i32, i32) {
    %c0_i32 = arith.constant 0 : i32
    %c0_i32_0 = arith.constant 0 : i32
    %c0_i32_1 = arith.constant 0 : i32
    return %c0_i32, %c0_i32_0 : i32, i32
  }
  func.func @transform_17(%arg0: i32) -> (i32, i32) {
    %c0_i32 = arith.constant 0 : i32
    %c0_i32_0 = arith.constant 0 : i32
    %c0_i32_1 = arith.constant 0 : i32
    return %c0_i32, %c0_i32_0 : i32, i32
  }
  func.func @transform_18(%arg0: i32) -> (i32, i32) {
    %c0_i32 = arith.constant 0 : i32
    %c0_i32_0 = arith.constant 0 : i32
    return %arg0, %c0_i32 : i32, i32
  }
}

module attributes {stable_mosaic.version = 11 : i64} {
  func.func @fused_attn_head_kernel(%arg0: i32, %arg1: memref<2x8x128xbf16, #tpu.memory_space<vmem>>, %arg2: memref<2x8x128xbf16, #tpu.memory_space<vmem>>, %arg3: memref<128x128xbf16, #tpu.memory_space<vmem>>, %arg4: memref<1x128xf32, #tpu.memory_space<vmem>>, %arg5: memref<128x128xbf16, #tpu.memory_space<vmem>>, %arg6: memref<1x128xf32, #tpu.memory_space<vmem>>, %arg7: memref<128x128xbf16, #tpu.memory_space<vmem>>, %arg8: memref<128x128xbf16, #tpu.memory_space<vmem>>, %arg9: memref<1x128xf32, #tpu.memory_space<vmem>>, %arg10: memref<128x128xbf16, #tpu.memory_space<vmem>>, %arg11: memref<1x128xf32, #tpu.memory_space<vmem>>, %arg12: memref<128x128xbf16, #tpu.memory_space<vmem>>, %arg13: memref<128x128xbf16, #tpu.memory_space<vmem>>, %arg14: memref<1x128xf32, #tpu.memory_space<vmem>>, %arg15: memref<128x128xbf16, #tpu.memory_space<vmem>>, %arg16: memref<1x128xf32, #tpu.memory_space<vmem>>, %arg17: memref<128x4xbf16, #tpu.memory_space<vmem>>, %arg18: memref<1x4xf32, #tpu.memory_space<vmem>>, %arg19: memref<2x4xf32, #tpu.memory_space<vmem>>) attributes {dimension_semantics = [#tpu.dimension_semantics<parallel>], iteration_bounds = array<i64: 1>, scalar_prefetch = 0 : i64, scratch_operands = 0 : i64, tpu.core_type = #tpu.core_type<tc>, window_params = [{transform_indices = @transform_0, window_bounds = array<i64: 2, 8, 128>}, {transform_indices = @transform_1, window_bounds = array<i64: 2, 8, 128>}, {pipeline_mode = #tpu.pipeline_mode<synchronous>, transform_indices = @transform_2, window_bounds = array<i64: 128, 128>}, {pipeline_mode = #tpu.pipeline_mode<synchronous>, transform_indices = @transform_3, window_bounds = array<i64: 1, 128>}, {pipeline_mode = #tpu.pipeline_mode<synchronous>, transform_indices = @transform_4, window_bounds = array<i64: 128, 128>}, {pipeline_mode = #tpu.pipeline_mode<synchronous>, transform_indices = @transform_5, window_bounds = array<i64: 1, 128>}, {pipeline_mode = #tpu.pipeline_mode<synchronous>, transform_indices = @transform_6, window_bounds = array<i64: 128, 128>}, {pipeline_mode = #tpu.pipeline_mode<synchronous>, transform_indices = @transform_7, window_bounds = array<i64: 128, 128>}, {pipeline_mode = #tpu.pipeline_mode<synchronous>, transform_indices = @transform_8, window_bounds = array<i64: 1, 128>}, {pipeline_mode = #tpu.pipeline_mode<synchronous>, transform_indices = @transform_9, window_bounds = array<i64: 128, 128>}, {pipeline_mode = #tpu.pipeline_mode<synchronous>, transform_indices = @transform_10, window_bounds = array<i64: 1, 128>}, {pipeline_mode = #tpu.pipeline_mode<synchronous>, transform_indices = @transform_11, window_bounds = array<i64: 128, 128>}, {pipeline_mode = #tpu.pipeline_mode<synchronous>, transform_indices = @transform_12, window_bounds = array<i64: 128, 128>}, {pipeline_mode = #tpu.pipeline_mode<synchronous>, transform_indices = @transform_13, window_bounds = array<i64: 1, 128>}, {pipeline_mode = #tpu.pipeline_mode<synchronous>, transform_indices = @transform_14, window_bounds = array<i64: 128, 128>}, {pipeline_mode = #tpu.pipeline_mode<synchronous>, transform_indices = @transform_15, window_bounds = array<i64: 1, 128>}, {pipeline_mode = #tpu.pipeline_mode<synchronous>, transform_indices = @transform_16, window_bounds = array<i64: 128, 4>}, {pipeline_mode = #tpu.pipeline_mode<synchronous>, transform_indices = @transform_17, window_bounds = array<i64: 1, 4>}, {transform_indices = @transform_18, window_bounds = array<i64: 2, 4>}]} {
    %c0 = arith.constant 0 : index
    %c0_0 = arith.constant 0 : index
    %c0_1 = arith.constant 0 : index
    %0 = vector.load %arg1[%c0, %c0_0, %c0_1] : memref<2x8x128xbf16, #tpu.memory_space<vmem>>, vector<2x8x128xbf16>
    %c0_2 = arith.constant 0 : index
    %c0_3 = arith.constant 0 : index
    %c0_4 = arith.constant 0 : index
    %1 = vector.load %arg2[%c0_2, %c0_3, %c0_4] : memref<2x8x128xbf16, #tpu.memory_space<vmem>>, vector<2x8x128xbf16>
    %2 = vector.shape_cast %0 : vector<2x8x128xbf16> to vector<16x128xbf16>
    %3 = vector.shape_cast %1 : vector<2x8x128xbf16> to vector<16x128xbf16>
    %c0_5 = arith.constant 0 : index
    %c0_6 = arith.constant 0 : index
    %4 = vector.load %arg3[%c0_5, %c0_6] : memref<128x128xbf16, #tpu.memory_space<vmem>>, vector<128x128xbf16>
    %cst = arith.constant dense<0.000000e+00> : vector<16x128xf32>
    %5 = tpu.matmul %2, %4, %cst {dimension_numbers = #tpu.dot_dimension_numbers<[1], [0], [0], [1], [0, 0, 1, 1], [], []>} : vector<16x128xbf16>, vector<128x128xbf16>, vector<16x128xf32> -> vector<16x128xf32>
    %c0_7 = arith.constant 0 : index
    %c0_8 = arith.constant 0 : index
    %6 = vector.load %arg4[%c0_7, %c0_8] : memref<1x128xf32, #tpu.memory_space<vmem>>, vector<1x128xf32>
    %7 = vector.broadcast %6 : vector<1x128xf32> to vector<16x128xf32>
    %8 = arith.addf %5, %7 : vector<16x128xf32>
    %cst_9 = arith.constant 0.000000e+00 : f32
    %9 = vector.broadcast %cst_9 : f32 to vector<16x128xf32>
    %10 = arith.maximumf %8, %9 : vector<16x128xf32>
    %11 = arith.truncf %10 : vector<16x128xf32> to vector<16x128xbf16>
    %c0_10 = arith.constant 0 : index
    %c0_11 = arith.constant 0 : index
    %12 = vector.load %arg5[%c0_10, %c0_11] : memref<128x128xbf16, #tpu.memory_space<vmem>>, vector<128x128xbf16>
    %cst_12 = arith.constant dense<0.000000e+00> : vector<16x128xf32>
    %13 = tpu.matmul %11, %12, %cst_12 {dimension_numbers = #tpu.dot_dimension_numbers<[1], [0], [0], [1], [0, 0, 1, 1], [], []>} : vector<16x128xbf16>, vector<128x128xbf16>, vector<16x128xf32> -> vector<16x128xf32>
    %c0_13 = arith.constant 0 : index
    %c0_14 = arith.constant 0 : index
    %14 = vector.load %arg6[%c0_13, %c0_14] : memref<1x128xf32, #tpu.memory_space<vmem>>, vector<1x128xf32>
    %15 = vector.broadcast %14 : vector<1x128xf32> to vector<16x128xf32>
    %16 = arith.addf %13, %15 : vector<16x128xf32>
    %cst_15 = arith.constant 0.000000e+00 : f32
    %17 = vector.broadcast %cst_15 : f32 to vector<16x128xf32>
    %18 = arith.maximumf %16, %17 : vector<16x128xf32>
    %19 = arith.truncf %18 : vector<16x128xf32> to vector<16x128xbf16>
    %20 = vector.shape_cast %19 : vector<16x128xbf16> to vector<2x8x128xbf16>
    %c0_16 = arith.constant 0 : index
    %c0_17 = arith.constant 0 : index
    %21 = vector.load %arg3[%c0_16, %c0_17] : memref<128x128xbf16, #tpu.memory_space<vmem>>, vector<128x128xbf16>
    %cst_18 = arith.constant dense<0.000000e+00> : vector<16x128xf32>
    %22 = tpu.matmul %3, %21, %cst_18 {dimension_numbers = #tpu.dot_dimension_numbers<[1], [0], [0], [1], [0, 0, 1, 1], [], []>} : vector<16x128xbf16>, vector<128x128xbf16>, vector<16x128xf32> -> vector<16x128xf32>
    %c0_19 = arith.constant 0 : index
    %c0_20 = arith.constant 0 : index
    %23 = vector.load %arg4[%c0_19, %c0_20] : memref<1x128xf32, #tpu.memory_space<vmem>>, vector<1x128xf32>
    %24 = vector.broadcast %23 : vector<1x128xf32> to vector<16x128xf32>
    %25 = arith.addf %22, %24 : vector<16x128xf32>
    %cst_21 = arith.constant 0.000000e+00 : f32
    %26 = vector.broadcast %cst_21 : f32 to vector<16x128xf32>
    %27 = arith.maximumf %25, %26 : vector<16x128xf32>
    %28 = arith.truncf %27 : vector<16x128xf32> to vector<16x128xbf16>
    %c0_22 = arith.constant 0 : index
    %c0_23 = arith.constant 0 : index
    %29 = vector.load %arg5[%c0_22, %c0_23] : memref<128x128xbf16, #tpu.memory_space<vmem>>, vector<128x128xbf16>
    %cst_24 = arith.constant dense<0.000000e+00> : vector<16x128xf32>
    %30 = tpu.matmul %28, %29, %cst_24 {dimension_numbers = #tpu.dot_dimension_numbers<[1], [0], [0], [1], [0, 0, 1, 1], [], []>} : vector<16x128xbf16>, vector<128x128xbf16>, vector<16x128xf32> -> vector<16x128xf32>
    %c0_25 = arith.constant 0 : index
    %c0_26 = arith.constant 0 : index
    %31 = vector.load %arg6[%c0_25, %c0_26] : memref<1x128xf32, #tpu.memory_space<vmem>>, vector<1x128xf32>
    %32 = vector.broadcast %31 : vector<1x128xf32> to vector<16x128xf32>
    %33 = arith.addf %30, %32 : vector<16x128xf32>
    %cst_27 = arith.constant 0.000000e+00 : f32
    %34 = vector.broadcast %cst_27 : f32 to vector<16x128xf32>
    %35 = arith.maximumf %33, %34 : vector<16x128xf32>
    %36 = arith.truncf %35 : vector<16x128xf32> to vector<16x128xbf16>
    %37 = vector.shape_cast %36 : vector<16x128xbf16> to vector<2x8x128xbf16>
    "tpu.trace_start"() <{level = 10 : i32, message = "bik,bjk->bij"}> : () -> ()
    %cst_28 = arith.constant dense<0.000000e+00> : vector<2x8x8xf32>
    %38 = tpu.matmul %20, %37, %cst_28 {dimension_numbers = #tpu.dot_dimension_numbers<[2], [2], [1], [1], [0, 0, 0, 1, 1, 1], [0], [0]>} : vector<2x8x128xbf16>, vector<2x8x128xbf16>, vector<2x8x8xf32> -> vector<2x8x8xf32>
    %cst_29 = arith.constant dense<0.000000e+00> : vector<2x8x8xf32>
    %39 = tpu.matmul %37, %20, %cst_29 {dimension_numbers = #tpu.dot_dimension_numbers<[2], [2], [1], [1], [0, 0, 0, 1, 1, 1], [0], [0]>} : vector<2x8x128xbf16>, vector<2x8x128xbf16>, vector<2x8x8xf32> -> vector<2x8x8xf32>
    "tpu.trace_stop"() : () -> ()
    %cst_30 = arith.constant dense<0xFF800000> : vector<2x8xf32>
    %40 = vector.multi_reduction <maximumf>, %38, %cst_30 [2] : vector<2x8x8xf32> to vector<2x8xf32>
    %41 = vector.shape_cast %40 : vector<2x8xf32> to vector<2x8x1xf32>
    %42 = vector.broadcast %41 : vector<2x8x1xf32> to vector<2x8x8xf32>
    %43 = arith.subf %38, %42 : vector<2x8x8xf32>
    %44 = math.exp %43 : vector<2x8x8xf32>
    %cst_31 = arith.constant dense<0.000000e+00> : vector<2x8xf32>
    %45 = vector.multi_reduction <add>, %44, %cst_31 [2] : vector<2x8x8xf32> to vector<2x8xf32>
    %46 = vector.shape_cast %45 : vector<2x8xf32> to vector<2x8x1xf32>
    %47 = vector.broadcast %46 : vector<2x8x1xf32> to vector<2x8x8xf32>
    %48 = arith.divf %44, %47 : vector<2x8x8xf32>
    %49 = arith.truncf %48 : vector<2x8x8xf32> to vector<2x8x8xbf16>
    %cst_32 = arith.constant dense<0xFF800000> : vector<2x8xf32>
    %50 = vector.multi_reduction <maximumf>, %39, %cst_32 [2] : vector<2x8x8xf32> to vector<2x8xf32>
    %51 = vector.shape_cast %50 : vector<2x8xf32> to vector<2x8x1xf32>
    %52 = vector.broadcast %51 : vector<2x8x1xf32> to vector<2x8x8xf32>
    %53 = arith.subf %39, %52 : vector<2x8x8xf32>
    %54 = math.exp %53 : vector<2x8x8xf32>
    %cst_33 = arith.constant dense<0.000000e+00> : vector<2x8xf32>
    %55 = vector.multi_reduction <add>, %54, %cst_33 [2] : vector<2x8x8xf32> to vector<2x8xf32>
    %56 = vector.shape_cast %55 : vector<2x8xf32> to vector<2x8x1xf32>
    %57 = vector.broadcast %56 : vector<2x8x1xf32> to vector<2x8x8xf32>
    %58 = arith.divf %54, %57 : vector<2x8x8xf32>
    %59 = arith.truncf %58 : vector<2x8x8xf32> to vector<2x8x8xbf16>
    "tpu.trace_start"() <{level = 10 : i32, message = "bij,bjk->bik"}> : () -> ()
    %cst_34 = arith.constant dense<0.000000e+00> : vector<2x8x128xf32>
    %60 = tpu.matmul %49, %1, %cst_34 {dimension_numbers = #tpu.dot_dimension_numbers<[2], [1], [1], [2], [0, 0, 0, 1, 1, 2], [0], [0]>} : vector<2x8x8xbf16>, vector<2x8x128xbf16>, vector<2x8x128xf32> -> vector<2x8x128xf32>
    "tpu.trace_stop"() : () -> ()
    %61 = arith.truncf %60 : vector<2x8x128xf32> to vector<2x8x128xbf16>
    %62 = vector.shape_cast %61 : vector<2x8x128xbf16> to vector<16x128xbf16>
    "tpu.trace_start"() <{level = 10 : i32, message = "bij,bjk->bik"}> : () -> ()
    %cst_35 = arith.constant dense<0.000000e+00> : vector<2x8x128xf32>
    %63 = tpu.matmul %59, %0, %cst_35 {dimension_numbers = #tpu.dot_dimension_numbers<[2], [1], [1], [2], [0, 0, 0, 1, 1, 2], [0], [0]>} : vector<2x8x8xbf16>, vector<2x8x128xbf16>, vector<2x8x128xf32> -> vector<2x8x128xf32>
    "tpu.trace_stop"() : () -> ()
    %64 = arith.truncf %63 : vector<2x8x128xf32> to vector<2x8x128xbf16>
    %65 = vector.shape_cast %64 : vector<2x8x128xbf16> to vector<16x128xbf16>
    %c0_36 = arith.constant 0 : index
    %c0_37 = arith.constant 0 : index
    %66 = vector.load %arg7[%c0_36, %c0_37] : memref<128x128xbf16, #tpu.memory_space<vmem>>, vector<128x128xbf16>
    %cst_38 = arith.constant dense<0.000000e+00> : vector<16x128xf32>
    %67 = tpu.matmul %2, %66, %cst_38 {dimension_numbers = #tpu.dot_dimension_numbers<[1], [0], [0], [1], [0, 0, 1, 1], [], []>} : vector<16x128xbf16>, vector<128x128xbf16>, vector<16x128xf32> -> vector<16x128xf32>
    %c0_39 = arith.constant 0 : index
    %c0_40 = arith.constant 0 : index
    %68 = vector.load %arg8[%c0_39, %c0_40] : memref<128x128xbf16, #tpu.memory_space<vmem>>, vector<128x128xbf16>
    %cst_41 = arith.constant dense<0.000000e+00> : vector<16x128xf32>
    %69 = tpu.matmul %62, %68, %cst_41 {dimension_numbers = #tpu.dot_dimension_numbers<[1], [0], [0], [1], [0, 0, 1, 1], [], []>} : vector<16x128xbf16>, vector<128x128xbf16>, vector<16x128xf32> -> vector<16x128xf32>
    %70 = arith.addf %67, %69 : vector<16x128xf32>
    %c0_42 = arith.constant 0 : index
    %c0_43 = arith.constant 0 : index
    %71 = vector.load %arg9[%c0_42, %c0_43] : memref<1x128xf32, #tpu.memory_space<vmem>>, vector<1x128xf32>
    %72 = vector.broadcast %71 : vector<1x128xf32> to vector<16x128xf32>
    %73 = arith.addf %70, %72 : vector<16x128xf32>
    %cst_44 = arith.constant 0.000000e+00 : f32
    %74 = vector.broadcast %cst_44 : f32 to vector<16x128xf32>
    %75 = arith.maximumf %73, %74 : vector<16x128xf32>
    %76 = arith.truncf %75 : vector<16x128xf32> to vector<16x128xbf16>
    %c0_45 = arith.constant 0 : index
    %c0_46 = arith.constant 0 : index
    %77 = vector.load %arg10[%c0_45, %c0_46] : memref<128x128xbf16, #tpu.memory_space<vmem>>, vector<128x128xbf16>
    %cst_47 = arith.constant dense<0.000000e+00> : vector<16x128xf32>
    %78 = tpu.matmul %76, %77, %cst_47 {dimension_numbers = #tpu.dot_dimension_numbers<[1], [0], [0], [1], [0, 0, 1, 1], [], []>} : vector<16x128xbf16>, vector<128x128xbf16>, vector<16x128xf32> -> vector<16x128xf32>
    %c0_48 = arith.constant 0 : index
    %c0_49 = arith.constant 0 : index
    %79 = vector.load %arg11[%c0_48, %c0_49] : memref<1x128xf32, #tpu.memory_space<vmem>>, vector<1x128xf32>
    %80 = vector.broadcast %79 : vector<1x128xf32> to vector<16x128xf32>
    %81 = arith.addf %78, %80 : vector<16x128xf32>
    %cst_50 = arith.constant 0.000000e+00 : f32
    %82 = vector.broadcast %cst_50 : f32 to vector<16x128xf32>
    %83 = arith.maximumf %81, %82 : vector<16x128xf32>
    %84 = vector.shape_cast %83 : vector<16x128xf32> to vector<2x8x128xf32>
    %c0_51 = arith.constant 0 : index
    %c0_52 = arith.constant 0 : index
    %85 = vector.load %arg7[%c0_51, %c0_52] : memref<128x128xbf16, #tpu.memory_space<vmem>>, vector<128x128xbf16>
    %cst_53 = arith.constant dense<0.000000e+00> : vector<16x128xf32>
    %86 = tpu.matmul %3, %85, %cst_53 {dimension_numbers = #tpu.dot_dimension_numbers<[1], [0], [0], [1], [0, 0, 1, 1], [], []>} : vector<16x128xbf16>, vector<128x128xbf16>, vector<16x128xf32> -> vector<16x128xf32>
    %c0_54 = arith.constant 0 : index
    %c0_55 = arith.constant 0 : index
    %87 = vector.load %arg8[%c0_54, %c0_55] : memref<128x128xbf16, #tpu.memory_space<vmem>>, vector<128x128xbf16>
    %cst_56 = arith.constant dense<0.000000e+00> : vector<16x128xf32>
    %88 = tpu.matmul %65, %87, %cst_56 {dimension_numbers = #tpu.dot_dimension_numbers<[1], [0], [0], [1], [0, 0, 1, 1], [], []>} : vector<16x128xbf16>, vector<128x128xbf16>, vector<16x128xf32> -> vector<16x128xf32>
    %89 = arith.addf %86, %88 : vector<16x128xf32>
    %c0_57 = arith.constant 0 : index
    %c0_58 = arith.constant 0 : index
    %90 = vector.load %arg9[%c0_57, %c0_58] : memref<1x128xf32, #tpu.memory_space<vmem>>, vector<1x128xf32>
    %91 = vector.broadcast %90 : vector<1x128xf32> to vector<16x128xf32>
    %92 = arith.addf %89, %91 : vector<16x128xf32>
    %cst_59 = arith.constant 0.000000e+00 : f32
    %93 = vector.broadcast %cst_59 : f32 to vector<16x128xf32>
    %94 = arith.maximumf %92, %93 : vector<16x128xf32>
    %95 = arith.truncf %94 : vector<16x128xf32> to vector<16x128xbf16>
    %c0_60 = arith.constant 0 : index
    %c0_61 = arith.constant 0 : index
    %96 = vector.load %arg10[%c0_60, %c0_61] : memref<128x128xbf16, #tpu.memory_space<vmem>>, vector<128x128xbf16>
    %cst_62 = arith.constant dense<0.000000e+00> : vector<16x128xf32>
    %97 = tpu.matmul %95, %96, %cst_62 {dimension_numbers = #tpu.dot_dimension_numbers<[1], [0], [0], [1], [0, 0, 1, 1], [], []>} : vector<16x128xbf16>, vector<128x128xbf16>, vector<16x128xf32> -> vector<16x128xf32>
    %c0_63 = arith.constant 0 : index
    %c0_64 = arith.constant 0 : index
    %98 = vector.load %arg11[%c0_63, %c0_64] : memref<1x128xf32, #tpu.memory_space<vmem>>, vector<1x128xf32>
    %99 = vector.broadcast %98 : vector<1x128xf32> to vector<16x128xf32>
    %100 = arith.addf %97, %99 : vector<16x128xf32>
    %cst_65 = arith.constant 0.000000e+00 : f32
    %101 = vector.broadcast %cst_65 : f32 to vector<16x128xf32>
    %102 = arith.maximumf %100, %101 : vector<16x128xf32>
    %103 = vector.shape_cast %102 : vector<16x128xf32> to vector<2x8x128xf32>
    %cst_66 = arith.constant dense<0.000000e+00> : vector<2x128xf32>
    %104 = vector.multi_reduction <add>, %84, %cst_66 [1] : vector<2x8x128xf32> to vector<2x128xf32>
    %105 = arith.truncf %104 : vector<2x128xf32> to vector<2x128xbf16>
    %cst_67 = arith.constant dense<0.000000e+00> : vector<2x128xf32>
    %106 = vector.multi_reduction <add>, %103, %cst_67 [1] : vector<2x8x128xf32> to vector<2x128xf32>
    %107 = arith.truncf %106 : vector<2x128xf32> to vector<2x128xbf16>
    %c0_68 = arith.constant 0 : index
    %c0_69 = arith.constant 0 : index
    %108 = vector.load %arg12[%c0_68, %c0_69] : memref<128x128xbf16, #tpu.memory_space<vmem>>, vector<128x128xbf16>
    %cst_70 = arith.constant dense<0.000000e+00> : vector<2x128xf32>
    %109 = tpu.matmul %105, %108, %cst_70 {dimension_numbers = #tpu.dot_dimension_numbers<[1], [0], [0], [1], [0, 0, 1, 1], [], []>} : vector<2x128xbf16>, vector<128x128xbf16>, vector<2x128xf32> -> vector<2x128xf32>
    %c0_71 = arith.constant 0 : index
    %c0_72 = arith.constant 0 : index
    %110 = vector.load %arg13[%c0_71, %c0_72] : memref<128x128xbf16, #tpu.memory_space<vmem>>, vector<128x128xbf16>
    %cst_73 = arith.constant dense<0.000000e+00> : vector<2x128xf32>
    %111 = tpu.matmul %107, %110, %cst_73 {dimension_numbers = #tpu.dot_dimension_numbers<[1], [0], [0], [1], [0, 0, 1, 1], [], []>} : vector<2x128xbf16>, vector<128x128xbf16>, vector<2x128xf32> -> vector<2x128xf32>
    %112 = arith.addf %109, %111 : vector<2x128xf32>
    %c0_74 = arith.constant 0 : index
    %c0_75 = arith.constant 0 : index
    %113 = vector.load %arg14[%c0_74, %c0_75] : memref<1x128xf32, #tpu.memory_space<vmem>>, vector<1x128xf32>
    %114 = vector.broadcast %113 : vector<1x128xf32> to vector<2x128xf32>
    %115 = arith.addf %112, %114 : vector<2x128xf32>
    %cst_76 = arith.constant 0.000000e+00 : f32
    %116 = vector.broadcast %cst_76 : f32 to vector<2x128xf32>
    %117 = arith.maximumf %115, %116 : vector<2x128xf32>
    %118 = arith.truncf %117 : vector<2x128xf32> to vector<2x128xbf16>
    %c0_77 = arith.constant 0 : index
    %c0_78 = arith.constant 0 : index
    %119 = vector.load %arg15[%c0_77, %c0_78] : memref<128x128xbf16, #tpu.memory_space<vmem>>, vector<128x128xbf16>
    %cst_79 = arith.constant dense<0.000000e+00> : vector<2x128xf32>
    %120 = tpu.matmul %118, %119, %cst_79 {dimension_numbers = #tpu.dot_dimension_numbers<[1], [0], [0], [1], [0, 0, 1, 1], [], []>} : vector<2x128xbf16>, vector<128x128xbf16>, vector<2x128xf32> -> vector<2x128xf32>
    %c0_80 = arith.constant 0 : index
    %c0_81 = arith.constant 0 : index
    %121 = vector.load %arg16[%c0_80, %c0_81] : memref<1x128xf32, #tpu.memory_space<vmem>>, vector<1x128xf32>
    %122 = vector.broadcast %121 : vector<1x128xf32> to vector<2x128xf32>
    %123 = arith.addf %120, %122 : vector<2x128xf32>
    %cst_82 = arith.constant 0.000000e+00 : f32
    %124 = vector.broadcast %cst_82 : f32 to vector<2x128xf32>
    %125 = arith.maximumf %123, %124 : vector<2x128xf32>
    %126 = arith.truncf %125 : vector<2x128xf32> to vector<2x128xbf16>
    %c0_83 = arith.constant 0 : index
    %c0_84 = arith.constant 0 : index
    %127 = vector.load %arg17[%c0_83, %c0_84] : memref<128x4xbf16, #tpu.memory_space<vmem>>, vector<128x4xbf16>
    %cst_85 = arith.constant dense<0.000000e+00> : vector<2x4xf32>
    %128 = tpu.matmul %126, %127, %cst_85 {dimension_numbers = #tpu.dot_dimension_numbers<[1], [0], [0], [1], [0, 0, 1, 1], [], []>} : vector<2x128xbf16>, vector<128x4xbf16>, vector<2x4xf32> -> vector<2x4xf32>
    %c0_86 = arith.constant 0 : index
    %c0_87 = arith.constant 0 : index
    %129 = vector.load %arg18[%c0_86, %c0_87] : memref<1x4xf32, #tpu.memory_space<vmem>>, vector<1x4xf32>
    %130 = vector.broadcast %129 : vector<1x4xf32> to vector<2x4xf32>
    %131 = arith.addf %128, %130 : vector<2x4xf32>
    %132 = tpu.iota {dimensions = array<i32: 1>} : vector<2x4xi32>
    %c2_i32 = arith.constant 2 : i32
    %133 = vector.broadcast %c2_i32 : i32 to vector<2x4xi32>
    %134 = arith.cmpi slt, %132, %133 : vector<2x4xi32>
    %cst_88 = arith.constant 0xFF800000 : f32
    %135 = vector.broadcast %cst_88 : f32 to vector<2x4xf32>
    %136 = arith.select %134, %131, %135 : vector<2x4xi1>, vector<2x4xf32>
    %cst_89 = arith.constant dense<0xFF800000> : vector<2xf32>
    %137 = vector.multi_reduction <maximumf>, %136, %cst_89 [1] : vector<2x4xf32> to vector<2xf32>
    %138 = vector.shape_cast %137 : vector<2xf32> to vector<2x1xf32>
    %cst_90 = arith.constant 0xFF800000 : f32
    %139 = vector.broadcast %cst_90 : f32 to vector<2x4xf32>
    %140 = arith.select %134, %139, %131 : vector<2x4xi1>, vector<2x4xf32>
    %cst_91 = arith.constant dense<0xFF800000> : vector<2xf32>
    %141 = vector.multi_reduction <maximumf>, %140, %cst_91 [1] : vector<2x4xf32> to vector<2xf32>
    %142 = vector.shape_cast %141 : vector<2xf32> to vector<2x1xf32>
    %143 = vector.shape_cast %138 : vector<2x1xf32> to vector<2x1xf32>
    %144 = vector.broadcast %143 : vector<2x1xf32> to vector<2x4xf32>
    %145 = vector.shape_cast %142 : vector<2x1xf32> to vector<2x1xf32>
    %146 = vector.broadcast %145 : vector<2x1xf32> to vector<2x4xf32>
    %147 = arith.select %134, %144, %146 : vector<2x4xi1>, vector<2x4xf32>
    %148 = arith.subf %131, %147 : vector<2x4xf32>
    %149 = math.exp %148 : vector<2x4xf32>
    %cst_92 = arith.constant 0.000000e+00 : f32
    %150 = vector.broadcast %cst_92 : f32 to vector<2x4xf32>
    %151 = arith.select %134, %149, %150 : vector<2x4xi1>, vector<2x4xf32>
    %cst_93 = arith.constant dense<0.000000e+00> : vector<2xf32>
    %152 = vector.multi_reduction <add>, %151, %cst_93 [1] : vector<2x4xf32> to vector<2xf32>
    %153 = vector.shape_cast %152 : vector<2xf32> to vector<2x1xf32>
    %cst_94 = arith.constant 0.000000e+00 : f32
    %154 = vector.broadcast %cst_94 : f32 to vector<2x4xf32>
    %155 = arith.select %134, %154, %149 : vector<2x4xi1>, vector<2x4xf32>
    %cst_95 = arith.constant dense<0.000000e+00> : vector<2xf32>
    %156 = vector.multi_reduction <add>, %155, %cst_95 [1] : vector<2x4xf32> to vector<2xf32>
    %157 = vector.shape_cast %156 : vector<2xf32> to vector<2x1xf32>
    %158 = vector.shape_cast %153 : vector<2x1xf32> to vector<2x1xf32>
    %159 = vector.broadcast %158 : vector<2x1xf32> to vector<2x4xf32>
    %160 = vector.shape_cast %157 : vector<2x1xf32> to vector<2x1xf32>
    %161 = vector.broadcast %160 : vector<2x1xf32> to vector<2x4xf32>
    %162 = arith.select %134, %159, %161 : vector<2x4xi1>, vector<2x4xf32>
    %163 = math.log %162 : vector<2x4xf32>
    %164 = arith.subf %148, %163 : vector<2x4xf32>
    %c0_96 = arith.constant 0 : index
    %c0_97 = arith.constant 0 : index
    %165 = vector.load %arg19[%c0_96, %c0_97] : memref<2x4xf32, #tpu.memory_space<vmem>>, vector<2x4xf32>
    tpu.vector_store %arg19[%c0_96, %c0_97], %164 {strides = array<i32>} : memref<2x4xf32, #tpu.memory_space<vmem>>, vector<2x4xf32>,
    return
  }
  func.func @transform_0(%arg0: i32) -> (i32, i32, i32) {
    %c0_i32 = arith.constant 0 : i32
    %c0_i32_0 = arith.constant 0 : i32
    %c0_i32_1 = arith.constant 0 : i32
    return %arg0, %c0_i32, %c0_i32_0 : i32, i32, i32
  }
  func.func @transform_1(%arg0: i32) -> (i32, i32, i32) {
    %c0_i32 = arith.constant 0 : i32
    %c0_i32_0 = arith.constant 0 : i32
    %c0_i32_1 = arith.constant 0 : i32
    return %arg0, %c0_i32, %c0_i32_0 : i32, i32, i32
  }
  func.func @transform_2(%arg0: i32) -> (i32, i32) {
    %c0_i32 = arith.constant 0 : i32
    %c0_i32_0 = arith.constant 0 : i32
    %c0_i32_1 = arith.constant 0 : i32
    return %c0_i32, %c0_i32_0 : i32, i32
  }
  func.func @transform_3(%arg0: i32) -> (i32, i32) {
    %c0_i32 = arith.constant 0 : i32
    %c0_i32_0 = arith.constant 0 : i32
    %c0_i32_1 = arith.constant 0 : i32
    return %c0_i32, %c0_i32_0 : i32, i32
  }
  func.func @transform_4(%arg0: i32) -> (i32, i32) {
    %c0_i32 = arith.constant 0 : i32
    %c0_i32_0 = arith.constant 0 : i32
    %c0_i32_1 = arith.constant 0 : i32
    return %c0_i32, %c0_i32_0 : i32, i32
  }
  func.func @transform_5(%arg0: i32) -> (i32, i32) {
    %c0_i32 = arith.constant 0 : i32
    %c0_i32_0 = arith.constant 0 : i32
    %c0_i32_1 = arith.constant 0 : i32
    return %c0_i32, %c0_i32_0 : i32, i32
  }
  func.func @transform_6(%arg0: i32) -> (i32, i32) {
    %c0_i32 = arith.constant 0 : i32
    %c0_i32_0 = arith.constant 0 : i32
    %c0_i32_1 = arith.constant 0 : i32
    return %c0_i32, %c0_i32_0 : i32, i32
  }
  func.func @transform_7(%arg0: i32) -> (i32, i32) {
    %c0_i32 = arith.constant 0 : i32
    %c0_i32_0 = arith.constant 0 : i32
    %c0_i32_1 = arith.constant 0 : i32
    return %c0_i32, %c0_i32_0 : i32, i32
  }
  func.func @transform_8(%arg0: i32) -> (i32, i32) {
    %c0_i32 = arith.constant 0 : i32
    %c0_i32_0 = arith.constant 0 : i32
    %c0_i32_1 = arith.constant 0 : i32
    return %c0_i32, %c0_i32_0 : i32, i32
  }
  func.func @transform_9(%arg0: i32) -> (i32, i32) {
    %c0_i32 = arith.constant 0 : i32
    %c0_i32_0 = arith.constant 0 : i32
    %c0_i32_1 = arith.constant 0 : i32
    return %c0_i32, %c0_i32_0 : i32, i32
  }
  func.func @transform_10(%arg0: i32) -> (i32, i32) {
    %c0_i32 = arith.constant 0 : i32
    %c0_i32_0 = arith.constant 0 : i32
    %c0_i32_1 = arith.constant 0 : i32
    return %c0_i32, %c0_i32_0 : i32, i32
  }
  func.func @transform_11(%arg0: i32) -> (i32, i32) {
    %c0_i32 = arith.constant 0 : i32
    %c0_i32_0 = arith.constant 0 : i32
    %c0_i32_1 = arith.constant 0 : i32
    return %c0_i32, %c0_i32_0 : i32, i32
  }
  func.func @transform_12(%arg0: i32) -> (i32, i32) {
    %c0_i32 = arith.constant 0 : i32
    %c0_i32_0 = arith.constant 0 : i32
    %c0_i32_1 = arith.constant 0 : i32
    return %c0_i32, %c0_i32_0 : i32, i32
  }
  func.func @transform_13(%arg0: i32) -> (i32, i32) {
    %c0_i32 = arith.constant 0 : i32
    %c0_i32_0 = arith.constant 0 : i32
    %c0_i32_1 = arith.constant 0 : i32
    return %c0_i32, %c0_i32_0 : i32, i32
  }
  func.func @transform_14(%arg0: i32) -> (i32, i32) {
    %c0_i32 = arith.constant 0 : i32
    %c0_i32_0 = arith.constant 0 : i32
    %c0_i32_1 = arith.constant 0 : i32
    return %c0_i32, %c0_i32_0 : i32, i32
  }
  func.func @transform_15(%arg0: i32) -> (i32, i32) {
    %c0_i32 = arith.constant 0 : i32
    %c0_i32_0 = arith.constant 0 : i32
    %c0_i32_1 = arith.constant 0 : i32
    return %c0_i32, %c0_i32_0 : i32, i32
  }
  func.func @transform_16(%arg0: i32) -> (i32, i32) {
    %c0_i32 = arith.constant 0 : i32
    %c0_i32_0 = arith.constant 0 : i32
    %c0_i32_1 = arith.constant 0 : i32
    return %c0_i32, %c0_i32_0 : i32, i32
  }
  func.func @transform_17(%arg0: i32) -> (i32, i32) {
    %c0_i32 = arith.constant 0 : i32
    %c0_i32_0 = arith.constant 0 : i32
    %c0_i32_1 = arith.constant 0 : i32
    return %c0_i32, %c0_i32_0 : i32, i32
  }
  func.func @transform_18(%arg0: i32) -> (i32, i32) {
    %c0_i32 = arith.constant 0 : i32
    %c0_i32_0 = arith.constant 0 : i32
    return %arg0, %c0_i32 : i32, i32
  }
}

</mosaic_0001>

<llo_original>
// kernel: binary_label_atten_forward.1
$region0: #{binary_label_atten_forward.1}
  #allocation0 [shape = 'u32[]', space=smem, size = 0x4, offset = 0x4, fixed_abs, tag = 'smem constant byte address 0x4 - core index']
  #allocation1 [shape = 'u32[144,128]{1,0:T(1,128)}', space=vmem, size = 0x12000, scoped, tag = 'internal scratch']
  %s0 = inlined_call_operand.vmem [shape: bf16[2,8,128], index: 0, kind: input, shape index: {}]
  %s1 = inlined_call_operand.vmem [shape: bf16[2,8,128], index: 1, kind: input, shape index: {}]
  %s2 = inlined_call_operand.vmem [shape: bf16[128,128], index: 2, kind: input, shape index: {}]
  %s3 = inlined_call_operand.vmem [shape: f32[1,128], index: 3, kind: input, shape index: {}]
  %s4 = inlined_call_operand.vmem [shape: bf16[128,128], index: 4, kind: input, shape index: {}]
  %s5 = inlined_call_operand.hbm [shape: f32[1,128], index: 5, kind: input, shape index: {}]
  %s6 = inlined_call_operand.vmem [shape: bf16[128,128], index: 6, kind: input, shape index: {}]
  %s7 = inlined_call_operand.hbm [shape: bf16[128,128], index: 7, kind: input, shape index: {}]
  %s8 = inlined_call_operand.hbm [shape: f32[1,128], index: 8, kind: input, shape index: {}]
  %s9 = inlined_call_operand.hbm [shape: bf16[128,128], index: 9, kind: input, shape index: {}]
  %s10 = inlined_call_operand.hbm [shape: f32[1,128], index: 10, kind: input, shape index: {}]
  %s11 = inlined_call_operand.hbm [shape: bf16[128,128], index: 11, kind: input, shape index: {}]
  %s12 = inlined_call_operand.hbm [shape: bf16[128,128], index: 12, kind: input, shape index: {}]
  %s13 = inlined_call_operand.hbm [shape: f32[1,128], index: 13, kind: input, shape index: {}]
  %s14 = inlined_call_operand.hbm [shape: bf16[128,128], index: 14, kind: input, shape index: {}]
  %s15 = inlined_call_operand.hbm [shape: f32[1,128], index: 15, kind: input, shape index: {}]
  %s16 = inlined_call_operand.vmem [shape: bf16[128,4], index: 16, kind: input, shape index: {}]
  %s17 = inlined_call_operand.hbm [shape: f32[1,4], index: 17, kind: input, shape index: {}]
  %s18 = inlined_call_operand.vmem [shape: f32[2,4], index: 18, kind: output, shape index: {}]
  %s19 = sld [smem:[#allocation0]]
  $region126: #{binary_label_atten_forward.1} parent=0
    _
  %s21 = ssub.s32 1, %s19
  %s22 = scalar_select 0, %s21, %s19
  $region1: #{binary_label_atten_forward.1} parent=0
    #allocation2 [shape = 'u8[512]{0}', space=vmem, size = 0x400, scoped, tag = 'input window, operand 5, single buffered']
    #allocation3 [shape = 's32[1]{0}', space=sflag, size = 0x4, scoped, tag = 'scoped memory for binary_label_atten_forward.1']
    #allocation4 [shape = 'u8[32768]{0}', space=vmem, size = 0x8000, scoped, tag = 'input window, operand 7, single buffered']
    #allocation5 [shape = 's32[1]{0}', space=sflag, size = 0x4, scoped, tag = 'scoped memory for binary_label_atten_forward.1']
    #allocation6 [shape = 'u8[512]{0}', space=vmem, size = 0x400, scoped, tag = 'input window, operand 8, single buffered']
    #allocation7 [shape = 'u8[32768]{0}', space=vmem, size = 0x8000, scoped, tag = 'input window, operand 9, single buffered']
    #allocation8 [shape = 's32[1]{0}', space=sflag, size = 0x4, scoped, tag = 'scoped memory for binary_label_atten_forward.1']
    #allocation9 [shape = 'u8[512]{0}', space=vmem, size = 0x400, scoped, tag = 'input window, operand 10, single buffered']
    #allocation10 [shape = 'u8[32768]{0}', space=vmem, size = 0x8000, scoped, tag = 'input window, operand 11, single buffered']
    #allocation11 [shape = 's32[1]{0}', space=sflag, size = 0x4, scoped, tag = 'scoped memory for binary_label_atten_forward.1']
    #allocation12 [shape = 'u8[32768]{0}', space=vmem, size = 0x8000, scoped, tag = 'input window, operand 12, single buffered']
    #allocation13 [shape = 'u8[512]{0}', space=vmem, size = 0x400, scoped, tag = 'input window, operand 13, single buffered']
    #allocation14 [shape = 's32[1]{0}', space=sflag, size = 0x4, scoped, tag = 'scoped memory for binary_label_atten_forward.1']
    #allocation15 [shape = 'u8[32768]{0}', space=vmem, size = 0x8000, scoped, tag = 'input window, operand 14, single buffered']
    #allocation16 [shape = 'u8[512]{0}', space=vmem, size = 0x400, scoped, tag = 'input window, operand 15, single buffered']
    #allocation17 [shape = 's32[1]{0}', space=sflag, size = 0x4, scoped, tag = 'scoped memory for binary_label_atten_forward.1']
    #allocation18 [shape = 'u8[512]{0}', space=vmem, size = 0x400, scoped, tag = 'input window, operand 17, single buffered']
    %23 = vsyncpa [#allocation3], 0
    %24 = vsyncpa [#allocation5], 0
    %25 = vsyncpa [#allocation8], 0
    %26 = vsyncpa [#allocation11], 0
    %27 = vsyncpa [#allocation14], 0
    %28 = vsyncpa [#allocation17], 0
    // Predicated region
    $region2: #{binary_label_atten_forward.1} parent=1 // pred_check
      _
    $region3: #{binary_label_atten_forward.1} parent=1 // pred_check_branch
      %30 = sbr.rel (0) target = $region5
    $region4: #{binary_label_atten_forward.1} parent=1 // pred_region
      _
    $region5: #{binary_label_atten_forward.1} parent=1 // pred_fallthru
      _
    // Predicated region
    $region6: #{binary_label_atten_forward.1} parent=1 // pred_check
      _
    $region7: #{binary_label_atten_forward.1} parent=1 // pred_check_branch
      %32 = sbr.rel (0) target = $region9
    $region8: #{binary_label_atten_forward.1} parent=1 // pred_region
      _
    $region9: #{binary_label_atten_forward.1} parent=1 // pred_fallthru
      _
    // Predicated region
    $region10: #{binary_label_atten_forward.1} parent=1 // pred_check
      _
    $region11: #{binary_label_atten_forward.1} parent=1 // pred_check_branch
      %34 = sbr.rel (0) target = $region13
    $region12: #{binary_label_atten_forward.1} parent=1 // pred_region
      _
    $region13: #{binary_label_atten_forward.1} parent=1 // pred_fallthru
      _
    // Predicated region
    $region14: #{binary_label_atten_forward.1} parent=1 // pred_check
      _
    $region15: #{binary_label_atten_forward.1} parent=1 // pred_check_branch
      %36 = sbr.rel (0) target = $region17
    $region16: #{binary_label_atten_forward.1} parent=1 // pred_region
      _
    $region17: #{binary_label_atten_forward.1} parent=1 // pred_fallthru
      _
    // Predicated region
    $region18: #{binary_label_atten_forward.1} parent=1 // pred_check
      _
    $region19: #{binary_label_atten_forward.1} parent=1 // pred_check_branch
      %38 = sbr.rel (0) target = $region21
    $region20: #{binary_label_atten_forward.1} parent=1 // pred_region
      _
    $region21: #{binary_label_atten_forward.1} parent=1 // pred_fallthru
      _
    // Predicated region
    $region22: #{binary_label_atten_forward.1} parent=1 // pred_check
      _
    $region23: #{binary_label_atten_forward.1} parent=1 // pred_check_branch
      %40 = sbr.rel (0) target = $region25
    $region24: #{binary_label_atten_forward.1} parent=1 // pred_region
      %s42 = ssub.s32 16, 16
      %43 = vsyncadd [#allocation3], %s42
      %s45 = sshll.u32 [#allocation2], 4
      %s46 = int_to_ptr.vmem [resolvable:$true] %s45
      %48 = dma.hbm_to_vmem [thread:$0]  %s5, 16, %s46, [#allocation3]
    $region25: #{binary_label_atten_forward.1} parent=1 // pred_fallthru
      _
    // Predicated region
    $region26: #{binary_label_atten_forward.1} parent=1 // pred_check
      _
    $region27: #{binary_label_atten_forward.1} parent=1 // pred_check_branch
      %50 = sbr.rel (0) target = $region29
    $region28: #{binary_label_atten_forward.1} parent=1 // pred_region
      _
    $region29: #{binary_label_atten_forward.1} parent=1 // pred_fallthru
      _
    // Predicated region
    $region30: #{binary_label_atten_forward.1} parent=1 // pred_check
      _
    $region31: #{binary_label_atten_forward.1} parent=1 // pred_check_branch
      %52 = sbr.rel (0) target = $region33
    $region32: #{binary_label_atten_forward.1} parent=1 // pred_region
      %s54 = ssub.s32 1024, 1024
      %55 = vsyncadd [#allocation5], %s54
      %s56 = sshll.u32 [#allocation4], 4
      %s57 = int_to_ptr.vmem [resolvable:$true] %s56
      %62 = dma.hbm_to_vmem [thread:$0]  %s7, 1024, %s57, [#allocation5], 64, 64, 4
    $region33: #{binary_label_atten_forward.1} parent=1 // pred_fallthru
      _
    // Predicated region
    $region34: #{binary_label_atten_forward.1} parent=1 // pred_check
      _
    $region35: #{binary_label_atten_forward.1} parent=1 // pred_check_branch
      %64 = sbr.rel (0) target = $region37
    $region36: #{binary_label_atten_forward.1} parent=1 // pred_region
      %s66 = ssub.s32 16, 16
      %67 = vsyncadd [#allocation5], %s66
      %s69 = sshll.u32 [#allocation6], 4
      %s70 = int_to_ptr.vmem [resolvable:$true] %s69
      %72 = dma.hbm_to_vmem [thread:$0]  %s8, 16, %s70, [#allocation5]
    $region37: #{binary_label_atten_forward.1} parent=1 // pred_fallthru
      _
    // Predicated region
    $region38: #{binary_label_atten_forward.1} parent=1 // pred_check
      _
    $region39: #{binary_label_atten_forward.1} parent=1 // pred_check_branch
      %74 = sbr.rel (0) target = $region41
    $region40: #{binary_label_atten_forward.1} parent=1 // pred_region
      %s76 = ssub.s32 1024, 1024
      %77 = vsyncadd [#allocation8], %s76
      %s78 = sshll.u32 [#allocation7], 4
      %s79 = int_to_ptr.vmem [resolvable:$true] %s78
      %84 = dma.hbm_to_vmem [thread:$0]  %s9, 1024, %s79, [#allocation8], 64, 64, 4
    $region41: #{binary_label_atten_forward.1} parent=1 // pred_fallthru
      _
    // Predicated region
    $region42: #{binary_label_atten_forward.1} parent=1 // pred_check
      _
    $region43: #{binary_label_atten_forward.1} parent=1 // pred_check_branch
      %86 = sbr.rel (0) target = $region45
    $region44: #{binary_label_atten_forward.1} parent=1 // pred_region
      %s88 = ssub.s32 16, 16
      %89 = vsyncadd [#allocation8], %s88
      %s91 = sshll.u32 [#allocation9], 4
      %s92 = int_to_ptr.vmem [resolvable:$true] %s91
      %94 = dma.hbm_to_vmem [thread:$0]  %s10, 16, %s92, [#allocation8]
    $region45: #{binary_label_atten_forward.1} parent=1 // pred_fallthru
      _
    // Predicated region
    $region46: #{binary_label_atten_forward.1} parent=1 // pred_check
      _
    $region47: #{binary_label_atten_forward.1} parent=1 // pred_check_branch
      %96 = sbr.rel (0) target = $region49
    $region48: #{binary_label_atten_forward.1} parent=1 // pred_region
      %s98 = ssub.s32 1024, 1024
      %99 = vsyncadd [#allocation11], %s98
      %s100 = sshll.u32 [#allocation10], 4
      %s101 = int_to_ptr.vmem [resolvable:$true] %s100
      %106 = dma.hbm_to_vmem [thread:$0]  %s11, 1024, %s101, [#allocation11], 64, 64, 4
    $region49: #{binary_label_atten_forward.1} parent=1 // pred_fallthru
      _
    // Predicated region
    $region50: #{binary_label_atten_forward.1} parent=1 // pred_check
      _
    $region51: #{binary_label_atten_forward.1} parent=1 // pred_check_branch
      %108 = sbr.rel (0) target = $region53
    $region52: #{binary_label_atten_forward.1} parent=1 // pred_region
      %s110 = ssub.s32 1024, 1024
      %111 = vsyncadd [#allocation11], %s110
      %s112 = sshll.u32 [#allocation12], 4
      %s113 = int_to_ptr.vmem [resolvable:$true] %s112
      %118 = dma.hbm_to_vmem [thread:$0]  %s12, 1024, %s113, [#allocation11], 64, 64, 4
    $region53: #{binary_label_atten_forward.1} parent=1 // pred_fallthru
      _
    // Predicated region
    $region54: #{binary_label_atten_forward.1} parent=1 // pred_check
      _
    $region55: #{binary_label_atten_forward.1} parent=1 // pred_check_branch
      %120 = sbr.rel (0) target = $region57
    $region56: #{binary_label_atten_forward.1} parent=1 // pred_region
      %s122 = ssub.s32 16, 16
      %123 = vsyncadd [#allocation14], %s122
      %s125 = sshll.u32 [#allocation13], 4
      %s126 = int_to_ptr.vmem [resolvable:$true] %s125
      %128 = dma.hbm_to_vmem [thread:$0]  %s13, 16, %s126, [#allocation14]
    $region57: #{binary_label_atten_forward.1} parent=1 // pred_fallthru
      _
    // Predicated region
    $region58: #{binary_label_atten_forward.1} parent=1 // pred_check
      _
    $region59: #{binary_label_atten_forward.1} parent=1 // pred_check_branch
      %130 = sbr.rel (0) target = $region61
    $region60: #{binary_label_atten_forward.1} parent=1 // pred_region
      %s132 = ssub.s32 1024, 1024
      %133 = vsyncadd [#allocation14], %s132
      %s134 = sshll.u32 [#allocation15], 4
      %s135 = int_to_ptr.vmem [resolvable:$true] %s134
      %140 = dma.hbm_to_vmem [thread:$0]  %s14, 1024, %s135, [#allocation14], 64, 64, 4
    $region61: #{binary_label_atten_forward.1} parent=1 // pred_fallthru
      _
    // Predicated region
    $region62: #{binary_label_atten_forward.1} parent=1 // pred_check
      _
    $region63: #{binary_label_atten_forward.1} parent=1 // pred_check_branch
      %142 = sbr.rel (0) target = $region65
    $region64: #{binary_label_atten_forward.1} parent=1 // pred_region
      %s144 = ssub.s32 16, 16
      %145 = vsyncadd [#allocation17], %s144
      %s147 = sshll.u32 [#allocation16], 4
      %s148 = int_to_ptr.vmem [resolvable:$true] %s147
      %150 = dma.hbm_to_vmem [thread:$0]  %s15, 16, %s148, [#allocation17]
    $region65: #{binary_label_atten_forward.1} parent=1 // pred_fallthru
      _
    // Predicated region
    $region66: #{binary_label_atten_forward.1} parent=1 // pred_check
      _
    $region67: #{binary_label_atten_forward.1} parent=1 // pred_check_branch
      %152 = sbr.rel (0) target = $region69
    $region68: #{binary_label_atten_forward.1} parent=1 // pred_region
      _
    $region69: #{binary_label_atten_forward.1} parent=1 // pred_fallthru
      _
    // Predicated region
    $region70: #{binary_label_atten_forward.1} parent=1 // pred_check
      _
    $region71: #{binary_label_atten_forward.1} parent=1 // pred_check_branch
      %154 = sbr.rel (0) target = $region73
    $region72: #{binary_label_atten_forward.1} parent=1 // pred_region
      %s156 = ssub.s32 16, 16
      %157 = vsyncadd [#allocation17], %s156
      %s159 = sshll.u32 [#allocation18], 4
      %s160 = int_to_ptr.vmem [resolvable:$true] %s159
      %162 = dma.hbm_to_vmem [thread:$0]  %s17, 16, %s160, [#allocation17]
    $region73: #{binary_label_atten_forward.1} parent=1 // pred_fallthru
      _
    // Predicated region
    $region74: #{binary_label_atten_forward.1} parent=1 // pred_check
      _
    $region75: #{binary_label_atten_forward.1} parent=1 // pred_check_branch
      %164 = sbr.rel (0) target = $region77
    $region76: #{binary_label_atten_forward.1} parent=1 // pred_region
      %165 = dma.done [#allocation3], 16
    $region77: #{binary_label_atten_forward.1} parent=1 // pred_fallthru
      _
    // Predicated region
    $region78: #{binary_label_atten_forward.1} parent=1 // pred_check
      _
    $region79: #{binary_label_atten_forward.1} parent=1 // pred_check_branch
      %167 = sbr.rel (0) target = $region81
    $region80: #{binary_label_atten_forward.1} parent=1 // pred_region
      %168 = dma.done [#allocation5], 1024
    $region81: #{binary_label_atten_forward.1} parent=1 // pred_fallthru
      _
    // Predicated region
    $region82: #{binary_label_atten_forward.1} parent=1 // pred_check
      _
    $region83: #{binary_label_atten_forward.1} parent=1 // pred_check_branch
      %170 = sbr.rel (0) target = $region85
    $region84: #{binary_label_atten_forward.1} parent=1 // pred_region
      %171 = dma.done [#allocation5], 16
    $region85: #{binary_label_atten_forward.1} parent=1 // pred_fallthru
      _
    // Predicated region
    $region86: #{binary_label_atten_forward.1} parent=1 // pred_check
      _
    $region87: #{binary_label_atten_forward.1} parent=1 // pred_check_branch
      %173 = sbr.rel (0) target = $region89
    $region88: #{binary_label_atten_forward.1} parent=1 // pred_region
      %174 = dma.done [#allocation8], 1024
    $region89: #{binary_label_atten_forward.1} parent=1 // pred_fallthru
      _
    // Predicated region
    $region90: #{binary_label_atten_forward.1} parent=1 // pred_check
      _
    $region91: #{binary_label_atten_forward.1} parent=1 // pred_check_branch
      %176 = sbr.rel (0) target = $region93
    $region92: #{binary_label_atten_forward.1} parent=1 // pred_region
      %177 = dma.done [#allocation8], 16
    $region93: #{binary_label_atten_forward.1} parent=1 // pred_fallthru
      _
    // Predicated region
    $region94: #{binary_label_atten_forward.1} parent=1 // pred_check
      _
    $region95: #{binary_label_atten_forward.1} parent=1 // pred_check_branch
      %179 = sbr.rel (0) target = $region97
    $region96: #{binary_label_atten_forward.1} parent=1 // pred_region
      %180 = dma.done [#allocation11], 1024
    $region97: #{binary_label_atten_forward.1} parent=1 // pred_fallthru
      _
    // Predicated region
    $region98: #{binary_label_atten_forward.1} parent=1 // pred_check
      _
    $region99: #{binary_label_atten_forward.1} parent=1 // pred_check_branch
      %182 = sbr.rel (0) target = $region101
    $region100: #{binary_label_atten_forward.1} parent=1 // pred_region
      %183 = dma.done [#allocation11], 1024
    $region101: #{binary_label_atten_forward.1} parent=1 // pred_fallthru
      _
    // Predicated region
    $region102: #{binary_label_atten_forward.1} parent=1 // pred_check
      _
    $region103: #{binary_label_atten_forward.1} parent=1 // pred_check_branch
      %185 = sbr.rel (0) target = $region105
    $region104: #{binary_label_atten_forward.1} parent=1 // pred_region
      %186 = dma.done [#allocation14], 16
    $region105: #{binary_label_atten_forward.1} parent=1 // pred_fallthru
      _
    // Predicated region
    $region106: #{binary_label_atten_forward.1} parent=1 // pred_check
      _
    $region107: #{binary_label_atten_forward.1} parent=1 // pred_check_branch
      %188 = sbr.rel (0) target = $region109
    $region108: #{binary_label_atten_forward.1} parent=1 // pred_region
      %189 = dma.done [#allocation14], 1024
    $region109: #{binary_label_atten_forward.1} parent=1 // pred_fallthru
      _
    // Predicated region
    $region110: #{binary_label_atten_forward.1} parent=1 // pred_check
      _
    $region111: #{binary_label_atten_forward.1} parent=1 // pred_check_branch
      %191 = sbr.rel (0) target = $region113
    $region112: #{binary_label_atten_forward.1} parent=1 // pred_region
      %192 = dma.done [#allocation17], 16
    $region113: #{binary_label_atten_forward.1} parent=1 // pred_fallthru
      _
    // Predicated region
    $region114: #{binary_label_atten_forward.1} parent=1 // pred_check
      _
    $region115: #{binary_label_atten_forward.1} parent=1 // pred_check_branch
      %194 = sbr.rel (0) target = $region117
    $region116: #{binary_label_atten_forward.1} parent=1 // pred_region
      %195 = dma.done [#allocation17], 16
    $region117: #{binary_label_atten_forward.1} parent=1 // pred_fallthru
      _
    %v197 = vld [vmem:[%s0] sm:$0xf]
    %v198 = vld [vmem:[%s0 + $0x4] sm:$0xf]
    %v199 = vld [vmem:[%s1] sm:$0xf]
    %v200 = vld [vmem:[%s1 + $0x4] sm:$0xf]
    %v201 = vld [vmem:[%s2] sm:$0xf]
    %v202 = vld [vmem:[%s2 + $0x4] sm:$0xf]
    %v203 = vld [vmem:[%s2 + $0x8] sm:$0xf]
    %v204 = vld [vmem:[%s2 + $0xc] sm:$0xf]
    %v205 = vld [vmem:[%s2 + $0x10] sm:$0xf]
    %v206 = vld [vmem:[%s2 + $0x14] sm:$0xf]
    %v207 = vld [vmem:[%s2 + $0x18] sm:$0xf]
    %v208 = vld [vmem:[%s2 + $0x1c] sm:$0xf]
    %v209 = vld [vmem:[%s2 + $0x20] sm:$0xf]
    %v210 = vld [vmem:[%s2 + $0x24] sm:$0xf]
    %v211 = vld [vmem:[%s2 + $0x28] sm:$0xf]
    %v212 = vld [vmem:[%s2 + $0x2c] sm:$0xf]
    %v213 = vld [vmem:[%s2 + $0x30] sm:$0xf]
    %v214 = vld [vmem:[%s2 + $0x34] sm:$0xf]
    %v215 = vld [vmem:[%s2 + $0x38] sm:$0xf]
    %v216 = vld [vmem:[%s2 + $0x3c] sm:$0xf]
    %v217 = vld [vmem:[%s3] sm:$0x1]
    %v219 = vlaneseq
    %v220 = vshrl.u32 %v219, 7
    %v221 = vsub.s32 0, %v220
    %v222 = vrot.slane %v217, %v221
    %v226 = vunpack.c.l.b16 %v197
    %v227 = vunpack.c.l.b16 %v198
    %v228 = vpack.c.b16 %v227, %v226
    %v246 = vunpack.c.l.b16 %v201
    %v247 = vunpack.c.l.b16 %v202
    %v248 = vunpack.c.l.b16 %v203
    %v249 = vunpack.c.l.b16 %v204
    %v250 = vunpack.c.l.b16 %v205
    %v251 = vunpack.c.l.b16 %v206
    %v252 = vunpack.c.l.b16 %v207
    %v253 = vunpack.c.l.b16 %v208
    %v254 = vunpack.c.l.b16 %v209
    %v255 = vunpack.c.l.b16 %v210
    %v256 = vunpack.c.l.b16 %v211
    %v257 = vunpack.c.l.b16 %v212
    %v258 = vunpack.c.l.b16 %v213
    %v259 = vunpack.c.l.b16 %v214
    %v260 = vunpack.c.l.b16 %v215
    %v261 = vunpack.c.l.b16 %v216
    %v262 = vpack.c.b16 %v247, %v246
    %v263 = vpack.c.b16 %v249, %v248
    %v264 = vpack.c.b16 %v251, %v250
    %v265 = vpack.c.b16 %v253, %v252
    %v266 = vpack.c.b16 %v255, %v254
    %v267 = vpack.c.b16 %v257, %v256
    %v268 = vpack.c.b16 %v259, %v258
    %v269 = vpack.c.b16 %v261, %v260
    %278 = vmatprep.subr.bf16.mxu0 0
    %279 = vmatpush1.bf16.msra.mxu0 %v262
    %280 = vmatprep.subr.bf16.mxu0 0
    %281 = vmatpush1.bf16.msra.mxu0 %v263
    %282 = vmatprep.subr.bf16.mxu0 0
    %283 = vmatpush1.bf16.msra.mxu0 %v264
    %284 = vmatprep.subr.bf16.mxu0 0
    %285 = vmatpush1.bf16.msra.mxu0 %v265
    %286 = vmatprep.subr.bf16.mxu0 0
    %287 = vmatpush1.bf16.msra.mxu0 %v266
    %288 = vmatprep.subr.bf16.mxu0 0
    %289 = vmatpush1.bf16.msra.mxu0 %v267
    %290 = vmatprep.subr.bf16.mxu0 0
    %291 = vmatpush1.bf16.msra.mxu0 %v268
    %292 = vmatprep.subr.bf16.mxu0 0
    %293 = vmatpush1.bf16.msra.mxu0 %v269
    %294 = vmatprep.subr.bf16.mxu0 0
    %295 = vmatpush1.bf16.msra.mxu0 0
    %296 = vmatprep.subr.bf16.mxu0 0
    %297 = vmatpush1.bf16.msra.mxu0 0
    %298 = vmatprep.subr.bf16.mxu0 0
    %299 = vmatpush1.bf16.msra.mxu0 0
    %300 = vmatprep.subr.bf16.mxu0 0
    %301 = vmatpush1.bf16.msra.mxu0 0
    %302 = vmatprep.subr.bf16.mxu0 0
    %303 = vmatpush1.bf16.msra.mxu0 0
    %304 = vmatprep.subr.bf16.mxu0 0
    %305 = vmatpush1.bf16.msra.mxu0 0
    %306 = vmatprep.subr.bf16.mxu0 0
    %307 = vmatpush1.bf16.msra.mxu0 0
    %308 = vmatprep.subr.bf16.mxu0 0
    %309 = vmatpush1.bf16.msra.mxu0 0
    %310 = vmatprep.mubr.bf16.mxu0 0
    %311 = vmatmul.mubr.bf16.gmra.mrb[0].mxu0 %v228
    %v312 = vpop.f32.mrb[0].mxu0
    %v313 = vadd.f32 %v222, %v312
    %v314 = vpop.f32.mrb[0].mxu0
    %v315 = vpop.f32.mrb[0].mxu0
    %v316 = vadd.f32 %v222, %v315
    %v317 = vpop.f32.mrb[0].mxu0
    %318 = vdwg.mxu0
    %v319 = vmax.f32 %v313, 0.0
    %v320 = vmax.f32 %v316, 0.0
    %v321 = vpack.c.bf16 %v320, %v319
    %v322 = vld [vmem:[%s4] sm:$0xf]
    %v323 = vld [vmem:[%s4 + $0x4] sm:$0xf]
    %v324 = vld [vmem:[%s4 + $0x8] sm:$0xf]
    %v325 = vld [vmem:[%s4 + $0xc] sm:$0xf]
    %v326 = vld [vmem:[%s4 + $0x10] sm:$0xf]
    %v327 = vld [vmem:[%s4 + $0x14] sm:$0xf]
    %v328 = vld [vmem:[%s4 + $0x18] sm:$0xf]
    %v329 = vld [vmem:[%s4 + $0x1c] sm:$0xf]
    %v330 = vld [vmem:[%s4 + $0x20] sm:$0xf]
    %v331 = vld [vmem:[%s4 + $0x24] sm:$0xf]
    %v332 = vld [vmem:[%s4 + $0x28] sm:$0xf]
    %v333 = vld [vmem:[%s4 + $0x2c] sm:$0xf]
    %v334 = vld [vmem:[%s4 + $0x30] sm:$0xf]
    %v335 = vld [vmem:[%s4 + $0x34] sm:$0xf]
    %v336 = vld [vmem:[%s4 + $0x38] sm:$0xf]
    %v337 = vld [vmem:[%s4 + $0x3c] sm:$0xf]
    %v338 = vld [vmem:[#allocation2] sm:$0x1]
    %v340 = vlaneseq
    %v341 = vshrl.u32 %v340, 7
    %v342 = vsub.s32 0, %v341
    %v343 = vrot.slane %v338, %v342
    %v361 = vunpack.c.l.b16 %v322
    %v362 = vunpack.c.l.b16 %v323
    %v363 = vunpack.c.l.b16 %v324
    %v364 = vunpack.c.l.b16 %v325
    %v365 = vunpack.c.l.b16 %v326
    %v366 = vunpack.c.l.b16 %v327
    %v367 = vunpack.c.l.b16 %v328
    %v368 = vunpack.c.l.b16 %v329
    %v369 = vunpack.c.l.b16 %v330
    %v370 = vunpack.c.l.b16 %v331
    %v371 = vunpack.c.l.b16 %v332
    %v372 = vunpack.c.l.b16 %v333
    %v373 = vunpack.c.l.b16 %v334
    %v374 = vunpack.c.l.b16 %v335
    %v375 = vunpack.c.l.b16 %v336
    %v376 = vunpack.c.l.b16 %v337
    %v377 = vpack.c.b16 %v362, %v361
    %v378 = vpack.c.b16 %v364, %v363
    %v379 = vpack.c.b16 %v366, %v365
    %v380 = vpack.c.b16 %v368, %v367
    %v381 = vpack.c.b16 %v370, %v369
    %v382 = vpack.c.b16 %v372, %v371
    %v383 = vpack.c.b16 %v374, %v373
    %v384 = vpack.c.b16 %v376, %v375
    %393 = vmatprep.subr.bf16.mxu0 0
    %394 = vmatpush1.bf16.msra.mxu0 %v377
    %395 = vmatprep.subr.bf16.mxu0 0
    %396 = vmatpush1.bf16.msra.mxu0 %v378
    %397 = vmatprep.subr.bf16.mxu0 0
    %398 = vmatpush1.bf16.msra.mxu0 %v379
    %399 = vmatprep.subr.bf16.mxu0 0
    %400 = vmatpush1.bf16.msra.mxu0 %v380
    %401 = vmatprep.subr.bf16.mxu0 0
    %402 = vmatpush1.bf16.msra.mxu0 %v381
    %403 = vmatprep.subr.bf16.mxu0 0
    %404 = vmatpush1.bf16.msra.mxu0 %v382
    %405 = vmatprep.subr.bf16.mxu0 0
    %406 = vmatpush1.bf16.msra.mxu0 %v383
    %407 = vmatprep.subr.bf16.mxu0 0
    %408 = vmatpush1.bf16.msra.mxu0 %v384
    %409 = vmatprep.subr.bf16.mxu0 0
    %410 = vmatpush1.bf16.msra.mxu0 0
    %411 = vmatprep.subr.bf16.mxu0 0
    %412 = vmatpush1.bf16.msra.mxu0 0
    %413 = vmatprep.subr.bf16.mxu0 0
    %414 = vmatpush1.bf16.msra.mxu0 0
    %415 = vmatprep.subr.bf16.mxu0 0
    %416 = vmatpush1.bf16.msra.mxu0 0
    %417 = vmatprep.subr.bf16.mxu0 0
    %418 = vmatpush1.bf16.msra.mxu0 0
    %419 = vmatprep.subr.bf16.mxu0 0
    %420 = vmatpush1.bf16.msra.mxu0 0
    %421 = vmatprep.subr.bf16.mxu0 0
    %422 = vmatpush1.bf16.msra.mxu0 0
    %423 = vmatprep.subr.bf16.mxu0 0
    %424 = vmatpush1.bf16.msra.mxu0 0
    %425 = vmatprep.mubr.bf16.mxu0 0
    %426 = vmatmul.mubr.bf16.gmra.mrb[0].mxu0 %v321
    %v427 = vpop.f32.mrb[0].mxu0
    %v428 = vadd.f32 %v343, %v427
    %v429 = vpop.f32.mrb[0].mxu0
    %v430 = vpop.f32.mrb[0].mxu0
    %v431 = vadd.f32 %v343, %v430
    %v432 = vpop.f32.mrb[0].mxu0
    %433 = vdwg.mxu0
    %v434 = vmax.f32 %v428, 0.0
    %v435 = vmax.f32 %v431, 0.0
    %v436 = vpack.c.bf16 %v435, %v434
    %v438 = vunpack.c.l.b16 %v436
    %v439 = vunpack.c.h.b16 %v436
    %v440 = vpack.c.b16 %v438, %v438
    %v441 = vpack.c.b16 %v439, %v439
    %v446 = vunpack.c.l.b16 %v199
    %v447 = vunpack.c.l.b16 %v200
    %v448 = vpack.c.b16 %v447, %v446
    %450 = vmatprep.subr.bf16.mxu0 0
    %451 = vmatpush1.bf16.msra.mxu0 %v262
    %452 = vmatprep.subr.bf16.mxu0 0
    %453 = vmatpush1.bf16.msra.mxu0 %v263
    %454 = vmatprep.subr.bf16.mxu0 0
    %455 = vmatpush1.bf16.msra.mxu0 %v264
    %456 = vmatprep.subr.bf16.mxu0 0
    %457 = vmatpush1.bf16.msra.mxu0 %v265
    %458 = vmatprep.subr.bf16.mxu0 0
    %459 = vmatpush1.bf16.msra.mxu0 %v266
    %460 = vmatprep.subr.bf16.mxu0 0
    %461 = vmatpush1.bf16.msra.mxu0 %v267
    %462 = vmatprep.subr.bf16.mxu0 0
    %463 = vmatpush1.bf16.msra.mxu0 %v268
    %464 = vmatprep.subr.bf16.mxu0 0
    %465 = vmatpush1.bf16.msra.mxu0 %v269
    %466 = vmatprep.subr.bf16.mxu0 0
    %467 = vmatpush1.bf16.msra.mxu0 0
    %468 = vmatprep.subr.bf16.mxu0 0
    %469 = vmatpush1.bf16.msra.mxu0 0
    %470 = vmatprep.subr.bf16.mxu0 0
    %471 = vmatpush1.bf16.msra.mxu0 0
    %472 = vmatprep.subr.bf16.mxu0 0
    %473 = vmatpush1.bf16.msra.mxu0 0
    %474 = vmatprep.subr.bf16.mxu0 0
    %475 = vmatpush1.bf16.msra.mxu0 0
    %476 = vmatprep.subr.bf16.mxu0 0
    %477 = vmatpush1.bf16.msra.mxu0 0
    %478 = vmatprep.subr.bf16.mxu0 0
    %479 = vmatpush1.bf16.msra.mxu0 0
    %480 = vmatprep.subr.bf16.mxu0 0
    %481 = vmatpush1.bf16.msra.mxu0 0
    %482 = vmatprep.mubr.bf16.mxu0 0
    %483 = vmatmul.mubr.bf16.gmra.mrb[0].mxu0 %v448
    %v484 = vpop.f32.mrb[0].mxu0
    %v485 = vadd.f32 %v222, %v484
    %v486 = vpop.f32.mrb[0].mxu0
    %v487 = vpop.f32.mrb[0].mxu0
    %v488 = vadd.f32 %v222, %v487
    %v489 = vpop.f32.mrb[0].mxu0
    %490 = vdwg.mxu0
    %v491 = vmax.f32 %v485, 0.0
    %v492 = vmax.f32 %v488, 0.0
    %v493 = vpack.c.bf16 %v492, %v491
    %494 = vmatprep.subr.bf16.mxu0 0
    %495 = vmatpush1.bf16.msra.mxu0 %v377
    %496 = vmatprep.subr.bf16.mxu0 0
    %497 = vmatpush1.bf16.msra.mxu0 %v378
    %498 = vmatprep.subr.bf16.mxu0 0
    %499 = vmatpush1.bf16.msra.mxu0 %v379
    %500 = vmatprep.subr.bf16.mxu0 0
    %501 = vmatpush1.bf16.msra.mxu0 %v380
    %502 = vmatprep.subr.bf16.mxu0 0
    %503 = vmatpush1.bf16.msra.mxu0 %v381
    %504 = vmatprep.subr.bf16.mxu0 0
    %505 = vmatpush1.bf16.msra.mxu0 %v382
    %506 = vmatprep.subr.bf16.mxu0 0
    %507 = vmatpush1.bf16.msra.mxu0 %v383
    %508 = vmatprep.subr.bf16.mxu0 0
    %509 = vmatpush1.bf16.msra.mxu0 %v384
    %510 = vmatprep.subr.bf16.mxu0 0
    %511 = vmatpush1.bf16.msra.mxu0 0
    %512 = vmatprep.subr.bf16.mxu0 0
    %513 = vmatpush1.bf16.msra.mxu0 0
    %514 = vmatprep.subr.bf16.mxu0 0
    %515 = vmatpush1.bf16.msra.mxu0 0
    %516 = vmatprep.subr.bf16.mxu0 0
    %517 = vmatpush1.bf16.msra.mxu0 0
    %518 = vmatprep.subr.bf16.mxu0 0
    %519 = vmatpush1.bf16.msra.mxu0 0
    %520 = vmatprep.subr.bf16.mxu0 0
    %521 = vmatpush1.bf16.msra.mxu0 0
    %522 = vmatprep.subr.bf16.mxu0 0
    %523 = vmatpush1.bf16.msra.mxu0 0
    %524 = vmatprep.subr.bf16.mxu0 0
    %525 = vmatpush1.bf16.msra.mxu0 0
    %526 = vmatprep.mubr.bf16.mxu0 0
    %527 = vmatmul.mubr.bf16.gmra.mrb[0].mxu0 %v493
    %v528 = vpop.f32.mrb[0].mxu0
    %v529 = vadd.f32 %v343, %v528
    %v530 = vpop.f32.mrb[0].mxu0
    %v531 = vpop.f32.mrb[0].mxu0
    %v532 = vadd.f32 %v343, %v531
    %v533 = vpop.f32.mrb[0].mxu0
    %534 = vdwg.mxu0
    %v535 = vmax.f32 %v529, 0.0
    %v536 = vmax.f32 %v532, 0.0
    %v537 = vpack.c.bf16 %v536, %v535
    %v539 = vunpack.c.l.b16 %v537
    %v540 = vunpack.c.h.b16 %v537
    %v541 = vpack.c.b16 %v539, %v539
    %v542 = vpack.c.b16 %v540, %v540
    %545 = vmatprep.subr.bf16.mxu0 0
    %546 = vmatpush1.bf16.xpose.msra.mxu0 %v541
    %547 = vmatprep.subr.bf16.mxu0 0
    %548 = vmatpush1.bf16.xpose.msra.mxu0 0
    %549 = vmatprep.subr.bf16.mxu0 0
    %550 = vmatpush1.bf16.xpose.msra.mxu0 0
    %551 = vmatprep.subr.bf16.mxu0 0
    %552 = vmatpush1.bf16.xpose.msra.mxu0 0
    %553 = vmatprep.subr.bf16.mxu0 0
    %554 = vmatpush1.bf16.xpose.msra.mxu0 0
    %555 = vmatprep.subr.bf16.mxu0 0
    %556 = vmatpush1.bf16.xpose.msra.mxu0 0
    %557 = vmatprep.subr.bf16.mxu0 0
    %558 = vmatpush1.bf16.xpose.msra.mxu0 0
    %559 = vmatprep.subr.bf16.mxu0 0
    %560 = vmatpush1.bf16.xpose.msra.mxu0 0
    %561 = vmatprep.subr.bf16.mxu0 0
    %562 = vmatpush1.bf16.xpose.msra.mxu0 0
    %563 = vmatprep.subr.bf16.mxu0 0
    %564 = vmatpush1.bf16.xpose.msra.mxu0 0
    %565 = vmatprep.subr.bf16.mxu0 0
    %566 = vmatpush1.bf16.xpose.msra.mxu0 0
    %567 = vmatprep.subr.bf16.mxu0 0
    %568 = vmatpush1.bf16.xpose.msra.mxu0 0
    %569 = vmatprep.subr.bf16.mxu0 0
    %570 = vmatpush1.bf16.xpose.msra.mxu0 0
    %571 = vmatprep.subr.bf16.mxu0 0
    %572 = vmatpush1.bf16.xpose.msra.mxu0 0
    %573 = vmatprep.subr.bf16.mxu0 0
    %574 = vmatpush1.bf16.xpose.msra.mxu0 0
    %575 = vmatprep.subr.bf16.mxu0 0
    %576 = vmatpush1.bf16.xpose.msra.mxu0 0
    %577 = vmatprep.mubr.bf16.mxu0 0
    %578 = vmatmul.mubr.bf16.gmra.mrb[0].mxu0 %v440
    %v579 = vpop.f32.mrb[0].mxu0
    %v580 = vadd.f32 0.0, %v579
    %v581 = vpop.f32.mrb[0].mxu0
    %v582 = vpop.f32.mrb[0].mxu0
    %v583 = vpop.f32.mrb[0].mxu0
    %584 = vdwg.mxu0
    %585 = vmatprep.subr.bf16.mxu0 0
    %586 = vmatpush1.bf16.xpose.msra.mxu0 %v542
    %587 = vmatprep.subr.bf16.mxu0 0
    %588 = vmatpush1.bf16.xpose.msra.mxu0 0
    %589 = vmatprep.subr.bf16.mxu0 0
    %590 = vmatpush1.bf16.xpose.msra.mxu0 0
    %591 = vmatprep.subr.bf16.mxu0 0
    %592 = vmatpush1.bf16.xpose.msra.mxu0 0
    %593 = vmatprep.subr.bf16.mxu0 0
    %594 = vmatpush1.bf16.xpose.msra.mxu0 0
    %595 = vmatprep.subr.bf16.mxu0 0
    %596 = vmatpush1.bf16.xpose.msra.mxu0 0
    %597 = vmatprep.subr.bf16.mxu0 0
    %598 = vmatpush1.bf16.xpose.msra.mxu0 0
    %599 = vmatprep.subr.bf16.mxu0 0
    %600 = vmatpush1.bf16.xpose.msra.mxu0 0
    %601 = vmatprep.subr.bf16.mxu0 0
    %602 = vmatpush1.bf16.xpose.msra.mxu0 0
    %603 = vmatprep.subr.bf16.mxu0 0
    %604 = vmatpush1.bf16.xpose.msra.mxu0 0
    %605 = vmatprep.subr.bf16.mxu0 0
    %606 = vmatpush1.bf16.xpose.msra.mxu0 0
    %607 = vmatprep.subr.bf16.mxu0 0
    %608 = vmatpush1.bf16.xpose.msra.mxu0 0
    %609 = vmatprep.subr.bf16.mxu0 0
    %610 = vmatpush1.bf16.xpose.msra.mxu0 0
    %611 = vmatprep.subr.bf16.mxu0 0
    %612 = vmatpush1.bf16.xpose.msra.mxu0 0
    %613 = vmatprep.subr.bf16.mxu0 0
    %614 = vmatpush1.bf16.xpose.msra.mxu0 0
    %615 = vmatprep.subr.bf16.mxu0 0
    %616 = vmatpush1.bf16.xpose.msra.mxu0 0
    %617 = vmatprep.mubr.bf16.mxu0 0
    %618 = vmatmul.mubr.bf16.gmra.mrb[0].mxu0 %v441
    %v619 = vpop.f32.mrb[0].mxu0
    %v620 = vadd.f32 0.0, %v619
    %v621 = vpop.f32.mrb[0].mxu0
    %v622 = vpop.f32.mrb[0].mxu0
    %v623 = vpop.f32.mrb[0].mxu0
    %624 = vdwg.mxu0
    %625 = vmatprep.subr.bf16.mxu0 0
    %626 = vmatpush1.bf16.xpose.msra.mxu0 %v440
    %627 = vmatprep.subr.bf16.mxu0 0
    %628 = vmatpush1.bf16.xpose.msra.mxu0 0
    %629 = vmatprep.subr.bf16.mxu0 0
    %630 = vmatpush1.bf16.xpose.msra.mxu0 0
    %631 = vmatprep.subr.bf16.mxu0 0
    %632 = vmatpush1.bf16.xpose.msra.mxu0 0
    %633 = vmatprep.subr.bf16.mxu0 0
    %634 = vmatpush1.bf16.xpose.msra.mxu0 0
    %635 = vmatprep.subr.bf16.mxu0 0
    %636 = vmatpush1.bf16.xpose.msra.mxu0 0
    %637 = vmatprep.subr.bf16.mxu0 0
    %638 = vmatpush1.bf16.xpose.msra.mxu0 0
    %639 = vmatprep.subr.bf16.mxu0 0
    %640 = vmatpush1.bf16.xpose.msra.mxu0 0
    %641 = vmatprep.subr.bf16.mxu0 0
    %642 = vmatpush1.bf16.xpose.msra.mxu0 0
    %643 = vmatprep.subr.bf16.mxu0 0
    %644 = vmatpush1.bf16.xpose.msra.mxu0 0
    %645 = vmatprep.subr.bf16.mxu0 0
    %646 = vmatpush1.bf16.xpose.msra.mxu0 0
    %647 = vmatprep.subr.bf16.mxu0 0
    %648 = vmatpush1.bf16.xpose.msra.mxu0 0
    %649 = vmatprep.subr.bf16.mxu0 0
    %650 = vmatpush1.bf16.xpose.msra.mxu0 0
    %651 = vmatprep.subr.bf16.mxu0 0
    %652 = vmatpush1.bf16.xpose.msra.mxu0 0
    %653 = vmatprep.subr.bf16.mxu0 0
    %654 = vmatpush1.bf16.xpose.msra.mxu0 0
    %655 = vmatprep.subr.bf16.mxu0 0
    %656 = vmatpush1.bf16.xpose.msra.mxu0 0
    %657 = vmatprep.mubr.bf16.mxu0 0
    %658 = vmatmul.mubr.bf16.gmra.mrb[0].mxu0 %v541
    %v659 = vpop.f32.mrb[0].mxu0
    %v660 = vadd.f32 0.0, %v659
    %v661 = vpop.f32.mrb[0].mxu0
    %v662 = vpop.f32.mrb[0].mxu0
    %v663 = vpop.f32.mrb[0].mxu0
    %664 = vdwg.mxu0
    %665 = vmatprep.subr.bf16.mxu0 0
    %666 = vmatpush1.bf16.xpose.msra.mxu0 %v441
    %667 = vmatprep.subr.bf16.mxu0 0
    %668 = vmatpush1.bf16.xpose.msra.mxu0 0
    %669 = vmatprep.subr.bf16.mxu0 0
    %670 = vmatpush1.bf16.xpose.msra.mxu0 0
    %671 = vmatprep.subr.bf16.mxu0 0
    %672 = vmatpush1.bf16.xpose.msra.mxu0 0
    %673 = vmatprep.subr.bf16.mxu0 0
    %674 = vmatpush1.bf16.xpose.msra.mxu0 0
    %675 = vmatprep.subr.bf16.mxu0 0
    %676 = vmatpush1.bf16.xpose.msra.mxu0 0
    %677 = vmatprep.subr.bf16.mxu0 0
    %678 = vmatpush1.bf16.xpose.msra.mxu0 0
    %679 = vmatprep.subr.bf16.mxu0 0
    %680 = vmatpush1.bf16.xpose.msra.mxu0 0
    %681 = vmatprep.subr.bf16.mxu0 0
    %682 = vmatpush1.bf16.xpose.msra.mxu0 0
    %683 = vmatprep.subr.bf16.mxu0 0
    %684 = vmatpush1.bf16.xpose.msra.mxu0 0
    %685 = vmatprep.subr.bf16.mxu0 0
    %686 = vmatpush1.bf16.xpose.msra.mxu0 0
    %687 = vmatprep.subr.bf16.mxu0 0
    %688 = vmatpush1.bf16.xpose.msra.mxu0 0
    %689 = vmatprep.subr.bf16.mxu0 0
    %690 = vmatpush1.bf16.xpose.msra.mxu0 0
    %691 = vmatprep.subr.bf16.mxu0 0
    %692 = vmatpush1.bf16.xpose.msra.mxu0 0
    %693 = vmatprep.subr.bf16.mxu0 0
    %694 = vmatpush1.bf16.xpose.msra.mxu0 0
    %695 = vmatprep.subr.bf16.mxu0 0
    %696 = vmatpush1.bf16.xpose.msra.mxu0 0
    %697 = vmatprep.mubr.bf16.mxu0 0
    %698 = vmatmul.mubr.bf16.gmra.mrb[0].mxu0 %v542
    %v699 = vpop.f32.mrb[0].mxu0
    %v700 = vadd.f32 0.0, %v699
    %v701 = vpop.f32.mrb[0].mxu0
    %v702 = vpop.f32.mrb[0].mxu0
    %v703 = vpop.f32.mrb[0].mxu0
    %704 = vdwg.mxu0
    %vm705 = vcmask 64512
    %v706 = vsel %vm705, %v580, -inf
    %707 = vmax.xlane.f32.xlu0 %v706
    %v708 = vpop.xlane.xlu0 %707
    %v709 = vsel %vm705, %v620, -inf
    %710 = vmax.xlane.f32.xlu0 %v709
    %v711 = vpop.xlane.xlu0 %710
    %v712 = vsub.f32 %v580, %v708
    %v713 = vsub.f32 %v620, %v711
    %v714 = vmul.f32 %v712, 1.442695
    %v715 = vpow.pop %v714
    %v716 = vmul.f32 %v713, 1.442695
    %v717 = vpow.pop %v716
    %v718 = vsel %vm705, %v715, 0.0
    %719 = vadd.xlane.f32.xlu0 %v718
    %v720 = vpop.xlane.xlu0 %719
    %v721 = vsel %vm705, %v717, 0.0
    %722 = vadd.xlane.f32.xlu0 %v721
    %v723 = vpop.xlane.xlu0 %722
    %v724 = vrcp.pop %v720
    %v725 = vmul.f32 %v715, %v724
    %v726 = vrcp.pop %v723
    %v727 = vmul.f32 %v717, %v726
    %v728 = vpack.c.bf16 %v725, %v725
    %v729 = vpack.c.bf16 %v727, %v727
    %v730 = vsel %vm705, %v660, -inf
    %731 = vmax.xlane.f32.xlu0 %v730
    %v732 = vpop.xlane.xlu0 %731
    %v733 = vsel %vm705, %v700, -inf
    %734 = vmax.xlane.f32.xlu0 %v733
    %v735 = vpop.xlane.xlu0 %734
    %v736 = vsub.f32 %v660, %v732
    %v737 = vsub.f32 %v700, %v735
    %v738 = vmul.f32 %v736, 1.442695
    %v739 = vpow.pop %v738
    %v740 = vmul.f32 %v737, 1.442695
    %v741 = vpow.pop %v740
    %v742 = vsel %vm705, %v739, 0.0
    %743 = vadd.xlane.f32.xlu0 %v742
    %v744 = vpop.xlane.xlu0 %743
    %v745 = vsel %vm705, %v741, 0.0
    %746 = vadd.xlane.f32.xlu0 %v745
    %v747 = vpop.xlane.xlu0 %746
    %v748 = vrcp.pop %v744
    %v749 = vmul.f32 %v739, %v748
    %v750 = vrcp.pop %v747
    %v751 = vmul.f32 %v741, %v750
    %v752 = vpack.c.bf16 %v749, %v749
    %v753 = vpack.c.bf16 %v751, %v751
    %v755 = vsel %vm705, %v728, 0
    %vm757 = vcmask 1043456
    %v759 = vsel %vm757, %v199, 0
    %761 = vmatprep.subr.bf16.mxu0 0
    %762 = vmatpush1.bf16.msra.mxu0 %v759
    %763 = vmatprep.subr.bf16.mxu0 0
    %764 = vmatpush1.bf16.msra.mxu0 0
    %765 = vmatprep.subr.bf16.mxu0 0
    %766 = vmatpush1.bf16.msra.mxu0 0
    %767 = vmatprep.subr.bf16.mxu0 0
    %768 = vmatpush1.bf16.msra.mxu0 0
    %769 = vmatprep.subr.bf16.mxu0 0
    %770 = vmatpush1.bf16.msra.mxu0 0
    %771 = vmatprep.subr.bf16.mxu0 0
    %772 = vmatpush1.bf16.msra.mxu0 0
    %773 = vmatprep.subr.bf16.mxu0 0
    %774 = vmatpush1.bf16.msra.mxu0 0
    %775 = vmatprep.subr.bf16.mxu0 0
    %776 = vmatpush1.bf16.msra.mxu0 0
    %777 = vmatprep.subr.bf16.mxu0 0
    %778 = vmatpush1.bf16.msra.mxu0 0
    %779 = vmatprep.subr.bf16.mxu0 0
    %780 = vmatpush1.bf16.msra.mxu0 0
    %781 = vmatprep.subr.bf16.mxu0 0
    %782 = vmatpush1.bf16.msra.mxu0 0
    %783 = vmatprep.subr.bf16.mxu0 0
    %784 = vmatpush1.bf16.msra.mxu0 0
    %785 = vmatprep.subr.bf16.mxu0 0
    %786 = vmatpush1.bf16.msra.mxu0 0
    %787 = vmatprep.subr.bf16.mxu0 0
    %788 = vmatpush1.bf16.msra.mxu0 0
    %789 = vmatprep.subr.bf16.mxu0 0
    %790 = vmatpush1.bf16.msra.mxu0 0
    %791 = vmatprep.subr.bf16.mxu0 0
    %792 = vmatpush1.bf16.msra.mxu0 0
    %793 = vmatprep.mubr.bf16.mxu0 0
    %794 = vmatmul.mubr.bf16.gmra.mrb[0].mxu0 %v755
    %v795 = vpop.f32.mrb[0].mxu0
    %v796 = vadd.f32 0.0, %v795
    %v797 = vpop.f32.mrb[0].mxu0
    %v798 = vpop.f32.mrb[0].mxu0
    %v799 = vpop.f32.mrb[0].mxu0
    %800 = vdwg.mxu0
    %v802 = vsel %vm705, %v729, 0
    %v805 = vsel %vm757, %v200, 0
    %807 = vmatprep.subr.bf16.mxu0 0
    %808 = vmatpush1.bf16.msra.mxu0 %v805
    %809 = vmatprep.subr.bf16.mxu0 0
    %810 = vmatpush1.bf16.msra.mxu0 0
    %811 = vmatprep.subr.bf16.mxu0 0
    %812 = vmatpush1.bf16.msra.mxu0 0
    %813 = vmatprep.subr.bf16.mxu0 0
    %814 = vmatpush1.bf16.msra.mxu0 0
    %815 = vmatprep.subr.bf16.mxu0 0
    %816 = vmatpush1.bf16.msra.mxu0 0
    %817 = vmatprep.subr.bf16.mxu0 0
    %818 = vmatpush1.bf16.msra.mxu0 0
    %819 = vmatprep.subr.bf16.mxu0 0
    %820 = vmatpush1.bf16.msra.mxu0 0
    %821 = vmatprep.subr.bf16.mxu0 0
    %822 = vmatpush1.bf16.msra.mxu0 0
    %823 = vmatprep.subr.bf16.mxu0 0
    %824 = vmatpush1.bf16.msra.mxu0 0
    %825 = vmatprep.subr.bf16.mxu0 0
    %826 = vmatpush1.bf16.msra.mxu0 0
    %827 = vmatprep.subr.bf16.mxu0 0
    %828 = vmatpush1.bf16.msra.mxu0 0
    %829 = vmatprep.subr.bf16.mxu0 0
    %830 = vmatpush1.bf16.msra.mxu0 0
    %831 = vmatprep.subr.bf16.mxu0 0
    %832 = vmatpush1.bf16.msra.mxu0 0
    %833 = vmatprep.subr.bf16.mxu0 0
    %834 = vmatpush1.bf16.msra.mxu0 0
    %835 = vmatprep.subr.bf16.mxu0 0
    %836 = vmatpush1.bf16.msra.mxu0 0
    %837 = vmatprep.subr.bf16.mxu0 0
    %838 = vmatpush1.bf16.msra.mxu0 0
    %839 = vmatprep.mubr.bf16.mxu0 0
    %840 = vmatmul.mubr.bf16.gmra.mrb[0].mxu0 %v802
    %v841 = vpop.f32.mrb[0].mxu0
    %v842 = vadd.f32 0.0, %v841
    %v843 = vpop.f32.mrb[0].mxu0
    %v844 = vpop.f32.mrb[0].mxu0
    %v845 = vpop.f32.mrb[0].mxu0
    %846 = vdwg.mxu0
    %v847 = vpack.c.bf16 %v796, %v796
    %v848 = vpack.c.bf16 %v842, %v842
    %v850 = vsel %vm705, %v752, 0
    %v853 = vsel %vm757, %v197, 0
    %855 = vmatprep.subr.bf16.mxu0 0
    %856 = vmatpush1.bf16.msra.mxu0 %v853
    %857 = vmatprep.subr.bf16.mxu0 0
    %858 = vmatpush1.bf16.msra.mxu0 0
    %859 = vmatprep.subr.bf16.mxu0 0
    %860 = vmatpush1.bf16.msra.mxu0 0
    %861 = vmatprep.subr.bf16.mxu0 0
    %862 = vmatpush1.bf16.msra.mxu0 0
    %863 = vmatprep.subr.bf16.mxu0 0
    %864 = vmatpush1.bf16.msra.mxu0 0
    %865 = vmatprep.subr.bf16.mxu0 0
    %866 = vmatpush1.bf16.msra.mxu0 0
    %867 = vmatprep.subr.bf16.mxu0 0
    %868 = vmatpush1.bf16.msra.mxu0 0
    %869 = vmatprep.subr.bf16.mxu0 0
    %870 = vmatpush1.bf16.msra.mxu0 0
    %871 = vmatprep.subr.bf16.mxu0 0
    %872 = vmatpush1.bf16.msra.mxu0 0
    %873 = vmatprep.subr.bf16.mxu0 0
    %874 = vmatpush1.bf16.msra.mxu0 0
    %875 = vmatprep.subr.bf16.mxu0 0
    %876 = vmatpush1.bf16.msra.mxu0 0
    %877 = vmatprep.subr.bf16.mxu0 0
    %878 = vmatpush1.bf16.msra.mxu0 0
    %879 = vmatprep.subr.bf16.mxu0 0
    %880 = vmatpush1.bf16.msra.mxu0 0
    %881 = vmatprep.subr.bf16.mxu0 0
    %882 = vmatpush1.bf16.msra.mxu0 0
    %883 = vmatprep.subr.bf16.mxu0 0
    %884 = vmatpush1.bf16.msra.mxu0 0
    %885 = vmatprep.subr.bf16.mxu0 0
    %886 = vmatpush1.bf16.msra.mxu0 0
    %887 = vmatprep.mubr.bf16.mxu0 0
    %888 = vmatmul.mubr.bf16.gmra.mrb[0].mxu0 %v850
    %v889 = vpop.f32.mrb[0].mxu0
    %v890 = vadd.f32 0.0, %v889
    %v891 = vpop.f32.mrb[0].mxu0
    %v892 = vpop.f32.mrb[0].mxu0
    %v893 = vpop.f32.mrb[0].mxu0
    %894 = vdwg.mxu0
    %v896 = vsel %vm705, %v753, 0
    %v899 = vsel %vm757, %v198, 0
    %901 = vmatprep.subr.bf16.mxu0 0
    %902 = vmatpush1.bf16.msra.mxu0 %v899
    %903 = vmatprep.subr.bf16.mxu0 0
    %904 = vmatpush1.bf16.msra.mxu0 0
    %905 = vmatprep.subr.bf16.mxu0 0
    %906 = vmatpush1.bf16.msra.mxu0 0
    %907 = vmatprep.subr.bf16.mxu0 0
    %908 = vmatpush1.bf16.msra.mxu0 0
    %909 = vmatprep.subr.bf16.mxu0 0
    %910 = vmatpush1.bf16.msra.mxu0 0
    %911 = vmatprep.subr.bf16.mxu0 0
    %912 = vmatpush1.bf16.msra.mxu0 0
    %913 = vmatprep.subr.bf16.mxu0 0
    %914 = vmatpush1.bf16.msra.mxu0 0
    %915 = vmatprep.subr.bf16.mxu0 0
    %916 = vmatpush1.bf16.msra.mxu0 0
    %917 = vmatprep.subr.bf16.mxu0 0
    %918 = vmatpush1.bf16.msra.mxu0 0
    %919 = vmatprep.subr.bf16.mxu0 0
    %920 = vmatpush1.bf16.msra.mxu0 0
    %921 = vmatprep.subr.bf16.mxu0 0
    %922 = vmatpush1.bf16.msra.mxu0 0
    %923 = vmatprep.subr.bf16.mxu0 0
    %924 = vmatpush1.bf16.msra.mxu0 0
    %925 = vmatprep.subr.bf16.mxu0 0
    %926 = vmatpush1.bf16.msra.mxu0 0
    %927 = vmatprep.subr.bf16.mxu0 0
    %928 = vmatpush1.bf16.msra.mxu0 0
    %929 = vmatprep.subr.bf16.mxu0 0
    %930 = vmatpush1.bf16.msra.mxu0 0
    %931 = vmatprep.subr.bf16.mxu0 0
    %932 = vmatpush1.bf16.msra.mxu0 0
    %933 = vmatprep.mubr.bf16.mxu0 0
    %934 = vmatmul.mubr.bf16.gmra.mrb[0].mxu0 %v896
    %v935 = vpop.f32.mrb[0].mxu0
    %v936 = vadd.f32 0.0, %v935
    %v937 = vpop.f32.mrb[0].mxu0
    %v938 = vpop.f32.mrb[0].mxu0
    %v939 = vpop.f32.mrb[0].mxu0
    %940 = vdwg.mxu0
    %v941 = vpack.c.bf16 %v890, %v890
    %v942 = vpack.c.bf16 %v936, %v936
    %v943 = vld [vmem:[%s6] sm:$0xf]
    %v944 = vld [vmem:[%s6 + $0x4] sm:$0xf]
    %v945 = vld [vmem:[%s6 + $0x8] sm:$0xf]
    %v946 = vld [vmem:[%s6 + $0xc] sm:$0xf]
    %v947 = vld [vmem:[%s6 + $0x10] sm:$0xf]
    %v948 = vld [vmem:[%s6 + $0x14] sm:$0xf]
    %v949 = vld [vmem:[%s6 + $0x18] sm:$0xf]
    %v950 = vld [vmem:[%s6 + $0x1c] sm:$0xf]
    %v951 = vld [vmem:[%s6 + $0x20] sm:$0xf]
    %v952 = vld [vmem:[%s6 + $0x24] sm:$0xf]
    %v953 = vld [vmem:[%s6 + $0x28] sm:$0xf]
    %v954 = vld [vmem:[%s6 + $0x2c] sm:$0xf]
    %v955 = vld [vmem:[%s6 + $0x30] sm:$0xf]
    %v956 = vld [vmem:[%s6 + $0x34] sm:$0xf]
    %v957 = vld [vmem:[%s6 + $0x38] sm:$0xf]
    %v958 = vld [vmem:[%s6 + $0x3c] sm:$0xf]
    %v959 = vld [vmem:[#allocation4] sm:$0xf]
    %v960 = vld [vmem:[#allocation4 + $0x4] sm:$0xf]
    %v961 = vld [vmem:[#allocation4 + $0x8] sm:$0xf]
    %v962 = vld [vmem:[#allocation4 + $0xc] sm:$0xf]
    %v963 = vld [vmem:[#allocation4 + $0x10] sm:$0xf]
    %v964 = vld [vmem:[#allocation4 + $0x14] sm:$0xf]
    %v965 = vld [vmem:[#allocation4 + $0x18] sm:$0xf]
    %v966 = vld [vmem:[#allocation4 + $0x1c] sm:$0xf]
    %v967 = vld [vmem:[#allocation4 + $0x20] sm:$0xf]
    %v968 = vld [vmem:[#allocation4 + $0x24] sm:$0xf]
    %v969 = vld [vmem:[#allocation4 + $0x28] sm:$0xf]
    %v970 = vld [vmem:[#allocation4 + $0x2c] sm:$0xf]
    %v971 = vld [vmem:[#allocation4 + $0x30] sm:$0xf]
    %v972 = vld [vmem:[#allocation4 + $0x34] sm:$0xf]
    %v973 = vld [vmem:[#allocation4 + $0x38] sm:$0xf]
    %v974 = vld [vmem:[#allocation4 + $0x3c] sm:$0xf]
    %v977 = vunpack.c.l.b16 %v847
    %v978 = vunpack.c.l.b16 %v848
    %v979 = vpack.c.b16 %v978, %v977
    %v997 = vunpack.c.l.b16 %v959
    %v998 = vunpack.c.l.b16 %v960
    %v999 = vunpack.c.l.b16 %v961
    %v1000 = vunpack.c.l.b16 %v962
    %v1001 = vunpack.c.l.b16 %v963
    %v1002 = vunpack.c.l.b16 %v964
    %v1003 = vunpack.c.l.b16 %v965
    %v1004 = vunpack.c.l.b16 %v966
    %v1005 = vunpack.c.l.b16 %v967
    %v1006 = vunpack.c.l.b16 %v968
    %v1007 = vunpack.c.l.b16 %v969
    %v1008 = vunpack.c.l.b16 %v970
    %v1009 = vunpack.c.l.b16 %v971
    %v1010 = vunpack.c.l.b16 %v972
    %v1011 = vunpack.c.l.b16 %v973
    %v1012 = vunpack.c.l.b16 %v974
    %v1013 = vpack.c.b16 %v998, %v997
    %v1014 = vpack.c.b16 %v1000, %v999
    %v1015 = vpack.c.b16 %v1002, %v1001
    %v1016 = vpack.c.b16 %v1004, %v1003
    %v1017 = vpack.c.b16 %v1006, %v1005
    %v1018 = vpack.c.b16 %v1008, %v1007
    %v1019 = vpack.c.b16 %v1010, %v1009
    %v1020 = vpack.c.b16 %v1012, %v1011
    %1029 = vmatprep.subr.bf16.mxu0 0
    %1030 = vmatpush1.bf16.msra.mxu0 %v1013
    %1031 = vmatprep.subr.bf16.mxu0 0
    %1032 = vmatpush1.bf16.msra.mxu0 %v1014
    %1033 = vmatprep.subr.bf16.mxu0 0
    %1034 = vmatpush1.bf16.msra.mxu0 %v1015
    %1035 = vmatprep.subr.bf16.mxu0 0
    %1036 = vmatpush1.bf16.msra.mxu0 %v1016
    %1037 = vmatprep.subr.bf16.mxu0 0
    %1038 = vmatpush1.bf16.msra.mxu0 %v1017
    %1039 = vmatprep.subr.bf16.mxu0 0
    %1040 = vmatpush1.bf16.msra.mxu0 %v1018
    %1041 = vmatprep.subr.bf16.mxu0 0
    %1042 = vmatpush1.bf16.msra.mxu0 %v1019
    %1043 = vmatprep.subr.bf16.mxu0 0
    %1044 = vmatpush1.bf16.msra.mxu0 %v1020
    %1045 = vmatprep.subr.bf16.mxu0 0
    %1046 = vmatpush1.bf16.msra.mxu0 0
    %1047 = vmatprep.subr.bf16.mxu0 0
    %1048 = vmatpush1.bf16.msra.mxu0 0
    %1049 = vmatprep.subr.bf16.mxu0 0
    %1050 = vmatpush1.bf16.msra.mxu0 0
    %1051 = vmatprep.subr.bf16.mxu0 0
    %1052 = vmatpush1.bf16.msra.mxu0 0
    %1053 = vmatprep.subr.bf16.mxu0 0
    %1054 = vmatpush1.bf16.msra.mxu0 0
    %1055 = vmatprep.subr.bf16.mxu0 0
    %1056 = vmatpush1.bf16.msra.mxu0 0
    %1057 = vmatprep.subr.bf16.mxu0 0
    %1058 = vmatpush1.bf16.msra.mxu0 0
    %1059 = vmatprep.subr.bf16.mxu0 0
    %1060 = vmatpush1.bf16.msra.mxu0 0
    %1061 = vmatprep.mubr.bf16.mxu0 0
    %1062 = vmatmul.mubr.bf16.gmra.mrb[0].mxu0 %v979
    %v1063 = vpop.f32.mrb[0].mxu0
    %v1064 = vadd.f32 0.0, %v1063
    %v1065 = vpop.f32.mrb[0].mxu0
    %v1066 = vpop.f32.mrb[0].mxu0
    %v1067 = vadd.f32 0.0, %v1066
    %v1068 = vpop.f32.mrb[0].mxu0
    %1069 = vdwg.mxu0
    %v1086 = vunpack.c.l.b16 %v943
    %v1087 = vunpack.c.l.b16 %v944
    %v1088 = vunpack.c.l.b16 %v945
    %v1089 = vunpack.c.l.b16 %v946
    %v1090 = vunpack.c.l.b16 %v947
    %v1091 = vunpack.c.l.b16 %v948
    %v1092 = vunpack.c.l.b16 %v949
    %v1093 = vunpack.c.l.b16 %v950
    %v1094 = vunpack.c.l.b16 %v951
    %v1095 = vunpack.c.l.b16 %v952
    %v1096 = vunpack.c.l.b16 %v953
    %v1097 = vunpack.c.l.b16 %v954
    %v1098 = vunpack.c.l.b16 %v955
    %v1099 = vunpack.c.l.b16 %v956
    %v1100 = vunpack.c.l.b16 %v957
    %v1101 = vunpack.c.l.b16 %v958
    %v1102 = vpack.c.b16 %v1087, %v1086
    %v1103 = vpack.c.b16 %v1089, %v1088
    %v1104 = vpack.c.b16 %v1091, %v1090
    %v1105 = vpack.c.b16 %v1093, %v1092
    %v1106 = vpack.c.b16 %v1095, %v1094
    %v1107 = vpack.c.b16 %v1097, %v1096
    %v1108 = vpack.c.b16 %v1099, %v1098
    %v1109 = vpack.c.b16 %v1101, %v1100
    %1118 = vmatprep.subr.bf16.mxu0 0
    %1119 = vmatpush1.bf16.msra.mxu0 %v1102
    %1120 = vmatprep.subr.bf16.mxu0 0
    %1121 = vmatpush1.bf16.msra.mxu0 %v1103
    %1122 = vmatprep.subr.bf16.mxu0 0
    %1123 = vmatpush1.bf16.msra.mxu0 %v1104
    %1124 = vmatprep.subr.bf16.mxu0 0
    %1125 = vmatpush1.bf16.msra.mxu0 %v1105
    %1126 = vmatprep.subr.bf16.mxu0 0
    %1127 = vmatpush1.bf16.msra.mxu0 %v1106
    %1128 = vmatprep.subr.bf16.mxu0 0
    %1129 = vmatpush1.bf16.msra.mxu0 %v1107
    %1130 = vmatprep.subr.bf16.mxu0 0
    %1131 = vmatpush1.bf16.msra.mxu0 %v1108
    %1132 = vmatprep.subr.bf16.mxu0 0
    %1133 = vmatpush1.bf16.msra.mxu0 %v1109
    %1134 = vmatprep.subr.bf16.mxu0 0
    %1135 = vmatpush1.bf16.msra.mxu0 0
    %1136 = vmatprep.subr.bf16.mxu0 0
    %1137 = vmatpush1.bf16.msra.mxu0 0
    %1138 = vmatprep.subr.bf16.mxu0 0
    %1139 = vmatpush1.bf16.msra.mxu0 0
    %1140 = vmatprep.subr.bf16.mxu0 0
    %1141 = vmatpush1.bf16.msra.mxu0 0
    %1142 = vmatprep.subr.bf16.mxu0 0
    %1143 = vmatpush1.bf16.msra.mxu0 0
    %1144 = vmatprep.subr.bf16.mxu0 0
    %1145 = vmatpush1.bf16.msra.mxu0 0
    %1146 = vmatprep.subr.bf16.mxu0 0
    %1147 = vmatpush1.bf16.msra.mxu0 0
    %1148 = vmatprep.subr.bf16.mxu0 0
    %1149 = vmatpush1.bf16.msra.mxu0 0
    %1150 = vmatprep.mubr.bf16.mxu0 0
    %1151 = vmatmul.mubr.bf16.gmra.mrb[0].mxu0 %v228
    %v1152 = vpop.f32.mrb[0].mxu0
    %v1153 = vadd.f32 %v1064, %v1152
    %v1154 = vpop.f32.mrb[0].mxu0
    %v1155 = vpop.f32.mrb[0].mxu0
    %v1156 = vadd.f32 %v1067, %v1155
    %v1157 = vpop.f32.mrb[0].mxu0
    %1158 = vdwg.mxu0
    %v1159 = vld [vmem:[#allocation6] sm:$0x1]
    %v1161 = vlaneseq
    %v1162 = vshrl.u32 %v1161, 7
    %v1163 = vsub.s32 0, %v1162
    %v1164 = vrot.slane %v1159, %v1163
    %v1166 = vadd.f32 %v1153, %v1164
    %v1167 = vadd.f32 %v1156, %v1164
    %v1168 = vmax.f32 %v1166, 0.0
    %v1169 = vmax.f32 %v1167, 0.0
    %v1170 = vpack.c.bf16 %v1169, %v1168
    %v1171 = vld [vmem:[#allocation7] sm:$0xf]
    %v1172 = vld [vmem:[#allocation7 + $0x4] sm:$0xf]
    %v1173 = vld [vmem:[#allocation7 + $0x8] sm:$0xf]
    %v1174 = vld [vmem:[#allocation7 + $0xc] sm:$0xf]
    %v1175 = vld [vmem:[#allocation7 + $0x10] sm:$0xf]
    %v1176 = vld [vmem:[#allocation7 + $0x14] sm:$0xf]
    %v1177 = vld [vmem:[#allocation7 + $0x18] sm:$0xf]
    %v1178 = vld [vmem:[#allocation7 + $0x1c] sm:$0xf]
    %v1179 = vld [vmem:[#allocation7 + $0x20] sm:$0xf]
    %v1180 = vld [vmem:[#allocation7 + $0x24] sm:$0xf]
    %v1181 = vld [vmem:[#allocation7 + $0x28] sm:$0xf]
    %v1182 = vld [vmem:[#allocation7 + $0x2c] sm:$0xf]
    %v1183 = vld [vmem:[#allocation7 + $0x30] sm:$0xf]
    %v1184 = vld [vmem:[#allocation7 + $0x34] sm:$0xf]
    %v1185 = vld [vmem:[#allocation7 + $0x38] sm:$0xf]
    %v1186 = vld [vmem:[#allocation7 + $0x3c] sm:$0xf]
    %v1187 = vld [vmem:[#allocation9] sm:$0x1]
    %v1189 = vlaneseq
    %v1190 = vshrl.u32 %v1189, 7
    %v1191 = vsub.s32 0, %v1190
    %v1192 = vrot.slane %v1187, %v1191
    %v1210 = vunpack.c.l.b16 %v1171
    %v1211 = vunpack.c.l.b16 %v1172
    %v1212 = vunpack.c.l.b16 %v1173
    %v1213 = vunpack.c.l.b16 %v1174
    %v1214 = vunpack.c.l.b16 %v1175
    %v1215 = vunpack.c.l.b16 %v1176
    %v1216 = vunpack.c.l.b16 %v1177
    %v1217 = vunpack.c.l.b16 %v1178
    %v1218 = vunpack.c.l.b16 %v1179
    %v1219 = vunpack.c.l.b16 %v1180
    %v1220 = vunpack.c.l.b16 %v1181
    %v1221 = vunpack.c.l.b16 %v1182
    %v1222 = vunpack.c.l.b16 %v1183
    %v1223 = vunpack.c.l.b16 %v1184
    %v1224 = vunpack.c.l.b16 %v1185
    %v1225 = vunpack.c.l.b16 %v1186
    %v1226 = vpack.c.b16 %v1211, %v1210
    %v1227 = vpack.c.b16 %v1213, %v1212
    %v1228 = vpack.c.b16 %v1215, %v1214
    %v1229 = vpack.c.b16 %v1217, %v1216
    %v1230 = vpack.c.b16 %v1219, %v1218
    %v1231 = vpack.c.b16 %v1221, %v1220
    %v1232 = vpack.c.b16 %v1223, %v1222
    %v1233 = vpack.c.b16 %v1225, %v1224
    %1242 = vmatprep.subr.bf16.mxu0 0
    %1243 = vmatpush1.bf16.msra.mxu0 %v1226
    %1244 = vmatprep.subr.bf16.mxu0 0
    %1245 = vmatpush1.bf16.msra.mxu0 %v1227
    %1246 = vmatprep.subr.bf16.mxu0 0
    %1247 = vmatpush1.bf16.msra.mxu0 %v1228
    %1248 = vmatprep.subr.bf16.mxu0 0
    %1249 = vmatpush1.bf16.msra.mxu0 %v1229
    %1250 = vmatprep.subr.bf16.mxu0 0
    %1251 = vmatpush1.bf16.msra.mxu0 %v1230
    %1252 = vmatprep.subr.bf16.mxu0 0
    %1253 = vmatpush1.bf16.msra.mxu0 %v1231
    %1254 = vmatprep.subr.bf16.mxu0 0
    %1255 = vmatpush1.bf16.msra.mxu0 %v1232
    %1256 = vmatprep.subr.bf16.mxu0 0
    %1257 = vmatpush1.bf16.msra.mxu0 %v1233
    %1258 = vmatprep.subr.bf16.mxu0 0
    %1259 = vmatpush1.bf16.msra.mxu0 0
    %1260 = vmatprep.subr.bf16.mxu0 0
    %1261 = vmatpush1.bf16.msra.mxu0 0
    %1262 = vmatprep.subr.bf16.mxu0 0
    %1263 = vmatpush1.bf16.msra.mxu0 0
    %1264 = vmatprep.subr.bf16.mxu0 0
    %1265 = vmatpush1.bf16.msra.mxu0 0
    %1266 = vmatprep.subr.bf16.mxu0 0
    %1267 = vmatpush1.bf16.msra.mxu0 0
    %1268 = vmatprep.subr.bf16.mxu0 0
    %1269 = vmatpush1.bf16.msra.mxu0 0
    %1270 = vmatprep.subr.bf16.mxu0 0
    %1271 = vmatpush1.bf16.msra.mxu0 0
    %1272 = vmatprep.subr.bf16.mxu0 0
    %1273 = vmatpush1.bf16.msra.mxu0 0
    %1274 = vmatprep.mubr.bf16.mxu0 0
    %1275 = vmatmul.mubr.bf16.gmra.mrb[0].mxu0 %v1170
    %v1276 = vpop.f32.mrb[0].mxu0
    %v1277 = vadd.f32 %v1192, %v1276
    %v1278 = vpop.f32.mrb[0].mxu0
    %v1279 = vpop.f32.mrb[0].mxu0
    %v1280 = vadd.f32 %v1192, %v1279
    %v1281 = vpop.f32.mrb[0].mxu0
    %1282 = vdwg.mxu0
    %v1283 = vmax.f32 %v1277, 0.0
    %v1284 = vmax.f32 %v1280, 0.0
    %v1287 = vunpack.c.l.b16 %v941
    %v1288 = vunpack.c.l.b16 %v942
    %v1289 = vpack.c.b16 %v1288, %v1287
    %1291 = vmatprep.subr.bf16.mxu0 0
    %1292 = vmatpush1.bf16.msra.mxu0 %v1013
    %1293 = vmatprep.subr.bf16.mxu0 0
    %1294 = vmatpush1.bf16.msra.mxu0 %v1014
    %1295 = vmatprep.subr.bf16.mxu0 0
    %1296 = vmatpush1.bf16.msra.mxu0 %v1015
    %1297 = vmatprep.subr.bf16.mxu0 0
    %1298 = vmatpush1.bf16.msra.mxu0 %v1016
    %1299 = vmatprep.subr.bf16.mxu0 0
    %1300 = vmatpush1.bf16.msra.mxu0 %v1017
    %1301 = vmatprep.subr.bf16.mxu0 0
    %1302 = vmatpush1.bf16.msra.mxu0 %v1018
    %1303 = vmatprep.subr.bf16.mxu0 0
    %1304 = vmatpush1.bf16.msra.mxu0 %v1019
    %1305 = vmatprep.subr.bf16.mxu0 0
    %1306 = vmatpush1.bf16.msra.mxu0 %v1020
    %1307 = vmatprep.subr.bf16.mxu0 0
    %1308 = vmatpush1.bf16.msra.mxu0 0
    %1309 = vmatprep.subr.bf16.mxu0 0
    %1310 = vmatpush1.bf16.msra.mxu0 0
    %1311 = vmatprep.subr.bf16.mxu0 0
    %1312 = vmatpush1.bf16.msra.mxu0 0
    %1313 = vmatprep.subr.bf16.mxu0 0
    %1314 = vmatpush1.bf16.msra.mxu0 0
    %1315 = vmatprep.subr.bf16.mxu0 0
    %1316 = vmatpush1.bf16.msra.mxu0 0
    %1317 = vmatprep.subr.bf16.mxu0 0
    %1318 = vmatpush1.bf16.msra.mxu0 0
    %1319 = vmatprep.subr.bf16.mxu0 0
    %1320 = vmatpush1.bf16.msra.mxu0 0
    %1321 = vmatprep.subr.bf16.mxu0 0
    %1322 = vmatpush1.bf16.msra.mxu0 0
    %1323 = vmatprep.mubr.bf16.mxu0 0
    %1324 = vmatmul.mubr.bf16.gmra.mrb[0].mxu0 %v1289
    %v1325 = vpop.f32.mrb[0].mxu0
    %v1326 = vadd.f32 0.0, %v1325
    %v1327 = vpop.f32.mrb[0].mxu0
    %v1328 = vpop.f32.mrb[0].mxu0
    %v1329 = vadd.f32 0.0, %v1328
    %v1330 = vpop.f32.mrb[0].mxu0
    %1331 = vdwg.mxu0
    %1332 = vmatprep.subr.bf16.mxu0 0
    %1333 = vmatpush1.bf16.msra.mxu0 %v1102
    %1334 = vmatprep.subr.bf16.mxu0 0
    %1335 = vmatpush1.bf16.msra.mxu0 %v1103
    %1336 = vmatprep.subr.bf16.mxu0 0
    %1337 = vmatpush1.bf16.msra.mxu0 %v1104
    %1338 = vmatprep.subr.bf16.mxu0 0
    %1339 = vmatpush1.bf16.msra.mxu0 %v1105
    %1340 = vmatprep.subr.bf16.mxu0 0
    %1341 = vmatpush1.bf16.msra.mxu0 %v1106
    %1342 = vmatprep.subr.bf16.mxu0 0
    %1343 = vmatpush1.bf16.msra.mxu0 %v1107
    %1344 = vmatprep.subr.bf16.mxu0 0
    %1345 = vmatpush1.bf16.msra.mxu0 %v1108
    %1346 = vmatprep.subr.bf16.mxu0 0
    %1347 = vmatpush1.bf16.msra.mxu0 %v1109
    %1348 = vmatprep.subr.bf16.mxu0 0
    %1349 = vmatpush1.bf16.msra.mxu0 0
    %1350 = vmatprep.subr.bf16.mxu0 0
    %1351 = vmatpush1.bf16.msra.mxu0 0
    %1352 = vmatprep.subr.bf16.mxu0 0
    %1353 = vmatpush1.bf16.msra.mxu0 0
    %1354 = vmatprep.subr.bf16.mxu0 0
    %1355 = vmatpush1.bf16.msra.mxu0 0
    %1356 = vmatprep.subr.bf16.mxu0 0
    %1357 = vmatpush1.bf16.msra.mxu0 0
    %1358 = vmatprep.subr.bf16.mxu0 0
    %1359 = vmatpush1.bf16.msra.mxu0 0
    %1360 = vmatprep.subr.bf16.mxu0 0
    %1361 = vmatpush1.bf16.msra.mxu0 0
    %1362 = vmatprep.subr.bf16.mxu0 0
    %1363 = vmatpush1.bf16.msra.mxu0 0
    %1364 = vmatprep.mubr.bf16.mxu0 0
    %1365 = vmatmul.mubr.bf16.gmra.mrb[0].mxu0 %v448
    %v1366 = vpop.f32.mrb[0].mxu0
    %v1367 = vadd.f32 %v1326, %v1366
    %v1368 = vpop.f32.mrb[0].mxu0
    %v1369 = vpop.f32.mrb[0].mxu0
    %v1370 = vadd.f32 %v1329, %v1369
    %v1371 = vpop.f32.mrb[0].mxu0
    %1372 = vdwg.mxu0
    %v1373 = vadd.f32 %v1367, %v1164
    %v1374 = vadd.f32 %v1370, %v1164
    %v1375 = vmax.f32 %v1373, 0.0
    %v1376 = vmax.f32 %v1374, 0.0
    %v1377 = vpack.c.bf16 %v1376, %v1375
    %1378 = vmatprep.subr.bf16.mxu0 0
    %1379 = vmatpush1.bf16.msra.mxu0 %v1226
    %1380 = vmatprep.subr.bf16.mxu0 0
    %1381 = vmatpush1.bf16.msra.mxu0 %v1227
    %1382 = vmatprep.subr.bf16.mxu0 0
    %1383 = vmatpush1.bf16.msra.mxu0 %v1228
    %1384 = vmatprep.subr.bf16.mxu0 0
    %1385 = vmatpush1.bf16.msra.mxu0 %v1229
    %1386 = vmatprep.subr.bf16.mxu0 0
    %1387 = vmatpush1.bf16.msra.mxu0 %v1230
    %1388 = vmatprep.subr.bf16.mxu0 0
    %1389 = vmatpush1.bf16.msra.mxu0 %v1231
    %1390 = vmatprep.subr.bf16.mxu0 0
    %1391 = vmatpush1.bf16.msra.mxu0 %v1232
    %1392 = vmatprep.subr.bf16.mxu0 0
    %1393 = vmatpush1.bf16.msra.mxu0 %v1233
    %1394 = vmatprep.subr.bf16.mxu0 0
    %1395 = vmatpush1.bf16.msra.mxu0 0
    %1396 = vmatprep.subr.bf16.mxu0 0
    %1397 = vmatpush1.bf16.msra.mxu0 0
    %1398 = vmatprep.subr.bf16.mxu0 0
    %1399 = vmatpush1.bf16.msra.mxu0 0
    %1400 = vmatprep.subr.bf16.mxu0 0
    %1401 = vmatpush1.bf16.msra.mxu0 0
    %1402 = vmatprep.subr.bf16.mxu0 0
    %1403 = vmatpush1.bf16.msra.mxu0 0
    %1404 = vmatprep.subr.bf16.mxu0 0
    %1405 = vmatpush1.bf16.msra.mxu0 0
    %1406 = vmatprep.subr.bf16.mxu0 0
    %1407 = vmatpush1.bf16.msra.mxu0 0
    %1408 = vmatprep.subr.bf16.mxu0 0
    %1409 = vmatpush1.bf16.msra.mxu0 0
    %1410 = vmatprep.mubr.bf16.mxu0 0
    %1411 = vmatmul.mubr.bf16.gmra.mrb[0].mxu0 %v1377
    %v1412 = vpop.f32.mrb[0].mxu0
    %v1413 = vadd.f32 %v1192, %v1412
    %v1414 = vpop.f32.mrb[0].mxu0
    %v1415 = vpop.f32.mrb[0].mxu0
    %v1416 = vadd.f32 %v1192, %v1415
    %v1417 = vpop.f32.mrb[0].mxu0
    %1418 = vdwg.mxu0
    %v1419 = vmax.f32 %v1413, 0.0
    %v1420 = vmax.f32 %v1416, 0.0
    %v1421 = vrot.slane %v1283, 4
    %v1422 = vadd.f32 %v1283, %v1421
    %v1423 = vrot.slane %v1422, 2
    %v1424 = vadd.f32 %v1422, %v1423
    %v1425 = vrot.slane %v1424, 1
    %v1426 = vadd.f32 %v1424, %v1425
    %v1427 = vrot.slane %v1284, 4
    %v1428 = vadd.f32 %v1284, %v1427
    %v1429 = vrot.slane %v1428, 2
    %v1430 = vadd.f32 %v1428, %v1429
    %v1431 = vrot.slane %v1430, 1
    %v1432 = vadd.f32 %v1430, %v1431
    %v1433 = vpack.c.bf16 %v1426, %v1426
    %v1434 = vpack.c.bf16 %v1432, %v1432
    %v1435 = vrot.slane %v1419, 4
    %v1436 = vadd.f32 %v1419, %v1435
    %v1437 = vrot.slane %v1436, 2
    %v1438 = vadd.f32 %v1436, %v1437
    %v1439 = vrot.slane %v1438, 1
    %v1440 = vadd.f32 %v1438, %v1439
    %v1441 = vrot.slane %v1420, 4
    %v1442 = vadd.f32 %v1420, %v1441
    %v1443 = vrot.slane %v1442, 2
    %v1444 = vadd.f32 %v1442, %v1443
    %v1445 = vrot.slane %v1444, 1
    %v1446 = vadd.f32 %v1444, %v1445
    %v1447 = vpack.c.bf16 %v1440, %v1440
    %v1448 = vpack.c.bf16 %v1446, %v1446
    %v1449 = vld [vmem:[#allocation10] sm:$0xf]
    %v1450 = vld [vmem:[#allocation10 + $0x4] sm:$0xf]
    %v1451 = vld [vmem:[#allocation10 + $0x8] sm:$0xf]
    %v1452 = vld [vmem:[#allocation10 + $0xc] sm:$0xf]
    %v1453 = vld [vmem:[#allocation10 + $0x10] sm:$0xf]
    %v1454 = vld [vmem:[#allocation10 + $0x14] sm:$0xf]
    %v1455 = vld [vmem:[#allocation10 + $0x18] sm:$0xf]
    %v1456 = vld [vmem:[#allocation10 + $0x1c] sm:$0xf]
    %v1457 = vld [vmem:[#allocation10 + $0x20] sm:$0xf]
    %v1458 = vld [vmem:[#allocation10 + $0x24] sm:$0xf]
    %v1459 = vld [vmem:[#allocation10 + $0x28] sm:$0xf]
    %v1460 = vld [vmem:[#allocation10 + $0x2c] sm:$0xf]
    %v1461 = vld [vmem:[#allocation10 + $0x30] sm:$0xf]
    %v1462 = vld [vmem:[#allocation10 + $0x34] sm:$0xf]
    %v1463 = vld [vmem:[#allocation10 + $0x38] sm:$0xf]
    %v1464 = vld [vmem:[#allocation10 + $0x3c] sm:$0xf]
    %v1465 = vld [vmem:[#allocation12] sm:$0xf]
    %v1466 = vld [vmem:[#allocation12 + $0x4] sm:$0xf]
    %v1467 = vld [vmem:[#allocation12 + $0x8] sm:$0xf]
    %v1468 = vld [vmem:[#allocation12 + $0xc] sm:$0xf]
    %v1469 = vld [vmem:[#allocation12 + $0x10] sm:$0xf]
    %v1470 = vld [vmem:[#allocation12 + $0x14] sm:$0xf]
    %v1471 = vld [vmem:[#allocation12 + $0x18] sm:$0xf]
    %v1472 = vld [vmem:[#allocation12 + $0x1c] sm:$0xf]
    %v1473 = vld [vmem:[#allocation12 + $0x20] sm:$0xf]
    %v1474 = vld [vmem:[#allocation12 + $0x24] sm:$0xf]
    %v1475 = vld [vmem:[#allocation12 + $0x28] sm:$0xf]
    %v1476 = vld [vmem:[#allocation12 + $0x2c] sm:$0xf]
    %v1477 = vld [vmem:[#allocation12 + $0x30] sm:$0xf]
    %v1478 = vld [vmem:[#allocation12 + $0x34] sm:$0xf]
    %v1479 = vld [vmem:[#allocation12 + $0x38] sm:$0xf]
    %v1480 = vld [vmem:[#allocation12 + $0x3c] sm:$0xf]
    %v1483 = vunpack.c.l.b16 %v1447
    %v1484 = vunpack.c.l.b16 %v1448
    %vm1485 = vcmask 1041409
    %v1486 = vsel %vm1485, %v1484, %v1483
    %v1487 = vpack.c.b16 %v1486, %v1486
    %v1505 = vunpack.c.l.b16 %v1465
    %v1506 = vunpack.c.l.b16 %v1466
    %v1507 = vunpack.c.l.b16 %v1467
    %v1508 = vunpack.c.l.b16 %v1468
    %v1509 = vunpack.c.l.b16 %v1469
    %v1510 = vunpack.c.l.b16 %v1470
    %v1511 = vunpack.c.l.b16 %v1471
    %v1512 = vunpack.c.l.b16 %v1472
    %v1513 = vunpack.c.l.b16 %v1473
    %v1514 = vunpack.c.l.b16 %v1474
    %v1515 = vunpack.c.l.b16 %v1475
    %v1516 = vunpack.c.l.b16 %v1476
    %v1517 = vunpack.c.l.b16 %v1477
    %v1518 = vunpack.c.l.b16 %v1478
    %v1519 = vunpack.c.l.b16 %v1479
    %v1520 = vunpack.c.l.b16 %v1480
    %v1521 = vpack.c.b16 %v1506, %v1505
    %v1522 = vpack.c.b16 %v1508, %v1507
    %v1523 = vpack.c.b16 %v1510, %v1509
    %v1524 = vpack.c.b16 %v1512, %v1511
    %v1525 = vpack.c.b16 %v1514, %v1513
    %v1526 = vpack.c.b16 %v1516, %v1515
    %v1527 = vpack.c.b16 %v1518, %v1517
    %v1528 = vpack.c.b16 %v1520, %v1519
    %1537 = vmatprep.subr.bf16.mxu0 0
    %1538 = vmatpush1.bf16.msra.mxu0 %v1521
    %1539 = vmatprep.subr.bf16.mxu0 0
    %1540 = vmatpush1.bf16.msra.mxu0 %v1522
    %1541 = vmatprep.subr.bf16.mxu0 0
    %1542 = vmatpush1.bf16.msra.mxu0 %v1523
    %1543 = vmatprep.subr.bf16.mxu0 0
    %1544 = vmatpush1.bf16.msra.mxu0 %v1524
    %1545 = vmatprep.subr.bf16.mxu0 0
    %1546 = vmatpush1.bf16.msra.mxu0 %v1525
    %1547 = vmatprep.subr.bf16.mxu0 0
    %1548 = vmatpush1.bf16.msra.mxu0 %v1526
    %1549 = vmatprep.subr.bf16.mxu0 0
    %1550 = vmatpush1.bf16.msra.mxu0 %v1527
    %1551 = vmatprep.subr.bf16.mxu0 0
    %1552 = vmatpush1.bf16.msra.mxu0 %v1528
    %1553 = vmatprep.subr.bf16.mxu0 0
    %1554 = vmatpush1.bf16.msra.mxu0 0
    %1555 = vmatprep.subr.bf16.mxu0 0
    %1556 = vmatpush1.bf16.msra.mxu0 0
    %1557 = vmatprep.subr.bf16.mxu0 0
    %1558 = vmatpush1.bf16.msra.mxu0 0
    %1559 = vmatprep.subr.bf16.mxu0 0
    %1560 = vmatpush1.bf16.msra.mxu0 0
    %1561 = vmatprep.subr.bf16.mxu0 0
    %1562 = vmatpush1.bf16.msra.mxu0 0
    %1563 = vmatprep.subr.bf16.mxu0 0
    %1564 = vmatpush1.bf16.msra.mxu0 0
    %1565 = vmatprep.subr.bf16.mxu0 0
    %1566 = vmatpush1.bf16.msra.mxu0 0
    %1567 = vmatprep.subr.bf16.mxu0 0
    %1568 = vmatpush1.bf16.msra.mxu0 0
    %1569 = vmatprep.mubr.bf16.mxu0 0
    %1570 = vmatmul.mubr.bf16.gmra.mrb[0].mxu0 %v1487
    %v1571 = vpop.f32.mrb[0].mxu0
    %v1572 = vadd.f32 0.0, %v1571
    %v1573 = vpop.f32.mrb[0].mxu0
    %v1574 = vpop.f32.mrb[0].mxu0
    %v1575 = vpop.f32.mrb[0].mxu0
    %1576 = vdwg.mxu0
    %v1579 = vunpack.c.l.b16 %v1433
    %v1580 = vunpack.c.l.b16 %v1434
    %v1581 = vsel %vm1485, %v1580, %v1579
    %v1582 = vpack.c.b16 %v1581, %v1581
    %v1600 = vunpack.c.l.b16 %v1449
    %v1601 = vunpack.c.l.b16 %v1450
    %v1602 = vunpack.c.l.b16 %v1451
    %v1603 = vunpack.c.l.b16 %v1452
    %v1604 = vunpack.c.l.b16 %v1453
    %v1605 = vunpack.c.l.b16 %v1454
    %v1606 = vunpack.c.l.b16 %v1455
    %v1607 = vunpack.c.l.b16 %v1456
    %v1608 = vunpack.c.l.b16 %v1457
    %v1609 = vunpack.c.l.b16 %v1458
    %v1610 = vunpack.c.l.b16 %v1459
    %v1611 = vunpack.c.l.b16 %v1460
    %v1612 = vunpack.c.l.b16 %v1461
    %v1613 = vunpack.c.l.b16 %v1462
    %v1614 = vunpack.c.l.b16 %v1463
    %v1615 = vunpack.c.l.b16 %v1464
    %v1616 = vpack.c.b16 %v1601, %v1600
    %v1617 = vpack.c.b16 %v1603, %v1602
    %v1618 = vpack.c.b16 %v1605, %v1604
    %v1619 = vpack.c.b16 %v1607, %v1606
    %v1620 = vpack.c.b16 %v1609, %v1608
    %v1621 = vpack.c.b16 %v1611, %v1610
    %v1622 = vpack.c.b16 %v1613, %v1612
    %v1623 = vpack.c.b16 %v1615, %v1614
    %1632 = vmatprep.subr.bf16.mxu0 0
    %1633 = vmatpush1.bf16.msra.mxu0 %v1616
    %1634 = vmatprep.subr.bf16.mxu0 0
    %1635 = vmatpush1.bf16.msra.mxu0 %v1617
    %1636 = vmatprep.subr.bf16.mxu0 0
    %1637 = vmatpush1.bf16.msra.mxu0 %v1618
    %1638 = vmatprep.subr.bf16.mxu0 0
    %1639 = vmatpush1.bf16.msra.mxu0 %v1619
    %1640 = vmatprep.subr.bf16.mxu0 0
    %1641 = vmatpush1.bf16.msra.mxu0 %v1620
    %1642 = vmatprep.subr.bf16.mxu0 0
    %1643 = vmatpush1.bf16.msra.mxu0 %v1621
    %1644 = vmatprep.subr.bf16.mxu0 0
    %1645 = vmatpush1.bf16.msra.mxu0 %v1622
    %1646 = vmatprep.subr.bf16.mxu0 0
    %1647 = vmatpush1.bf16.msra.mxu0 %v1623
    %1648 = vmatprep.subr.bf16.mxu0 0
    %1649 = vmatpush1.bf16.msra.mxu0 0
    %1650 = vmatprep.subr.bf16.mxu0 0
    %1651 = vmatpush1.bf16.msra.mxu0 0
    %1652 = vmatprep.subr.bf16.mxu0 0
    %1653 = vmatpush1.bf16.msra.mxu0 0
    %1654 = vmatprep.subr.bf16.mxu0 0
    %1655 = vmatpush1.bf16.msra.mxu0 0
    %1656 = vmatprep.subr.bf16.mxu0 0
    %1657 = vmatpush1.bf16.msra.mxu0 0
    %1658 = vmatprep.subr.bf16.mxu0 0
    %1659 = vmatpush1.bf16.msra.mxu0 0
    %1660 = vmatprep.subr.bf16.mxu0 0
    %1661 = vmatpush1.bf16.msra.mxu0 0
    %1662 = vmatprep.subr.bf16.mxu0 0
    %1663 = vmatpush1.bf16.msra.mxu0 0
    %1664 = vmatprep.mubr.bf16.mxu0 0
    %1665 = vmatmul.mubr.bf16.gmra.mrb[0].mxu0 %v1582
    %v1666 = vpop.f32.mrb[0].mxu0
    %v1667 = vadd.f32 %v1572, %v1666
    %v1668 = vpop.f32.mrb[0].mxu0
    %v1669 = vpop.f32.mrb[0].mxu0
    %v1670 = vpop.f32.mrb[0].mxu0
    %1671 = vdwg.mxu0
    %v1672 = vld [vmem:[#allocation13] sm:$0x1]
    %v1674 = vlaneseq
    %v1675 = vshrl.u32 %v1674, 7
    %v1676 = vsub.s32 0, %v1675
    %v1677 = vrot.slane %v1672, %v1676
    %v1679 = vadd.f32 %v1667, %v1677
    %v1680 = vmax.f32 %v1679, 0.0
    %v1681 = vpack.c.bf16 %v1680, %v1680
    %v1682 = vld [vmem:[#allocation15] sm:$0xf]
    %v1683 = vld [vmem:[#allocation15 + $0x4] sm:$0xf]
    %v1684 = vld [vmem:[#allocation15 + $0x8] sm:$0xf]
    %v1685 = vld [vmem:[#allocation15 + $0xc] sm:$0xf]
    %v1686 = vld [vmem:[#allocation15 + $0x10] sm:$0xf]
    %v1687 = vld [vmem:[#allocation15 + $0x14] sm:$0xf]
    %v1688 = vld [vmem:[#allocation15 + $0x18] sm:$0xf]
    %v1689 = vld [vmem:[#allocation15 + $0x1c] sm:$0xf]
    %v1690 = vld [vmem:[#allocation15 + $0x20] sm:$0xf]
    %v1691 = vld [vmem:[#allocation15 + $0x24] sm:$0xf]
    %v1692 = vld [vmem:[#allocation15 + $0x28] sm:$0xf]
    %v1693 = vld [vmem:[#allocation15 + $0x2c] sm:$0xf]
    %v1694 = vld [vmem:[#allocation15 + $0x30] sm:$0xf]
    %v1695 = vld [vmem:[#allocation15 + $0x34] sm:$0xf]
    %v1696 = vld [vmem:[#allocation15 + $0x38] sm:$0xf]
    %v1697 = vld [vmem:[#allocation15 + $0x3c] sm:$0xf]
    %v1698 = vld [vmem:[#allocation16] sm:$0x1]
    %v1700 = vlaneseq
    %v1701 = vshrl.u32 %v1700, 7
    %v1702 = vsub.s32 0, %v1701
    %v1703 = vrot.slane %v1698, %v1702
    %v1721 = vunpack.c.l.b16 %v1682
    %v1722 = vunpack.c.l.b16 %v1683
    %v1723 = vunpack.c.l.b16 %v1684
    %v1724 = vunpack.c.l.b16 %v1685
    %v1725 = vunpack.c.l.b16 %v1686
    %v1726 = vunpack.c.l.b16 %v1687
    %v1727 = vunpack.c.l.b16 %v1688
    %v1728 = vunpack.c.l.b16 %v1689
    %v1729 = vunpack.c.l.b16 %v1690
    %v1730 = vunpack.c.l.b16 %v1691
    %v1731 = vunpack.c.l.b16 %v1692
    %v1732 = vunpack.c.l.b16 %v1693
    %v1733 = vunpack.c.l.b16 %v1694
    %v1734 = vunpack.c.l.b16 %v1695
    %v1735 = vunpack.c.l.b16 %v1696
    %v1736 = vunpack.c.l.b16 %v1697
    %v1737 = vpack.c.b16 %v1722, %v1721
    %v1738 = vpack.c.b16 %v1724, %v1723
    %v1739 = vpack.c.b16 %v1726, %v1725
    %v1740 = vpack.c.b16 %v1728, %v1727
    %v1741 = vpack.c.b16 %v1730, %v1729
    %v1742 = vpack.c.b16 %v1732, %v1731
    %v1743 = vpack.c.b16 %v1734, %v1733
    %v1744 = vpack.c.b16 %v1736, %v1735
    %1753 = vmatprep.subr.bf16.mxu0 0
    %1754 = vmatpush1.bf16.msra.mxu0 %v1737
    %1755 = vmatprep.subr.bf16.mxu0 0
    %1756 = vmatpush1.bf16.msra.mxu0 %v1738
    %1757 = vmatprep.subr.bf16.mxu0 0
    %1758 = vmatpush1.bf16.msra.mxu0 %v1739
    %1759 = vmatprep.subr.bf16.mxu0 0
    %1760 = vmatpush1.bf16.msra.mxu0 %v1740
    %1761 = vmatprep.subr.bf16.mxu0 0
    %1762 = vmatpush1.bf16.msra.mxu0 %v1741
    %1763 = vmatprep.subr.bf16.mxu0 0
    %1764 = vmatpush1.bf16.msra.mxu0 %v1742
    %1765 = vmatprep.subr.bf16.mxu0 0
    %1766 = vmatpush1.bf16.msra.mxu0 %v1743
    %1767 = vmatprep.subr.bf16.mxu0 0
    %1768 = vmatpush1.bf16.msra.mxu0 %v1744
    %1769 = vmatprep.subr.bf16.mxu0 0
    %1770 = vmatpush1.bf16.msra.mxu0 0
    %1771 = vmatprep.subr.bf16.mxu0 0
    %1772 = vmatpush1.bf16.msra.mxu0 0
    %1773 = vmatprep.subr.bf16.mxu0 0
    %1774 = vmatpush1.bf16.msra.mxu0 0
    %1775 = vmatprep.subr.bf16.mxu0 0
    %1776 = vmatpush1.bf16.msra.mxu0 0
    %1777 = vmatprep.subr.bf16.mxu0 0
    %1778 = vmatpush1.bf16.msra.mxu0 0
    %1779 = vmatprep.subr.bf16.mxu0 0
    %1780 = vmatpush1.bf16.msra.mxu0 0
    %1781 = vmatprep.subr.bf16.mxu0 0
    %1782 = vmatpush1.bf16.msra.mxu0 0
    %1783 = vmatprep.subr.bf16.mxu0 0
    %1784 = vmatpush1.bf16.msra.mxu0 0
    %1785 = vmatprep.mubr.bf16.mxu0 0
    %1786 = vmatmul.mubr.bf16.gmra.mrb[0].mxu0 %v1681
    %v1787 = vpop.f32.mrb[0].mxu0
    %v1788 = vadd.f32 %v1703, %v1787
    %v1789 = vpop.f32.mrb[0].mxu0
    %v1790 = vpop.f32.mrb[0].mxu0
    %v1791 = vpop.f32.mrb[0].mxu0
    %1792 = vdwg.mxu0
    %v1793 = vmax.f32 %v1788, 0.0
    %v1794 = vpack.c.bf16 %v1793, %v1793
    %v1795 = vld [vmem:[%s16] sm:$0xf]
    %v1796 = vld [vmem:[%s16 + $0x4] sm:$0xf]
    %v1797 = vld [vmem:[%s16 + $0x8] sm:$0xf]
    %v1798 = vld [vmem:[%s16 + $0xc] sm:$0xf]
    %v1799 = vld [vmem:[%s16 + $0x10] sm:$0xf]
    %v1800 = vld [vmem:[%s16 + $0x14] sm:$0xf]
    %v1801 = vld [vmem:[%s16 + $0x18] sm:$0xf]
    %v1802 = vld [vmem:[%s16 + $0x1c] sm:$0xf]
    %v1803 = vld [vmem:[%s16 + $0x20] sm:$0xf]
    %v1804 = vld [vmem:[%s16 + $0x24] sm:$0xf]
    %v1805 = vld [vmem:[%s16 + $0x28] sm:$0xf]
    %v1806 = vld [vmem:[%s16 + $0x2c] sm:$0xf]
    %v1807 = vld [vmem:[%s16 + $0x30] sm:$0xf]
    %v1808 = vld [vmem:[%s16 + $0x34] sm:$0xf]
    %v1809 = vld [vmem:[%s16 + $0x38] sm:$0xf]
    %v1810 = vld [vmem:[%s16 + $0x3c] sm:$0xf]
    %v1811 = vld [vmem:[#allocation18] sm:$0x1]
    %v1813 = vlaneseq
    %v1814 = vshrl.u32 %v1813, 7
    %v1815 = vsub.s32 0, %v1814
    %v1816 = vrot.slane %v1811, %v1815
    %v1834 = vunpack.c.l.b16 %v1795
    %v1835 = vunpack.c.l.b16 %v1796
    %v1836 = vunpack.c.l.b16 %v1797
    %v1837 = vunpack.c.l.b16 %v1798
    %v1838 = vunpack.c.l.b16 %v1799
    %v1839 = vunpack.c.l.b16 %v1800
    %v1840 = vunpack.c.l.b16 %v1801
    %v1841 = vunpack.c.l.b16 %v1802
    %v1842 = vunpack.c.l.b16 %v1803
    %v1843 = vunpack.c.l.b16 %v1804
    %v1844 = vunpack.c.l.b16 %v1805
    %v1845 = vunpack.c.l.b16 %v1806
    %v1846 = vunpack.c.l.b16 %v1807
    %v1847 = vunpack.c.l.b16 %v1808
    %v1848 = vunpack.c.l.b16 %v1809
    %v1849 = vunpack.c.l.b16 %v1810
    %v1850 = vpack.c.b16 %v1835, %v1834
    %v1851 = vpack.c.b16 %v1837, %v1836
    %v1852 = vpack.c.b16 %v1839, %v1838
    %v1853 = vpack.c.b16 %v1841, %v1840
    %v1854 = vpack.c.b16 %v1843, %v1842
    %v1855 = vpack.c.b16 %v1845, %v1844
    %v1856 = vpack.c.b16 %v1847, %v1846
    %v1857 = vpack.c.b16 %v1849, %v1848
    %1866 = vmatprep.subr.bf16.mxu0 0
    %1867 = vmatpush1.bf16.msra.mxu0 %v1850
    %1868 = vmatprep.subr.bf16.mxu0 0
    %1869 = vmatpush1.bf16.msra.mxu0 %v1851
    %1870 = vmatprep.subr.bf16.mxu0 0
    %1871 = vmatpush1.bf16.msra.mxu0 %v1852
    %1872 = vmatprep.subr.bf16.mxu0 0
    %1873 = vmatpush1.bf16.msra.mxu0 %v1853
    %1874 = vmatprep.subr.bf16.mxu0 0
    %1875 = vmatpush1.bf16.msra.mxu0 %v1854
    %1876 = vmatprep.subr.bf16.mxu0 0
    %1877 = vmatpush1.bf16.msra.mxu0 %v1855
    %1878 = vmatprep.subr.bf16.mxu0 0
    %1879 = vmatpush1.bf16.msra.mxu0 %v1856
    %1880 = vmatprep.subr.bf16.mxu0 0
    %1881 = vmatpush1.bf16.msra.mxu0 %v1857
    %1882 = vmatprep.subr.bf16.mxu0 0
    %1883 = vmatpush1.bf16.msra.mxu0 0
    %1884 = vmatprep.subr.bf16.mxu0 0
    %1885 = vmatpush1.bf16.msra.mxu0 0
    %1886 = vmatprep.subr.bf16.mxu0 0
    %1887 = vmatpush1.bf16.msra.mxu0 0
    %1888 = vmatprep.subr.bf16.mxu0 0
    %1889 = vmatpush1.bf16.msra.mxu0 0
    %1890 = vmatprep.subr.bf16.mxu0 0
    %1891 = vmatpush1.bf16.msra.mxu0 0
    %1892 = vmatprep.subr.bf16.mxu0 0
    %1893 = vmatpush1.bf16.msra.mxu0 0
    %1894 = vmatprep.subr.bf16.mxu0 0
    %1895 = vmatpush1.bf16.msra.mxu0 0
    %1896 = vmatprep.subr.bf16.mxu0 0
    %1897 = vmatpush1.bf16.msra.mxu0 0
    %1898 = vmatprep.mubr.bf16.mxu0 0
    %1899 = vmatmul.mubr.bf16.gmra.mrb[0].mxu0 %v1794
    %v1900 = vpop.f32.mrb[0].mxu0
    %v1901 = vadd.f32 %v1816, %v1900
    %v1902 = vpop.f32.mrb[0].mxu0
    %v1903 = vpop.f32.mrb[0].mxu0
    %v1904 = vpop.f32.mrb[0].mxu0
    %1905 = vdwg.mxu0
    %v1906 = vlaneseq
    %v1907 = vand.u32 %v1906, 127
    %vm1908 = vcmp.lt.s32.totalorder %v1907, 2
    %v1909 = vsel %vm1908, %v1901, -inf
    %vm1910 = vcmask 25600
    %v1911 = vsel %vm1910, %v1909, -inf
    %1912 = vmax.xlane.f32.xlu0 %v1911
    %v1913 = vpop.xlane.xlu0 %1912
    %v1914 = vsel %vm1908, -inf, %v1901
    %v1915 = vsel %vm1910, %v1914, -inf
    %1916 = vmax.xlane.f32.xlu0 %v1915
    %v1917 = vpop.xlane.xlu0 %1916
    %v1918 = vsel %vm1908, %v1913, %v1917
    %v1919 = vsub.f32 %v1901, %v1918
    %v1920 = vmul.f32 %v1919, 1.442695
    %v1921 = vpow.pop %v1920
    %v1922 = vsel %vm1908, %v1921, 0.0
    %v1923 = vsel %vm1910, %v1922, 0.0
    %1924 = vadd.xlane.f32.xlu0 %v1923
    %v1925 = vpop.xlane.xlu0 %1924
    %v1926 = vsel %vm1908, 0.0, %v1921
    %v1927 = vsel %vm1910, %v1926, 0.0
    %1928 = vadd.xlane.f32.xlu0 %v1927
    %v1929 = vpop.xlane.xlu0 %1928
    %v1930 = vsel %vm1908, %v1925, %v1929
    %v1931 = vlog2.pop %v1930
    %v1932 = vmul.f32 %v1931, 0.6931472
    %v1933 = vsub.f32 %v1919, %v1932
    %1934 = vst.msk [vmem:[%s18] sm:$0x3] %vm1910, %v1933
    // Predicated region
    $region118: #{binary_label_atten_forward.1} parent=1 // pred_check
      _
    $region119: #{binary_label_atten_forward.1} parent=1 // pred_check_branch
      %1936 = sbr.rel (0) target = $region121
    $region120: #{binary_label_atten_forward.1} parent=1 // pred_region
      _
    $region121: #{binary_label_atten_forward.1} parent=1 // pred_fallthru
      _
    // Predicated region
    $region122: #{binary_label_atten_forward.1} parent=1 // pred_check
      _
    $region123: #{binary_label_atten_forward.1} parent=1 // pred_check_branch
      %1938 = sbr.rel (0) target = $region125
    $region124: #{binary_label_atten_forward.1} parent=1 // pred_region
      _
    $region125: #{binary_label_atten_forward.1} parent=1 // pred_fallthru
      _
    %1939 = vsyncpa [#allocation3], 1
    %1940 = vsyncpa [#allocation5], 1
    %1941 = vsyncpa [#allocation8], 1
    %1942 = vsyncpa [#allocation11], 1
    %1943 = vsyncpa [#allocation14], 1
    %1944 = vsyncpa [#allocation17], 1

// kernel: binary_label_atten_forward.1
$region0: #{binary_label_atten_forward.1}
  #allocation0 [shape = 'u32[]', space=smem, size = 0x4, offset = 0x4, fixed_abs, tag = 'smem constant byte address 0x4 - core index']
  #allocation1 [shape = 'u32[144,128]{1,0:T(1,128)}', space=vmem, size = 0x12000, scoped, tag = 'internal scratch']
  %s0 = inlined_call_operand.vmem [shape: bf16[2,8,128], index: 0, kind: input, shape index: {}]
  %s1 = inlined_call_operand.vmem [shape: bf16[2,8,128], index: 1, kind: input, shape index: {}]
  %s2 = inlined_call_operand.vmem [shape: bf16[128,128], index: 2, kind: input, shape index: {}]
  %s3 = inlined_call_operand.vmem [shape: f32[1,128], index: 3, kind: input, shape index: {}]
  %s4 = inlined_call_operand.vmem [shape: bf16[128,128], index: 4, kind: input, shape index: {}]
  %s5 = inlined_call_operand.hbm [shape: f32[1,128], index: 5, kind: input, shape index: {}]
  %s6 = inlined_call_operand.vmem [shape: bf16[128,128], index: 6, kind: input, shape index: {}]
  %s7 = inlined_call_operand.hbm [shape: bf16[128,128], index: 7, kind: input, shape index: {}]
  %s8 = inlined_call_operand.hbm [shape: f32[1,128], index: 8, kind: input, shape index: {}]
  %s9 = inlined_call_operand.hbm [shape: bf16[128,128], index: 9, kind: input, shape index: {}]
  %s10 = inlined_call_operand.hbm [shape: f32[1,128], index: 10, kind: input, shape index: {}]
  %s11 = inlined_call_operand.hbm [shape: bf16[128,128], index: 11, kind: input, shape index: {}]
  %s12 = inlined_call_operand.hbm [shape: bf16[128,128], index: 12, kind: input, shape index: {}]
  %s13 = inlined_call_operand.hbm [shape: f32[1,128], index: 13, kind: input, shape index: {}]
  %s14 = inlined_call_operand.hbm [shape: bf16[128,128], index: 14, kind: input, shape index: {}]
  %s15 = inlined_call_operand.hbm [shape: f32[1,128], index: 15, kind: input, shape index: {}]
  %s16 = inlined_call_operand.vmem [shape: bf16[128,4], index: 16, kind: input, shape index: {}]
  %s17 = inlined_call_operand.hbm [shape: f32[1,4], index: 17, kind: input, shape index: {}]
  %s18 = inlined_call_operand.vmem [shape: f32[2,4], index: 18, kind: output, shape index: {}]
  %s19 = sld [smem:[#allocation0]]
  $region126: #{binary_label_atten_forward.1} parent=0
    _
  %s21 = ssub.s32 1, %s19
  %s22 = scalar_select 0, %s21, %s19
  $region1: #{binary_label_atten_forward.1} parent=0
    #allocation2 [shape = 'u8[512]{0}', space=vmem, size = 0x400, scoped, tag = 'input window, operand 5, single buffered']
    #allocation3 [shape = 's32[1]{0}', space=sflag, size = 0x4, scoped, tag = 'scoped memory for binary_label_atten_forward.1']
    #allocation4 [shape = 'u8[32768]{0}', space=vmem, size = 0x8000, scoped, tag = 'input window, operand 7, single buffered']
    #allocation5 [shape = 's32[1]{0}', space=sflag, size = 0x4, scoped, tag = 'scoped memory for binary_label_atten_forward.1']
    #allocation6 [shape = 'u8[512]{0}', space=vmem, size = 0x400, scoped, tag = 'input window, operand 8, single buffered']
    #allocation7 [shape = 'u8[32768]{0}', space=vmem, size = 0x8000, scoped, tag = 'input window, operand 9, single buffered']
    #allocation8 [shape = 's32[1]{0}', space=sflag, size = 0x4, scoped, tag = 'scoped memory for binary_label_atten_forward.1']
    #allocation9 [shape = 'u8[512]{0}', space=vmem, size = 0x400, scoped, tag = 'input window, operand 10, single buffered']
    #allocation10 [shape = 'u8[32768]{0}', space=vmem, size = 0x8000, scoped, tag = 'input window, operand 11, single buffered']
    #allocation11 [shape = 's32[1]{0}', space=sflag, size = 0x4, scoped, tag = 'scoped memory for binary_label_atten_forward.1']
    #allocation12 [shape = 'u8[32768]{0}', space=vmem, size = 0x8000, scoped, tag = 'input window, operand 12, single buffered']
    #allocation13 [shape = 'u8[512]{0}', space=vmem, size = 0x400, scoped, tag = 'input window, operand 13, single buffered']
    #allocation14 [shape = 's32[1]{0}', space=sflag, size = 0x4, scoped, tag = 'scoped memory for binary_label_atten_forward.1']
    #allocation15 [shape = 'u8[32768]{0}', space=vmem, size = 0x8000, scoped, tag = 'input window, operand 14, single buffered']
    #allocation16 [shape = 'u8[512]{0}', space=vmem, size = 0x400, scoped, tag = 'input window, operand 15, single buffered']
    #allocation17 [shape = 's32[1]{0}', space=sflag, size = 0x4, scoped, tag = 'scoped memory for binary_label_atten_forward.1']
    #allocation18 [shape = 'u8[512]{0}', space=vmem, size = 0x400, scoped, tag = 'input window, operand 17, single buffered']
    %23 = vsyncpa [#allocation3], 0
    %24 = vsyncpa [#allocation5], 0
    %25 = vsyncpa [#allocation8], 0
    %26 = vsyncpa [#allocation11], 0
    %27 = vsyncpa [#allocation14], 0
    %28 = vsyncpa [#allocation17], 0
    // Predicated region
    $region2: #{binary_label_atten_forward.1} parent=1 // pred_check
      _
    $region3: #{binary_label_atten_forward.1} parent=1 // pred_check_branch
      %30 = sbr.rel (0) target = $region5
    $region4: #{binary_label_atten_forward.1} parent=1 // pred_region
      _
    $region5: #{binary_label_atten_forward.1} parent=1 // pred_fallthru
      _
    // Predicated region
    $region6: #{binary_label_atten_forward.1} parent=1 // pred_check
      _
    $region7: #{binary_label_atten_forward.1} parent=1 // pred_check_branch
      %32 = sbr.rel (0) target = $region9
    $region8: #{binary_label_atten_forward.1} parent=1 // pred_region
      _
    $region9: #{binary_label_atten_forward.1} parent=1 // pred_fallthru
      _
    // Predicated region
    $region10: #{binary_label_atten_forward.1} parent=1 // pred_check
      _
    $region11: #{binary_label_atten_forward.1} parent=1 // pred_check_branch
      %34 = sbr.rel (0) target = $region13
    $region12: #{binary_label_atten_forward.1} parent=1 // pred_region
      _
    $region13: #{binary_label_atten_forward.1} parent=1 // pred_fallthru
      _
    // Predicated region
    $region14: #{binary_label_atten_forward.1} parent=1 // pred_check
      _
    $region15: #{binary_label_atten_forward.1} parent=1 // pred_check_branch
      %36 = sbr.rel (0) target = $region17
    $region16: #{binary_label_atten_forward.1} parent=1 // pred_region
      _
    $region17: #{binary_label_atten_forward.1} parent=1 // pred_fallthru
      _
    // Predicated region
    $region18: #{binary_label_atten_forward.1} parent=1 // pred_check
      _
    $region19: #{binary_label_atten_forward.1} parent=1 // pred_check_branch
      %38 = sbr.rel (0) target = $region21
    $region20: #{binary_label_atten_forward.1} parent=1 // pred_region
      _
    $region21: #{binary_label_atten_forward.1} parent=1 // pred_fallthru
      _
    // Predicated region
    $region22: #{binary_label_atten_forward.1} parent=1 // pred_check
      _
    $region23: #{binary_label_atten_forward.1} parent=1 // pred_check_branch
      %40 = sbr.rel (0) target = $region25
    $region24: #{binary_label_atten_forward.1} parent=1 // pred_region
      %s42 = ssub.s32 16, 16
      %43 = vsyncadd [#allocation3], %s42
      %s45 = sshll.u32 [#allocation2], 4
      %s46 = int_to_ptr.vmem [resolvable:$true] %s45
      %48 = dma.hbm_to_vmem [thread:$0]  %s5, 16, %s46, [#allocation3]
    $region25: #{binary_label_atten_forward.1} parent=1 // pred_fallthru
      _
    // Predicated region
    $region26: #{binary_label_atten_forward.1} parent=1 // pred_check
      _
    $region27: #{binary_label_atten_forward.1} parent=1 // pred_check_branch
      %50 = sbr.rel (0) target = $region29
    $region28: #{binary_label_atten_forward.1} parent=1 // pred_region
      _
    $region29: #{binary_label_atten_forward.1} parent=1 // pred_fallthru
      _
    // Predicated region
    $region30: #{binary_label_atten_forward.1} parent=1 // pred_check
      _
    $region31: #{binary_label_atten_forward.1} parent=1 // pred_check_branch
      %52 = sbr.rel (0) target = $region33
    $region32: #{binary_label_atten_forward.1} parent=1 // pred_region
      %s54 = ssub.s32 1024, 1024
      %55 = vsyncadd [#allocation5], %s54
      %s56 = sshll.u32 [#allocation4], 4
      %s57 = int_to_ptr.vmem [resolvable:$true] %s56
      %62 = dma.hbm_to_vmem [thread:$0]  %s7, 1024, %s57, [#allocation5], 64, 64, 4
    $region33: #{binary_label_atten_forward.1} parent=1 // pred_fallthru
      _
    // Predicated region
    $region34: #{binary_label_atten_forward.1} parent=1 // pred_check
      _
    $region35: #{binary_label_atten_forward.1} parent=1 // pred_check_branch
      %64 = sbr.rel (0) target = $region37
    $region36: #{binary_label_atten_forward.1} parent=1 // pred_region
      %s66 = ssub.s32 16, 16
      %67 = vsyncadd [#allocation5], %s66
      %s69 = sshll.u32 [#allocation6], 4
      %s70 = int_to_ptr.vmem [resolvable:$true] %s69
      %72 = dma.hbm_to_vmem [thread:$0]  %s8, 16, %s70, [#allocation5]
    $region37: #{binary_label_atten_forward.1} parent=1 // pred_fallthru
      _
    // Predicated region
    $region38: #{binary_label_atten_forward.1} parent=1 // pred_check
      _
    $region39: #{binary_label_atten_forward.1} parent=1 // pred_check_branch
      %74 = sbr.rel (0) target = $region41
    $region40: #{binary_label_atten_forward.1} parent=1 // pred_region
      %s76 = ssub.s32 1024, 1024
      %77 = vsyncadd [#allocation8], %s76
      %s78 = sshll.u32 [#allocation7], 4
      %s79 = int_to_ptr.vmem [resolvable:$true] %s78
      %84 = dma.hbm_to_vmem [thread:$0]  %s9, 1024, %s79, [#allocation8], 64, 64, 4
    $region41: #{binary_label_atten_forward.1} parent=1 // pred_fallthru
      _
    // Predicated region
    $region42: #{binary_label_atten_forward.1} parent=1 // pred_check
      _
    $region43: #{binary_label_atten_forward.1} parent=1 // pred_check_branch
      %86 = sbr.rel (0) target = $region45
    $region44: #{binary_label_atten_forward.1} parent=1 // pred_region
      %s88 = ssub.s32 16, 16
      %89 = vsyncadd [#allocation8], %s88
      %s91 = sshll.u32 [#allocation9], 4
      %s92 = int_to_ptr.vmem [resolvable:$true] %s91
      %94 = dma.hbm_to_vmem [thread:$0]  %s10, 16, %s92, [#allocation8]
    $region45: #{binary_label_atten_forward.1} parent=1 // pred_fallthru
      _
    // Predicated region
    $region46: #{binary_label_atten_forward.1} parent=1 // pred_check
      _
    $region47: #{binary_label_atten_forward.1} parent=1 // pred_check_branch
      %96 = sbr.rel (0) target = $region49
    $region48: #{binary_label_atten_forward.1} parent=1 // pred_region
      %s98 = ssub.s32 1024, 1024
      %99 = vsyncadd [#allocation11], %s98
      %s100 = sshll.u32 [#allocation10], 4
      %s101 = int_to_ptr.vmem [resolvable:$true] %s100
      %106 = dma.hbm_to_vmem [thread:$0]  %s11, 1024, %s101, [#allocation11], 64, 64, 4
    $region49: #{binary_label_atten_forward.1} parent=1 // pred_fallthru
      _
    // Predicated region
    $region50: #{binary_label_atten_forward.1} parent=1 // pred_check
      _
    $region51: #{binary_label_atten_forward.1} parent=1 // pred_check_branch
      %108 = sbr.rel (0) target = $region53
    $region52: #{binary_label_atten_forward.1} parent=1 // pred_region
      %s110 = ssub.s32 1024, 1024
      %111 = vsyncadd [#allocation11], %s110
      %s112 = sshll.u32 [#allocation12], 4
      %s113 = int_to_ptr.vmem [resolvable:$true] %s112
      %118 = dma.hbm_to_vmem [thread:$0]  %s12, 1024, %s113, [#allocation11], 64, 64, 4
    $region53: #{binary_label_atten_forward.1} parent=1 // pred_fallthru
      _
    // Predicated region
    $region54: #{binary_label_atten_forward.1} parent=1 // pred_check
      _
    $region55: #{binary_label_atten_forward.1} parent=1 // pred_check_branch
      %120 = sbr.rel (0) target = $region57
    $region56: #{binary_label_atten_forward.1} parent=1 // pred_region
      %s122 = ssub.s32 16, 16
      %123 = vsyncadd [#allocation14], %s122
      %s125 = sshll.u32 [#allocation13], 4
      %s126 = int_to_ptr.vmem [resolvable:$true] %s125
      %128 = dma.hbm_to_vmem [thread:$0]  %s13, 16, %s126, [#allocation14]
    $region57: #{binary_label_atten_forward.1} parent=1 // pred_fallthru
      _
    // Predicated region
    $region58: #{binary_label_atten_forward.1} parent=1 // pred_check
      _
    $region59: #{binary_label_atten_forward.1} parent=1 // pred_check_branch
      %130 = sbr.rel (0) target = $region61
    $region60: #{binary_label_atten_forward.1} parent=1 // pred_region
      %s132 = ssub.s32 1024, 1024
      %133 = vsyncadd [#allocation14], %s132
      %s134 = sshll.u32 [#allocation15], 4
      %s135 = int_to_ptr.vmem [resolvable:$true] %s134
      %140 = dma.hbm_to_vmem [thread:$0]  %s14, 1024, %s135, [#allocation14], 64, 64, 4
    $region61: #{binary_label_atten_forward.1} parent=1 // pred_fallthru
      _
    // Predicated region
    $region62: #{binary_label_atten_forward.1} parent=1 // pred_check
      _
    $region63: #{binary_label_atten_forward.1} parent=1 // pred_check_branch
      %142 = sbr.rel (0) target = $region65
    $region64: #{binary_label_atten_forward.1} parent=1 // pred_region
      %s144 = ssub.s32 16, 16
      %145 = vsyncadd [#allocation17], %s144
      %s147 = sshll.u32 [#allocation16], 4
      %s148 = int_to_ptr.vmem [resolvable:$true] %s147
      %150 = dma.hbm_to_vmem [thread:$0]  %s15, 16, %s148, [#allocation17]
    $region65: #{binary_label_atten_forward.1} parent=1 // pred_fallthru
      _
    // Predicated region
    $region66: #{binary_label_atten_forward.1} parent=1 // pred_check
      _
    $region67: #{binary_label_atten_forward.1} parent=1 // pred_check_branch
      %152 = sbr.rel (0) target = $region69
    $region68: #{binary_label_atten_forward.1} parent=1 // pred_region
      _
    $region69: #{binary_label_atten_forward.1} parent=1 // pred_fallthru
      _
    // Predicated region
    $region70: #{binary_label_atten_forward.1} parent=1 // pred_check
      _
    $region71: #{binary_label_atten_forward.1} parent=1 // pred_check_branch
      %154 = sbr.rel (0) target = $region73
    $region72: #{binary_label_atten_forward.1} parent=1 // pred_region
      %s156 = ssub.s32 16, 16
      %157 = vsyncadd [#allocation17], %s156
      %s159 = sshll.u32 [#allocation18], 4
      %s160 = int_to_ptr.vmem [resolvable:$true] %s159
      %162 = dma.hbm_to_vmem [thread:$0]  %s17, 16, %s160, [#allocation17]
    $region73: #{binary_label_atten_forward.1} parent=1 // pred_fallthru
      _
    // Predicated region
    $region74: #{binary_label_atten_forward.1} parent=1 // pred_check
      _
    $region75: #{binary_label_atten_forward.1} parent=1 // pred_check_branch
      %164 = sbr.rel (0) target = $region77
    $region76: #{binary_label_atten_forward.1} parent=1 // pred_region
      %165 = dma.done [#allocation3], 16
    $region77: #{binary_label_atten_forward.1} parent=1 // pred_fallthru
      _
    // Predicated region
    $region78: #{binary_label_atten_forward.1} parent=1 // pred_check
      _
    $region79: #{binary_label_atten_forward.1} parent=1 // pred_check_branch
      %167 = sbr.rel (0) target = $region81
    $region80: #{binary_label_atten_forward.1} parent=1 // pred_region
      %168 = dma.done [#allocation5], 1024
    $region81: #{binary_label_atten_forward.1} parent=1 // pred_fallthru
      _
    // Predicated region
    $region82: #{binary_label_atten_forward.1} parent=1 // pred_check
      _
    $region83: #{binary_label_atten_forward.1} parent=1 // pred_check_branch
      %170 = sbr.rel (0) target = $region85
    $region84: #{binary_label_atten_forward.1} parent=1 // pred_region
      %171 = dma.done [#allocation5], 16
    $region85: #{binary_label_atten_forward.1} parent=1 // pred_fallthru
      _
    // Predicated region
    $region86: #{binary_label_atten_forward.1} parent=1 // pred_check
      _
    $region87: #{binary_label_atten_forward.1} parent=1 // pred_check_branch
      %173 = sbr.rel (0) target = $region89
    $region88: #{binary_label_atten_forward.1} parent=1 // pred_region
      %174 = dma.done [#allocation8], 1024
    $region89: #{binary_label_atten_forward.1} parent=1 // pred_fallthru
      _
    // Predicated region
    $region90: #{binary_label_atten_forward.1} parent=1 // pred_check
      _
    $region91: #{binary_label_atten_forward.1} parent=1 // pred_check_branch
      %176 = sbr.rel (0) target = $region93
    $region92: #{binary_label_atten_forward.1} parent=1 // pred_region
      %177 = dma.done [#allocation8], 16
    $region93: #{binary_label_atten_forward.1} parent=1 // pred_fallthru
      _
    // Predicated region
    $region94: #{binary_label_atten_forward.1} parent=1 // pred_check
      _
    $region95: #{binary_label_atten_forward.1} parent=1 // pred_check_branch
      %179 = sbr.rel (0) target = $region97
    $region96: #{binary_label_atten_forward.1} parent=1 // pred_region
      %180 = dma.done [#allocation11], 1024
    $region97: #{binary_label_atten_forward.1} parent=1 // pred_fallthru
      _
    // Predicated region
    $region98: #{binary_label_atten_forward.1} parent=1 // pred_check
      _
    $region99: #{binary_label_atten_forward.1} parent=1 // pred_check_branch
      %182 = sbr.rel (0) target = $region101
    $region100: #{binary_label_atten_forward.1} parent=1 // pred_region
      %183 = dma.done [#allocation11], 1024
    $region101: #{binary_label_atten_forward.1} parent=1 // pred_fallthru
      _
    // Predicated region
    $region102: #{binary_label_atten_forward.1} parent=1 // pred_check
      _
    $region103: #{binary_label_atten_forward.1} parent=1 // pred_check_branch
      %185 = sbr.rel (0) target = $region105
    $region104: #{binary_label_atten_forward.1} parent=1 // pred_region
      %186 = dma.done [#allocation14], 16
    $region105: #{binary_label_atten_forward.1} parent=1 // pred_fallthru
      _
    // Predicated region
    $region106: #{binary_label_atten_forward.1} parent=1 // pred_check
      _
    $region107: #{binary_label_atten_forward.1} parent=1 // pred_check_branch
      %188 = sbr.rel (0) target = $region109
    $region108: #{binary_label_atten_forward.1} parent=1 // pred_region
      %189 = dma.done [#allocation14], 1024
    $region109: #{binary_label_atten_forward.1} parent=1 // pred_fallthru
      _
    // Predicated region
    $region110: #{binary_label_atten_forward.1} parent=1 // pred_check
      _
    $region111: #{binary_label_atten_forward.1} parent=1 // pred_check_branch
      %191 = sbr.rel (0) target = $region113
    $region112: #{binary_label_atten_forward.1} parent=1 // pred_region
      %192 = dma.done [#allocation17], 16
    $region113: #{binary_label_atten_forward.1} parent=1 // pred_fallthru
      _
    // Predicated region
    $region114: #{binary_label_atten_forward.1} parent=1 // pred_check
      _
    $region115: #{binary_label_atten_forward.1} parent=1 // pred_check_branch
      %194 = sbr.rel (0) target = $region117
    $region116: #{binary_label_atten_forward.1} parent=1 // pred_region
      %195 = dma.done [#allocation17], 16
    $region117: #{binary_label_atten_forward.1} parent=1 // pred_fallthru
      _
    %v197 = vld [vmem:[%s0] sm:$0xf]
    %v198 = vld [vmem:[%s0 + $0x4] sm:$0xf]
    %v199 = vld [vmem:[%s1] sm:$0xf]
    %v200 = vld [vmem:[%s1 + $0x4] sm:$0xf]
    %v201 = vld [vmem:[%s2] sm:$0xf]
    %v202 = vld [vmem:[%s2 + $0x4] sm:$0xf]
    %v203 = vld [vmem:[%s2 + $0x8] sm:$0xf]
    %v204 = vld [vmem:[%s2 + $0xc] sm:$0xf]
    %v205 = vld [vmem:[%s2 + $0x10] sm:$0xf]
    %v206 = vld [vmem:[%s2 + $0x14] sm:$0xf]
    %v207 = vld [vmem:[%s2 + $0x18] sm:$0xf]
    %v208 = vld [vmem:[%s2 + $0x1c] sm:$0xf]
    %v209 = vld [vmem:[%s2 + $0x20] sm:$0xf]
    %v210 = vld [vmem:[%s2 + $0x24] sm:$0xf]
    %v211 = vld [vmem:[%s2 + $0x28] sm:$0xf]
    %v212 = vld [vmem:[%s2 + $0x2c] sm:$0xf]
    %v213 = vld [vmem:[%s2 + $0x30] sm:$0xf]
    %v214 = vld [vmem:[%s2 + $0x34] sm:$0xf]
    %v215 = vld [vmem:[%s2 + $0x38] sm:$0xf]
    %v216 = vld [vmem:[%s2 + $0x3c] sm:$0xf]
    %v217 = vld [vmem:[%s3] sm:$0x1]
    %v219 = vlaneseq
    %v220 = vshrl.u32 %v219, 7
    %v221 = vsub.s32 0, %v220
    %v222 = vrot.slane %v217, %v221
    %v226 = vunpack.c.l.b16 %v197
    %v227 = vunpack.c.l.b16 %v198
    %v228 = vpack.c.b16 %v227, %v226
    %v246 = vunpack.c.l.b16 %v201
    %v247 = vunpack.c.l.b16 %v202
    %v248 = vunpack.c.l.b16 %v203
    %v249 = vunpack.c.l.b16 %v204
    %v250 = vunpack.c.l.b16 %v205
    %v251 = vunpack.c.l.b16 %v206
    %v252 = vunpack.c.l.b16 %v207
    %v253 = vunpack.c.l.b16 %v208
    %v254 = vunpack.c.l.b16 %v209
    %v255 = vunpack.c.l.b16 %v210
    %v256 = vunpack.c.l.b16 %v211
    %v257 = vunpack.c.l.b16 %v212
    %v258 = vunpack.c.l.b16 %v213
    %v259 = vunpack.c.l.b16 %v214
    %v260 = vunpack.c.l.b16 %v215
    %v261 = vunpack.c.l.b16 %v216
    %v262 = vpack.c.b16 %v247, %v246
    %v263 = vpack.c.b16 %v249, %v248
    %v264 = vpack.c.b16 %v251, %v250
    %v265 = vpack.c.b16 %v253, %v252
    %v266 = vpack.c.b16 %v255, %v254
    %v267 = vpack.c.b16 %v257, %v256
    %v268 = vpack.c.b16 %v259, %v258
    %v269 = vpack.c.b16 %v261, %v260
    %278 = vmatprep.subr.bf16.mxu0 0
    %279 = vmatpush1.bf16.msra.mxu0 %v262
    %280 = vmatprep.subr.bf16.mxu0 0
    %281 = vmatpush1.bf16.msra.mxu0 %v263
    %282 = vmatprep.subr.bf16.mxu0 0
    %283 = vmatpush1.bf16.msra.mxu0 %v264
    %284 = vmatprep.subr.bf16.mxu0 0
    %285 = vmatpush1.bf16.msra.mxu0 %v265
    %286 = vmatprep.subr.bf16.mxu0 0
    %287 = vmatpush1.bf16.msra.mxu0 %v266
    %288 = vmatprep.subr.bf16.mxu0 0
    %289 = vmatpush1.bf16.msra.mxu0 %v267
    %290 = vmatprep.subr.bf16.mxu0 0
    %291 = vmatpush1.bf16.msra.mxu0 %v268
    %292 = vmatprep.subr.bf16.mxu0 0
    %293 = vmatpush1.bf16.msra.mxu0 %v269
    %294 = vmatprep.subr.bf16.mxu0 0
    %295 = vmatpush1.bf16.msra.mxu0 0
    %296 = vmatprep.subr.bf16.mxu0 0
    %297 = vmatpush1.bf16.msra.mxu0 0
    %298 = vmatprep.subr.bf16.mxu0 0
    %299 = vmatpush1.bf16.msra.mxu0 0
    %300 = vmatprep.subr.bf16.mxu0 0
    %301 = vmatpush1.bf16.msra.mxu0 0
    %302 = vmatprep.subr.bf16.mxu0 0
    %303 = vmatpush1.bf16.msra.mxu0 0
    %304 = vmatprep.subr.bf16.mxu0 0
    %305 = vmatpush1.bf16.msra.mxu0 0
    %306 = vmatprep.subr.bf16.mxu0 0
    %307 = vmatpush1.bf16.msra.mxu0 0
    %308 = vmatprep.subr.bf16.mxu0 0
    %309 = vmatpush1.bf16.msra.mxu0 0
    %310 = vmatprep.mubr.bf16.mxu0 0
    %311 = vmatmul.mubr.bf16.gmra.mrb[0].mxu0 %v228
    %v312 = vpop.f32.mrb[0].mxu0
    %v313 = vadd.f32 %v222, %v312
    %v314 = vpop.f32.mrb[0].mxu0
    %v315 = vpop.f32.mrb[0].mxu0
    %v316 = vadd.f32 %v222, %v315
    %v317 = vpop.f32.mrb[0].mxu0
    %318 = vdwg.mxu0
    %v319 = vmax.f32 %v313, 0.0
    %v320 = vmax.f32 %v316, 0.0
    %v321 = vpack.c.bf16 %v320, %v319
    %v322 = vld [vmem:[%s4] sm:$0xf]
    %v323 = vld [vmem:[%s4 + $0x4] sm:$0xf]
    %v324 = vld [vmem:[%s4 + $0x8] sm:$0xf]
    %v325 = vld [vmem:[%s4 + $0xc] sm:$0xf]
    %v326 = vld [vmem:[%s4 + $0x10] sm:$0xf]
    %v327 = vld [vmem:[%s4 + $0x14] sm:$0xf]
    %v328 = vld [vmem:[%s4 + $0x18] sm:$0xf]
    %v329 = vld [vmem:[%s4 + $0x1c] sm:$0xf]
    %v330 = vld [vmem:[%s4 + $0x20] sm:$0xf]
    %v331 = vld [vmem:[%s4 + $0x24] sm:$0xf]
    %v332 = vld [vmem:[%s4 + $0x28] sm:$0xf]
    %v333 = vld [vmem:[%s4 + $0x2c] sm:$0xf]
    %v334 = vld [vmem:[%s4 + $0x30] sm:$0xf]
    %v335 = vld [vmem:[%s4 + $0x34] sm:$0xf]
    %v336 = vld [vmem:[%s4 + $0x38] sm:$0xf]
    %v337 = vld [vmem:[%s4 + $0x3c] sm:$0xf]
    %v338 = vld [vmem:[#allocation2] sm:$0x1]
    %v340 = vlaneseq
    %v341 = vshrl.u32 %v340, 7
    %v342 = vsub.s32 0, %v341
    %v343 = vrot.slane %v338, %v342
    %v361 = vunpack.c.l.b16 %v322
    %v362 = vunpack.c.l.b16 %v323
    %v363 = vunpack.c.l.b16 %v324
    %v364 = vunpack.c.l.b16 %v325
    %v365 = vunpack.c.l.b16 %v326
    %v366 = vunpack.c.l.b16 %v327
    %v367 = vunpack.c.l.b16 %v328
    %v368 = vunpack.c.l.b16 %v329
    %v369 = vunpack.c.l.b16 %v330
    %v370 = vunpack.c.l.b16 %v331
    %v371 = vunpack.c.l.b16 %v332
    %v372 = vunpack.c.l.b16 %v333
    %v373 = vunpack.c.l.b16 %v334
    %v374 = vunpack.c.l.b16 %v335
    %v375 = vunpack.c.l.b16 %v336
    %v376 = vunpack.c.l.b16 %v337
    %v377 = vpack.c.b16 %v362, %v361
    %v378 = vpack.c.b16 %v364, %v363
    %v379 = vpack.c.b16 %v366, %v365
    %v380 = vpack.c.b16 %v368, %v367
    %v381 = vpack.c.b16 %v370, %v369
    %v382 = vpack.c.b16 %v372, %v371
    %v383 = vpack.c.b16 %v374, %v373
    %v384 = vpack.c.b16 %v376, %v375
    %393 = vmatprep.subr.bf16.mxu0 0
    %394 = vmatpush1.bf16.msra.mxu0 %v377
    %395 = vmatprep.subr.bf16.mxu0 0
    %396 = vmatpush1.bf16.msra.mxu0 %v378
    %397 = vmatprep.subr.bf16.mxu0 0
    %398 = vmatpush1.bf16.msra.mxu0 %v379
    %399 = vmatprep.subr.bf16.mxu0 0
    %400 = vmatpush1.bf16.msra.mxu0 %v380
    %401 = vmatprep.subr.bf16.mxu0 0
    %402 = vmatpush1.bf16.msra.mxu0 %v381
    %403 = vmatprep.subr.bf16.mxu0 0
    %404 = vmatpush1.bf16.msra.mxu0 %v382
    %405 = vmatprep.subr.bf16.mxu0 0
    %406 = vmatpush1.bf16.msra.mxu0 %v383
    %407 = vmatprep.subr.bf16.mxu0 0
    %408 = vmatpush1.bf16.msra.mxu0 %v384
    %409 = vmatprep.subr.bf16.mxu0 0
    %410 = vmatpush1.bf16.msra.mxu0 0
    %411 = vmatprep.subr.bf16.mxu0 0
    %412 = vmatpush1.bf16.msra.mxu0 0
    %413 = vmatprep.subr.bf16.mxu0 0
    %414 = vmatpush1.bf16.msra.mxu0 0
    %415 = vmatprep.subr.bf16.mxu0 0
    %416 = vmatpush1.bf16.msra.mxu0 0
    %417 = vmatprep.subr.bf16.mxu0 0
    %418 = vmatpush1.bf16.msra.mxu0 0
    %419 = vmatprep.subr.bf16.mxu0 0
    %420 = vmatpush1.bf16.msra.mxu0 0
    %421 = vmatprep.subr.bf16.mxu0 0
    %422 = vmatpush1.bf16.msra.mxu0 0
    %423 = vmatprep.subr.bf16.mxu0 0
    %424 = vmatpush1.bf16.msra.mxu0 0
    %425 = vmatprep.mubr.bf16.mxu0 0
    %426 = vmatmul.mubr.bf16.gmra.mrb[0].mxu0 %v321
    %v427 = vpop.f32.mrb[0].mxu0
    %v428 = vadd.f32 %v343, %v427
    %v429 = vpop.f32.mrb[0].mxu0
    %v430 = vpop.f32.mrb[0].mxu0
    %v431 = vadd.f32 %v343, %v430
    %v432 = vpop.f32.mrb[0].mxu0
    %433 = vdwg.mxu0
    %v434 = vmax.f32 %v428, 0.0
    %v435 = vmax.f32 %v431, 0.0
    %v436 = vpack.c.bf16 %v435, %v434
    %v438 = vunpack.c.l.b16 %v436
    %v439 = vunpack.c.h.b16 %v436
    %v440 = vpack.c.b16 %v438, %v438
    %v441 = vpack.c.b16 %v439, %v439
    %v446 = vunpack.c.l.b16 %v199
    %v447 = vunpack.c.l.b16 %v200
    %v448 = vpack.c.b16 %v447, %v446
    %450 = vmatprep.subr.bf16.mxu0 0
    %451 = vmatpush1.bf16.msra.mxu0 %v262
    %452 = vmatprep.subr.bf16.mxu0 0
    %453 = vmatpush1.bf16.msra.mxu0 %v263
    %454 = vmatprep.subr.bf16.mxu0 0
    %455 = vmatpush1.bf16.msra.mxu0 %v264
    %456 = vmatprep.subr.bf16.mxu0 0
    %457 = vmatpush1.bf16.msra.mxu0 %v265
    %458 = vmatprep.subr.bf16.mxu0 0
    %459 = vmatpush1.bf16.msra.mxu0 %v266
    %460 = vmatprep.subr.bf16.mxu0 0
    %461 = vmatpush1.bf16.msra.mxu0 %v267
    %462 = vmatprep.subr.bf16.mxu0 0
    %463 = vmatpush1.bf16.msra.mxu0 %v268
    %464 = vmatprep.subr.bf16.mxu0 0
    %465 = vmatpush1.bf16.msra.mxu0 %v269
    %466 = vmatprep.subr.bf16.mxu0 0
    %467 = vmatpush1.bf16.msra.mxu0 0
    %468 = vmatprep.subr.bf16.mxu0 0
    %469 = vmatpush1.bf16.msra.mxu0 0
    %470 = vmatprep.subr.bf16.mxu0 0
    %471 = vmatpush1.bf16.msra.mxu0 0
    %472 = vmatprep.subr.bf16.mxu0 0
    %473 = vmatpush1.bf16.msra.mxu0 0
    %474 = vmatprep.subr.bf16.mxu0 0
    %475 = vmatpush1.bf16.msra.mxu0 0
    %476 = vmatprep.subr.bf16.mxu0 0
    %477 = vmatpush1.bf16.msra.mxu0 0
    %478 = vmatprep.subr.bf16.mxu0 0
    %479 = vmatpush1.bf16.msra.mxu0 0
    %480 = vmatprep.subr.bf16.mxu0 0
    %481 = vmatpush1.bf16.msra.mxu0 0
    %482 = vmatprep.mubr.bf16.mxu0 0
    %483 = vmatmul.mubr.bf16.gmra.mrb[0].mxu0 %v448
    %v484 = vpop.f32.mrb[0].mxu0
    %v485 = vadd.f32 %v222, %v484
    %v486 = vpop.f32.mrb[0].mxu0
    %v487 = vpop.f32.mrb[0].mxu0
    %v488 = vadd.f32 %v222, %v487
    %v489 = vpop.f32.mrb[0].mxu0
    %490 = vdwg.mxu0
    %v491 = vmax.f32 %v485, 0.0
    %v492 = vmax.f32 %v488, 0.0
    %v493 = vpack.c.bf16 %v492, %v491
    %494 = vmatprep.subr.bf16.mxu0 0
    %495 = vmatpush1.bf16.msra.mxu0 %v377
    %496 = vmatprep.subr.bf16.mxu0 0
    %497 = vmatpush1.bf16.msra.mxu0 %v378
    %498 = vmatprep.subr.bf16.mxu0 0
    %499 = vmatpush1.bf16.msra.mxu0 %v379
    %500 = vmatprep.subr.bf16.mxu0 0
    %501 = vmatpush1.bf16.msra.mxu0 %v380
    %502 = vmatprep.subr.bf16.mxu0 0
    %503 = vmatpush1.bf16.msra.mxu0 %v381
    %504 = vmatprep.subr.bf16.mxu0 0
    %505 = vmatpush1.bf16.msra.mxu0 %v382
    %506 = vmatprep.subr.bf16.mxu0 0
    %507 = vmatpush1.bf16.msra.mxu0 %v383
    %508 = vmatprep.subr.bf16.mxu0 0
    %509 = vmatpush1.bf16.msra.mxu0 %v384
    %510 = vmatprep.subr.bf16.mxu0 0
    %511 = vmatpush1.bf16.msra.mxu0 0
    %512 = vmatprep.subr.bf16.mxu0 0
    %513 = vmatpush1.bf16.msra.mxu0 0
    %514 = vmatprep.subr.bf16.mxu0 0
    %515 = vmatpush1.bf16.msra.mxu0 0
    %516 = vmatprep.subr.bf16.mxu0 0
    %517 = vmatpush1.bf16.msra.mxu0 0
    %518 = vmatprep.subr.bf16.mxu0 0
    %519 = vmatpush1.bf16.msra.mxu0 0
    %520 = vmatprep.subr.bf16.mxu0 0
    %521 = vmatpush1.bf16.msra.mxu0 0
    %522 = vmatprep.subr.bf16.mxu0 0
    %523 = vmatpush1.bf16.msra.mxu0 0
    %524 = vmatprep.subr.bf16.mxu0 0
    %525 = vmatpush1.bf16.msra.mxu0 0
    %526 = vmatprep.mubr.bf16.mxu0 0
    %527 = vmatmul.mubr.bf16.gmra.mrb[0].mxu0 %v493
    %v528 = vpop.f32.mrb[0].mxu0
    %v529 = vadd.f32 %v343, %v528
    %v530 = vpop.f32.mrb[0].mxu0
    %v531 = vpop.f32.mrb[0].mxu0
    %v532 = vadd.f32 %v343, %v531
    %v533 = vpop.f32.mrb[0].mxu0
    %534 = vdwg.mxu0
    %v535 = vmax.f32 %v529, 0.0
    %v536 = vmax.f32 %v532, 0.0
    %v537 = vpack.c.bf16 %v536, %v535
    %v539 = vunpack.c.l.b16 %v537
    %v540 = vunpack.c.h.b16 %v537
    %v541 = vpack.c.b16 %v539, %v539
    %v542 = vpack.c.b16 %v540, %v540
    %545 = vmatprep.subr.bf16.mxu0 0
    %546 = vmatpush1.bf16.xpose.msra.mxu0 %v541
    %547 = vmatprep.subr.bf16.mxu0 0
    %548 = vmatpush1.bf16.xpose.msra.mxu0 0
    %549 = vmatprep.subr.bf16.mxu0 0
    %550 = vmatpush1.bf16.xpose.msra.mxu0 0
    %551 = vmatprep.subr.bf16.mxu0 0
    %552 = vmatpush1.bf16.xpose.msra.mxu0 0
    %553 = vmatprep.subr.bf16.mxu0 0
    %554 = vmatpush1.bf16.xpose.msra.mxu0 0
    %555 = vmatprep.subr.bf16.mxu0 0
    %556 = vmatpush1.bf16.xpose.msra.mxu0 0
    %557 = vmatprep.subr.bf16.mxu0 0
    %558 = vmatpush1.bf16.xpose.msra.mxu0 0
    %559 = vmatprep.subr.bf16.mxu0 0
    %560 = vmatpush1.bf16.xpose.msra.mxu0 0
    %561 = vmatprep.subr.bf16.mxu0 0
    %562 = vmatpush1.bf16.xpose.msra.mxu0 0
    %563 = vmatprep.subr.bf16.mxu0 0
    %564 = vmatpush1.bf16.xpose.msra.mxu0 0
    %565 = vmatprep.subr.bf16.mxu0 0
    %566 = vmatpush1.bf16.xpose.msra.mxu0 0
    %567 = vmatprep.subr.bf16.mxu0 0
    %568 = vmatpush1.bf16.xpose.msra.mxu0 0
    %569 = vmatprep.subr.bf16.mxu0 0
    %570 = vmatpush1.bf16.xpose.msra.mxu0 0
    %571 = vmatprep.subr.bf16.mxu0 0
    %572 = vmatpush1.bf16.xpose.msra.mxu0 0
    %573 = vmatprep.subr.bf16.mxu0 0
    %574 = vmatpush1.bf16.xpose.msra.mxu0 0
    %575 = vmatprep.subr.bf16.mxu0 0
    %576 = vmatpush1.bf16.xpose.msra.mxu0 0
    %577 = vmatprep.mubr.bf16.mxu0 0
    %578 = vmatmul.mubr.bf16.gmra.mrb[0].mxu0 %v440
    %v579 = vpop.f32.mrb[0].mxu0
    %v580 = vadd.f32 0.0, %v579
    %v581 = vpop.f32.mrb[0].mxu0
    %v582 = vpop.f32.mrb[0].mxu0
    %v583 = vpop.f32.mrb[0].mxu0
    %584 = vdwg.mxu0
    %585 = vmatprep.subr.bf16.mxu0 0
    %586 = vmatpush1.bf16.xpose.msra.mxu0 %v542
    %587 = vmatprep.subr.bf16.mxu0 0
    %588 = vmatpush1.bf16.xpose.msra.mxu0 0
    %589 = vmatprep.subr.bf16.mxu0 0
    %590 = vmatpush1.bf16.xpose.msra.mxu0 0
    %591 = vmatprep.subr.bf16.mxu0 0
    %592 = vmatpush1.bf16.xpose.msra.mxu0 0
    %593 = vmatprep.subr.bf16.mxu0 0
    %594 = vmatpush1.bf16.xpose.msra.mxu0 0
    %595 = vmatprep.subr.bf16.mxu0 0
    %596 = vmatpush1.bf16.xpose.msra.mxu0 0
    %597 = vmatprep.subr.bf16.mxu0 0
    %598 = vmatpush1.bf16.xpose.msra.mxu0 0
    %599 = vmatprep.subr.bf16.mxu0 0
    %600 = vmatpush1.bf16.xpose.msra.mxu0 0
    %601 = vmatprep.subr.bf16.mxu0 0
    %602 = vmatpush1.bf16.xpose.msra.mxu0 0
    %603 = vmatprep.subr.bf16.mxu0 0
    %604 = vmatpush1.bf16.xpose.msra.mxu0 0
    %605 = vmatprep.subr.bf16.mxu0 0
    %606 = vmatpush1.bf16.xpose.msra.mxu0 0
    %607 = vmatprep.subr.bf16.mxu0 0
    %608 = vmatpush1.bf16.xpose.msra.mxu0 0
    %609 = vmatprep.subr.bf16.mxu0 0
    %610 = vmatpush1.bf16.xpose.msra.mxu0 0
    %611 = vmatprep.subr.bf16.mxu0 0
    %612 = vmatpush1.bf16.xpose.msra.mxu0 0
    %613 = vmatprep.subr.bf16.mxu0 0
    %614 = vmatpush1.bf16.xpose.msra.mxu0 0
    %615 = vmatprep.subr.bf16.mxu0 0
    %616 = vmatpush1.bf16.xpose.msra.mxu0 0
    %617 = vmatprep.mubr.bf16.mxu0 0
    %618 = vmatmul.mubr.bf16.gmra.mrb[0].mxu0 %v441
    %v619 = vpop.f32.mrb[0].mxu0
    %v620 = vadd.f32 0.0, %v619
    %v621 = vpop.f32.mrb[0].mxu0
    %v622 = vpop.f32.mrb[0].mxu0
    %v623 = vpop.f32.mrb[0].mxu0
    %624 = vdwg.mxu0
    %625 = vmatprep.subr.bf16.mxu0 0
    %626 = vmatpush1.bf16.xpose.msra.mxu0 %v440
    %627 = vmatprep.subr.bf16.mxu0 0
    %628 = vmatpush1.bf16.xpose.msra.mxu0 0
    %629 = vmatprep.subr.bf16.mxu0 0
    %630 = vmatpush1.bf16.xpose.msra.mxu0 0
    %631 = vmatprep.subr.bf16.mxu0 0
    %632 = vmatpush1.bf16.xpose.msra.mxu0 0
    %633 = vmatprep.subr.bf16.mxu0 0
    %634 = vmatpush1.bf16.xpose.msra.mxu0 0
    %635 = vmatprep.subr.bf16.mxu0 0
    %636 = vmatpush1.bf16.xpose.msra.mxu0 0
    %637 = vmatprep.subr.bf16.mxu0 0
    %638 = vmatpush1.bf16.xpose.msra.mxu0 0
    %639 = vmatprep.subr.bf16.mxu0 0
    %640 = vmatpush1.bf16.xpose.msra.mxu0 0
    %641 = vmatprep.subr.bf16.mxu0 0
    %642 = vmatpush1.bf16.xpose.msra.mxu0 0
    %643 = vmatprep.subr.bf16.mxu0 0
    %644 = vmatpush1.bf16.xpose.msra.mxu0 0
    %645 = vmatprep.subr.bf16.mxu0 0
    %646 = vmatpush1.bf16.xpose.msra.mxu0 0
    %647 = vmatprep.subr.bf16.mxu0 0
    %648 = vmatpush1.bf16.xpose.msra.mxu0 0
    %649 = vmatprep.subr.bf16.mxu0 0
    %650 = vmatpush1.bf16.xpose.msra.mxu0 0
    %651 = vmatprep.subr.bf16.mxu0 0
    %652 = vmatpush1.bf16.xpose.msra.mxu0 0
    %653 = vmatprep.subr.bf16.mxu0 0
    %654 = vmatpush1.bf16.xpose.msra.mxu0 0
    %655 = vmatprep.subr.bf16.mxu0 0
    %656 = vmatpush1.bf16.xpose.msra.mxu0 0
    %657 = vmatprep.mubr.bf16.mxu0 0
    %658 = vmatmul.mubr.bf16.gmra.mrb[0].mxu0 %v541
    %v659 = vpop.f32.mrb[0].mxu0
    %v660 = vadd.f32 0.0, %v659
    %v661 = vpop.f32.mrb[0].mxu0
    %v662 = vpop.f32.mrb[0].mxu0
    %v663 = vpop.f32.mrb[0].mxu0
    %664 = vdwg.mxu0
    %665 = vmatprep.subr.bf16.mxu0 0
    %666 = vmatpush1.bf16.xpose.msra.mxu0 %v441
    %667 = vmatprep.subr.bf16.mxu0 0
    %668 = vmatpush1.bf16.xpose.msra.mxu0 0
    %669 = vmatprep.subr.bf16.mxu0 0
    %670 = vmatpush1.bf16.xpose.msra.mxu0 0
    %671 = vmatprep.subr.bf16.mxu0 0
    %672 = vmatpush1.bf16.xpose.msra.mxu0 0
    %673 = vmatprep.subr.bf16.mxu0 0
    %674 = vmatpush1.bf16.xpose.msra.mxu0 0
    %675 = vmatprep.subr.bf16.mxu0 0
    %676 = vmatpush1.bf16.xpose.msra.mxu0 0
    %677 = vmatprep.subr.bf16.mxu0 0
    %678 = vmatpush1.bf16.xpose.msra.mxu0 0
    %679 = vmatprep.subr.bf16.mxu0 0
    %680 = vmatpush1.bf16.xpose.msra.mxu0 0
    %681 = vmatprep.subr.bf16.mxu0 0
    %682 = vmatpush1.bf16.xpose.msra.mxu0 0
    %683 = vmatprep.subr.bf16.mxu0 0
    %684 = vmatpush1.bf16.xpose.msra.mxu0 0
    %685 = vmatprep.subr.bf16.mxu0 0
    %686 = vmatpush1.bf16.xpose.msra.mxu0 0
    %687 = vmatprep.subr.bf16.mxu0 0
    %688 = vmatpush1.bf16.xpose.msra.mxu0 0
    %689 = vmatprep.subr.bf16.mxu0 0
    %690 = vmatpush1.bf16.xpose.msra.mxu0 0
    %691 = vmatprep.subr.bf16.mxu0 0
    %692 = vmatpush1.bf16.xpose.msra.mxu0 0
    %693 = vmatprep.subr.bf16.mxu0 0
    %694 = vmatpush1.bf16.xpose.msra.mxu0 0
    %695 = vmatprep.subr.bf16.mxu0 0
    %696 = vmatpush1.bf16.xpose.msra.mxu0 0
    %697 = vmatprep.mubr.bf16.mxu0 0
    %698 = vmatmul.mubr.bf16.gmra.mrb[0].mxu0 %v542
    %v699 = vpop.f32.mrb[0].mxu0
    %v700 = vadd.f32 0.0, %v699
    %v701 = vpop.f32.mrb[0].mxu0
    %v702 = vpop.f32.mrb[0].mxu0
    %v703 = vpop.f32.mrb[0].mxu0
    %704 = vdwg.mxu0
    %vm705 = vcmask 64512
    %v706 = vsel %vm705, %v580, -inf
    %707 = vmax.xlane.f32.xlu0 %v706
    %v708 = vpop.xlane.xlu0 %707
    %v709 = vsel %vm705, %v620, -inf
    %710 = vmax.xlane.f32.xlu0 %v709
    %v711 = vpop.xlane.xlu0 %710
    %v712 = vsub.f32 %v580, %v708
    %v713 = vsub.f32 %v620, %v711
    %v714 = vmul.f32 %v712, 1.442695
    %v715 = vpow.pop %v714
    %v716 = vmul.f32 %v713, 1.442695
    %v717 = vpow.pop %v716
    %v718 = vsel %vm705, %v715, 0.0
    %719 = vadd.xlane.f32.xlu0 %v718
    %v720 = vpop.xlane.xlu0 %719
    %v721 = vsel %vm705, %v717, 0.0
    %722 = vadd.xlane.f32.xlu0 %v721
    %v723 = vpop.xlane.xlu0 %722
    %v724 = vrcp.pop %v720
    %v725 = vmul.f32 %v715, %v724
    %v726 = vrcp.pop %v723
    %v727 = vmul.f32 %v717, %v726
    %v728 = vpack.c.bf16 %v725, %v725
    %v729 = vpack.c.bf16 %v727, %v727
    %v730 = vsel %vm705, %v660, -inf
    %731 = vmax.xlane.f32.xlu0 %v730
    %v732 = vpop.xlane.xlu0 %731
    %v733 = vsel %vm705, %v700, -inf
    %734 = vmax.xlane.f32.xlu0 %v733
    %v735 = vpop.xlane.xlu0 %734
    %v736 = vsub.f32 %v660, %v732
    %v737 = vsub.f32 %v700, %v735
    %v738 = vmul.f32 %v736, 1.442695
    %v739 = vpow.pop %v738
    %v740 = vmul.f32 %v737, 1.442695
    %v741 = vpow.pop %v740
    %v742 = vsel %vm705, %v739, 0.0
    %743 = vadd.xlane.f32.xlu0 %v742
    %v744 = vpop.xlane.xlu0 %743
    %v745 = vsel %vm705, %v741, 0.0
    %746 = vadd.xlane.f32.xlu0 %v745
    %v747 = vpop.xlane.xlu0 %746
    %v748 = vrcp.pop %v744
    %v749 = vmul.f32 %v739, %v748
    %v750 = vrcp.pop %v747
    %v751 = vmul.f32 %v741, %v750
    %v752 = vpack.c.bf16 %v749, %v749
    %v753 = vpack.c.bf16 %v751, %v751
    %v755 = vsel %vm705, %v728, 0
    %vm757 = vcmask 1043456
    %v759 = vsel %vm757, %v199, 0
    %761 = vmatprep.subr.bf16.mxu0 0
    %762 = vmatpush1.bf16.msra.mxu0 %v759
    %763 = vmatprep.subr.bf16.mxu0 0
    %764 = vmatpush1.bf16.msra.mxu0 0
    %765 = vmatprep.subr.bf16.mxu0 0
    %766 = vmatpush1.bf16.msra.mxu0 0
    %767 = vmatprep.subr.bf16.mxu0 0
    %768 = vmatpush1.bf16.msra.mxu0 0
    %769 = vmatprep.subr.bf16.mxu0 0
    %770 = vmatpush1.bf16.msra.mxu0 0
    %771 = vmatprep.subr.bf16.mxu0 0
    %772 = vmatpush1.bf16.msra.mxu0 0
    %773 = vmatprep.subr.bf16.mxu0 0
    %774 = vmatpush1.bf16.msra.mxu0 0
    %775 = vmatprep.subr.bf16.mxu0 0
    %776 = vmatpush1.bf16.msra.mxu0 0
    %777 = vmatprep.subr.bf16.mxu0 0
    %778 = vmatpush1.bf16.msra.mxu0 0
    %779 = vmatprep.subr.bf16.mxu0 0
    %780 = vmatpush1.bf16.msra.mxu0 0
    %781 = vmatprep.subr.bf16.mxu0 0
    %782 = vmatpush1.bf16.msra.mxu0 0
    %783 = vmatprep.subr.bf16.mxu0 0
    %784 = vmatpush1.bf16.msra.mxu0 0
    %785 = vmatprep.subr.bf16.mxu0 0
    %786 = vmatpush1.bf16.msra.mxu0 0
    %787 = vmatprep.subr.bf16.mxu0 0
    %788 = vmatpush1.bf16.msra.mxu0 0
    %789 = vmatprep.subr.bf16.mxu0 0
    %790 = vmatpush1.bf16.msra.mxu0 0
    %791 = vmatprep.subr.bf16.mxu0 0
    %792 = vmatpush1.bf16.msra.mxu0 0
    %793 = vmatprep.mubr.bf16.mxu0 0
    %794 = vmatmul.mubr.bf16.gmra.mrb[0].mxu0 %v755
    %v795 = vpop.f32.mrb[0].mxu0
    %v796 = vadd.f32 0.0, %v795
    %v797 = vpop.f32.mrb[0].mxu0
    %v798 = vpop.f32.mrb[0].mxu0
    %v799 = vpop.f32.mrb[0].mxu0
    %800 = vdwg.mxu0
    %v802 = vsel %vm705, %v729, 0
    %v805 = vsel %vm757, %v200, 0
    %807 = vmatprep.subr.bf16.mxu0 0
    %808 = vmatpush1.bf16.msra.mxu0 %v805
    %809 = vmatprep.subr.bf16.mxu0 0
    %810 = vmatpush1.bf16.msra.mxu0 0
    %811 = vmatprep.subr.bf16.mxu0 0
    %812 = vmatpush1.bf16.msra.mxu0 0
    %813 = vmatprep.subr.bf16.mxu0 0
    %814 = vmatpush1.bf16.msra.mxu0 0
    %815 = vmatprep.subr.bf16.mxu0 0
    %816 = vmatpush1.bf16.msra.mxu0 0
    %817 = vmatprep.subr.bf16.mxu0 0
    %818 = vmatpush1.bf16.msra.mxu0 0
    %819 = vmatprep.subr.bf16.mxu0 0
    %820 = vmatpush1.bf16.msra.mxu0 0
    %821 = vmatprep.subr.bf16.mxu0 0
    %822 = vmatpush1.bf16.msra.mxu0 0
    %823 = vmatprep.subr.bf16.mxu0 0
    %824 = vmatpush1.bf16.msra.mxu0 0
    %825 = vmatprep.subr.bf16.mxu0 0
    %826 = vmatpush1.bf16.msra.mxu0 0
    %827 = vmatprep.subr.bf16.mxu0 0
    %828 = vmatpush1.bf16.msra.mxu0 0
    %829 = vmatprep.subr.bf16.mxu0 0
    %830 = vmatpush1.bf16.msra.mxu0 0
    %831 = vmatprep.subr.bf16.mxu0 0
    %832 = vmatpush1.bf16.msra.mxu0 0
    %833 = vmatprep.subr.bf16.mxu0 0
    %834 = vmatpush1.bf16.msra.mxu0 0
    %835 = vmatprep.subr.bf16.mxu0 0
    %836 = vmatpush1.bf16.msra.mxu0 0
    %837 = vmatprep.subr.bf16.mxu0 0
    %838 = vmatpush1.bf16.msra.mxu0 0
    %839 = vmatprep.mubr.bf16.mxu0 0
    %840 = vmatmul.mubr.bf16.gmra.mrb[0].mxu0 %v802
    %v841 = vpop.f32.mrb[0].mxu0
    %v842 = vadd.f32 0.0, %v841
    %v843 = vpop.f32.mrb[0].mxu0
    %v844 = vpop.f32.mrb[0].mxu0
    %v845 = vpop.f32.mrb[0].mxu0
    %846 = vdwg.mxu0
    %v847 = vpack.c.bf16 %v796, %v796
    %v848 = vpack.c.bf16 %v842, %v842
    %v850 = vsel %vm705, %v752, 0
    %v853 = vsel %vm757, %v197, 0
    %855 = vmatprep.subr.bf16.mxu0 0
    %856 = vmatpush1.bf16.msra.mxu0 %v853
    %857 = vmatprep.subr.bf16.mxu0 0
    %858 = vmatpush1.bf16.msra.mxu0 0
    %859 = vmatprep.subr.bf16.mxu0 0
    %860 = vmatpush1.bf16.msra.mxu0 0
    %861 = vmatprep.subr.bf16.mxu0 0
    %862 = vmatpush1.bf16.msra.mxu0 0
    %863 = vmatprep.subr.bf16.mxu0 0
    %864 = vmatpush1.bf16.msra.mxu0 0
    %865 = vmatprep.subr.bf16.mxu0 0
    %866 = vmatpush1.bf16.msra.mxu0 0
    %867 = vmatprep.subr.bf16.mxu0 0
    %868 = vmatpush1.bf16.msra.mxu0 0
    %869 = vmatprep.subr.bf16.mxu0 0
    %870 = vmatpush1.bf16.msra.mxu0 0
    %871 = vmatprep.subr.bf16.mxu0 0
    %872 = vmatpush1.bf16.msra.mxu0 0
    %873 = vmatprep.subr.bf16.mxu0 0
    %874 = vmatpush1.bf16.msra.mxu0 0
    %875 = vmatprep.subr.bf16.mxu0 0
    %876 = vmatpush1.bf16.msra.mxu0 0
    %877 = vmatprep.subr.bf16.mxu0 0
    %878 = vmatpush1.bf16.msra.mxu0 0
    %879 = vmatprep.subr.bf16.mxu0 0
    %880 = vmatpush1.bf16.msra.mxu0 0
    %881 = vmatprep.subr.bf16.mxu0 0
    %882 = vmatpush1.bf16.msra.mxu0 0
    %883 = vmatprep.subr.bf16.mxu0 0
    %884 = vmatpush1.bf16.msra.mxu0 0
    %885 = vmatprep.subr.bf16.mxu0 0
    %886 = vmatpush1.bf16.msra.mxu0 0
    %887 = vmatprep.mubr.bf16.mxu0 0
    %888 = vmatmul.mubr.bf16.gmra.mrb[0].mxu0 %v850
    %v889 = vpop.f32.mrb[0].mxu0
    %v890 = vadd.f32 0.0, %v889
    %v891 = vpop.f32.mrb[0].mxu0
    %v892 = vpop.f32.mrb[0].mxu0
    %v893 = vpop.f32.mrb[0].mxu0
    %894 = vdwg.mxu0
    %v896 = vsel %vm705, %v753, 0
    %v899 = vsel %vm757, %v198, 0
    %901 = vmatprep.subr.bf16.mxu0 0
    %902 = vmatpush1.bf16.msra.mxu0 %v899
    %903 = vmatprep.subr.bf16.mxu0 0
    %904 = vmatpush1.bf16.msra.mxu0 0
    %905 = vmatprep.subr.bf16.mxu0 0
    %906 = vmatpush1.bf16.msra.mxu0 0
    %907 = vmatprep.subr.bf16.mxu0 0
    %908 = vmatpush1.bf16.msra.mxu0 0
    %909 = vmatprep.subr.bf16.mxu0 0
    %910 = vmatpush1.bf16.msra.mxu0 0
    %911 = vmatprep.subr.bf16.mxu0 0
    %912 = vmatpush1.bf16.msra.mxu0 0
    %913 = vmatprep.subr.bf16.mxu0 0
    %914 = vmatpush1.bf16.msra.mxu0 0
    %915 = vmatprep.subr.bf16.mxu0 0
    %916 = vmatpush1.bf16.msra.mxu0 0
    %917 = vmatprep.subr.bf16.mxu0 0
    %918 = vmatpush1.bf16.msra.mxu0 0
    %919 = vmatprep.subr.bf16.mxu0 0
    %920 = vmatpush1.bf16.msra.mxu0 0
    %921 = vmatprep.subr.bf16.mxu0 0
    %922 = vmatpush1.bf16.msra.mxu0 0
    %923 = vmatprep.subr.bf16.mxu0 0
    %924 = vmatpush1.bf16.msra.mxu0 0
    %925 = vmatprep.subr.bf16.mxu0 0
    %926 = vmatpush1.bf16.msra.mxu0 0
    %927 = vmatprep.subr.bf16.mxu0 0
    %928 = vmatpush1.bf16.msra.mxu0 0
    %929 = vmatprep.subr.bf16.mxu0 0
    %930 = vmatpush1.bf16.msra.mxu0 0
    %931 = vmatprep.subr.bf16.mxu0 0
    %932 = vmatpush1.bf16.msra.mxu0 0
    %933 = vmatprep.mubr.bf16.mxu0 0
    %934 = vmatmul.mubr.bf16.gmra.mrb[0].mxu0 %v896
    %v935 = vpop.f32.mrb[0].mxu0
    %v936 = vadd.f32 0.0, %v935
    %v937 = vpop.f32.mrb[0].mxu0
    %v938 = vpop.f32.mrb[0].mxu0
    %v939 = vpop.f32.mrb[0].mxu0
    %940 = vdwg.mxu0
    %v941 = vpack.c.bf16 %v890, %v890
    %v942 = vpack.c.bf16 %v936, %v936
    %v943 = vld [vmem:[%s6] sm:$0xf]
    %v944 = vld [vmem:[%s6 + $0x4] sm:$0xf]
    %v945 = vld [vmem:[%s6 + $0x8] sm:$0xf]
    %v946 = vld [vmem:[%s6 + $0xc] sm:$0xf]
    %v947 = vld [vmem:[%s6 + $0x10] sm:$0xf]
    %v948 = vld [vmem:[%s6 + $0x14] sm:$0xf]
    %v949 = vld [vmem:[%s6 + $0x18] sm:$0xf]
    %v950 = vld [vmem:[%s6 + $0x1c] sm:$0xf]
    %v951 = vld [vmem:[%s6 + $0x20] sm:$0xf]
    %v952 = vld [vmem:[%s6 + $0x24] sm:$0xf]
    %v953 = vld [vmem:[%s6 + $0x28] sm:$0xf]
    %v954 = vld [vmem:[%s6 + $0x2c] sm:$0xf]
    %v955 = vld [vmem:[%s6 + $0x30] sm:$0xf]
    %v956 = vld [vmem:[%s6 + $0x34] sm:$0xf]
    %v957 = vld [vmem:[%s6 + $0x38] sm:$0xf]
    %v958 = vld [vmem:[%s6 + $0x3c] sm:$0xf]
    %v959 = vld [vmem:[#allocation4] sm:$0xf]
    %v960 = vld [vmem:[#allocation4 + $0x4] sm:$0xf]
    %v961 = vld [vmem:[#allocation4 + $0x8] sm:$0xf]
    %v962 = vld [vmem:[#allocation4 + $0xc] sm:$0xf]
    %v963 = vld [vmem:[#allocation4 + $0x10] sm:$0xf]
    %v964 = vld [vmem:[#allocation4 + $0x14] sm:$0xf]
    %v965 = vld [vmem:[#allocation4 + $0x18] sm:$0xf]
    %v966 = vld [vmem:[#allocation4 + $0x1c] sm:$0xf]
    %v967 = vld [vmem:[#allocation4 + $0x20] sm:$0xf]
    %v968 = vld [vmem:[#allocation4 + $0x24] sm:$0xf]
    %v969 = vld [vmem:[#allocation4 + $0x28] sm:$0xf]
    %v970 = vld [vmem:[#allocation4 + $0x2c] sm:$0xf]
    %v971 = vld [vmem:[#allocation4 + $0x30] sm:$0xf]
    %v972 = vld [vmem:[#allocation4 + $0x34] sm:$0xf]
    %v973 = vld [vmem:[#allocation4 + $0x38] sm:$0xf]
    %v974 = vld [vmem:[#allocation4 + $0x3c] sm:$0xf]
    %v977 = vunpack.c.l.b16 %v847
    %v978 = vunpack.c.l.b16 %v848
    %v979 = vpack.c.b16 %v978, %v977
    %v997 = vunpack.c.l.b16 %v959
    %v998 = vunpack.c.l.b16 %v960
    %v999 = vunpack.c.l.b16 %v961
    %v1000 = vunpack.c.l.b16 %v962
    %v1001 = vunpack.c.l.b16 %v963
    %v1002 = vunpack.c.l.b16 %v964
    %v1003 = vunpack.c.l.b16 %v965
    %v1004 = vunpack.c.l.b16 %v966
    %v1005 = vunpack.c.l.b16 %v967
    %v1006 = vunpack.c.l.b16 %v968
    %v1007 = vunpack.c.l.b16 %v969
    %v1008 = vunpack.c.l.b16 %v970
    %v1009 = vunpack.c.l.b16 %v971
    %v1010 = vunpack.c.l.b16 %v972
    %v1011 = vunpack.c.l.b16 %v973
    %v1012 = vunpack.c.l.b16 %v974
    %v1013 = vpack.c.b16 %v998, %v997
    %v1014 = vpack.c.b16 %v1000, %v999
    %v1015 = vpack.c.b16 %v1002, %v1001
    %v1016 = vpack.c.b16 %v1004, %v1003
    %v1017 = vpack.c.b16 %v1006, %v1005
    %v1018 = vpack.c.b16 %v1008, %v1007
    %v1019 = vpack.c.b16 %v1010, %v1009
    %v1020 = vpack.c.b16 %v1012, %v1011
    %1029 = vmatprep.subr.bf16.mxu0 0
    %1030 = vmatpush1.bf16.msra.mxu0 %v1013
    %1031 = vmatprep.subr.bf16.mxu0 0
    %1032 = vmatpush1.bf16.msra.mxu0 %v1014
    %1033 = vmatprep.subr.bf16.mxu0 0
    %1034 = vmatpush1.bf16.msra.mxu0 %v1015
    %1035 = vmatprep.subr.bf16.mxu0 0
    %1036 = vmatpush1.bf16.msra.mxu0 %v1016
    %1037 = vmatprep.subr.bf16.mxu0 0
    %1038 = vmatpush1.bf16.msra.mxu0 %v1017
    %1039 = vmatprep.subr.bf16.mxu0 0
    %1040 = vmatpush1.bf16.msra.mxu0 %v1018
    %1041 = vmatprep.subr.bf16.mxu0 0
    %1042 = vmatpush1.bf16.msra.mxu0 %v1019
    %1043 = vmatprep.subr.bf16.mxu0 0
    %1044 = vmatpush1.bf16.msra.mxu0 %v1020
    %1045 = vmatprep.subr.bf16.mxu0 0
    %1046 = vmatpush1.bf16.msra.mxu0 0
    %1047 = vmatprep.subr.bf16.mxu0 0
    %1048 = vmatpush1.bf16.msra.mxu0 0
    %1049 = vmatprep.subr.bf16.mxu0 0
    %1050 = vmatpush1.bf16.msra.mxu0 0
    %1051 = vmatprep.subr.bf16.mxu0 0
    %1052 = vmatpush1.bf16.msra.mxu0 0
    %1053 = vmatprep.subr.bf16.mxu0 0
    %1054 = vmatpush1.bf16.msra.mxu0 0
    %1055 = vmatprep.subr.bf16.mxu0 0
    %1056 = vmatpush1.bf16.msra.mxu0 0
    %1057 = vmatprep.subr.bf16.mxu0 0
    %1058 = vmatpush1.bf16.msra.mxu0 0
    %1059 = vmatprep.subr.bf16.mxu0 0
    %1060 = vmatpush1.bf16.msra.mxu0 0
    %1061 = vmatprep.mubr.bf16.mxu0 0
    %1062 = vmatmul.mubr.bf16.gmra.mrb[0].mxu0 %v979
    %v1063 = vpop.f32.mrb[0].mxu0
    %v1064 = vadd.f32 0.0, %v1063
    %v1065 = vpop.f32.mrb[0].mxu0
    %v1066 = vpop.f32.mrb[0].mxu0
    %v1067 = vadd.f32 0.0, %v1066
    %v1068 = vpop.f32.mrb[0].mxu0
    %1069 = vdwg.mxu0
    %v1086 = vunpack.c.l.b16 %v943
    %v1087 = vunpack.c.l.b16 %v944
    %v1088 = vunpack.c.l.b16 %v945
    %v1089 = vunpack.c.l.b16 %v946
    %v1090 = vunpack.c.l.b16 %v947
    %v1091 = vunpack.c.l.b16 %v948
    %v1092 = vunpack.c.l.b16 %v949
    %v1093 = vunpack.c.l.b16 %v950
    %v1094 = vunpack.c.l.b16 %v951
    %v1095 = vunpack.c.l.b16 %v952
    %v1096 = vunpack.c.l.b16 %v953
    %v1097 = vunpack.c.l.b16 %v954
    %v1098 = vunpack.c.l.b16 %v955
    %v1099 = vunpack.c.l.b16 %v956
    %v1100 = vunpack.c.l.b16 %v957
    %v1101 = vunpack.c.l.b16 %v958
    %v1102 = vpack.c.b16 %v1087, %v1086
    %v1103 = vpack.c.b16 %v1089, %v1088
    %v1104 = vpack.c.b16 %v1091, %v1090
    %v1105 = vpack.c.b16 %v1093, %v1092
    %v1106 = vpack.c.b16 %v1095, %v1094
    %v1107 = vpack.c.b16 %v1097, %v1096
    %v1108 = vpack.c.b16 %v1099, %v1098
    %v1109 = vpack.c.b16 %v1101, %v1100
    %1118 = vmatprep.subr.bf16.mxu0 0
    %1119 = vmatpush1.bf16.msra.mxu0 %v1102
    %1120 = vmatprep.subr.bf16.mxu0 0
    %1121 = vmatpush1.bf16.msra.mxu0 %v1103
    %1122 = vmatprep.subr.bf16.mxu0 0
    %1123 = vmatpush1.bf16.msra.mxu0 %v1104
    %1124 = vmatprep.subr.bf16.mxu0 0
    %1125 = vmatpush1.bf16.msra.mxu0 %v1105
    %1126 = vmatprep.subr.bf16.mxu0 0
    %1127 = vmatpush1.bf16.msra.mxu0 %v1106
    %1128 = vmatprep.subr.bf16.mxu0 0
    %1129 = vmatpush1.bf16.msra.mxu0 %v1107
    %1130 = vmatprep.subr.bf16.mxu0 0
    %1131 = vmatpush1.bf16.msra.mxu0 %v1108
    %1132 = vmatprep.subr.bf16.mxu0 0
    %1133 = vmatpush1.bf16.msra.mxu0 %v1109
    %1134 = vmatprep.subr.bf16.mxu0 0
    %1135 = vmatpush1.bf16.msra.mxu0 0
    %1136 = vmatprep.subr.bf16.mxu0 0
    %1137 = vmatpush1.bf16.msra.mxu0 0
    %1138 = vmatprep.subr.bf16.mxu0 0
    %1139 = vmatpush1.bf16.msra.mxu0 0
    %1140 = vmatprep.subr.bf16.mxu0 0
    %1141 = vmatpush1.bf16.msra.mxu0 0
    %1142 = vmatprep.subr.bf16.mxu0 0
    %1143 = vmatpush1.bf16.msra.mxu0 0
    %1144 = vmatprep.subr.bf16.mxu0 0
    %1145 = vmatpush1.bf16.msra.mxu0 0
    %1146 = vmatprep.subr.bf16.mxu0 0
    %1147 = vmatpush1.bf16.msra.mxu0 0
    %1148 = vmatprep.subr.bf16.mxu0 0
    %1149 = vmatpush1.bf16.msra.mxu0 0
    %1150 = vmatprep.mubr.bf16.mxu0 0
    %1151 = vmatmul.mubr.bf16.gmra.mrb[0].mxu0 %v228
    %v1152 = vpop.f32.mrb[0].mxu0
    %v1153 = vadd.f32 %v1064, %v1152
    %v1154 = vpop.f32.mrb[0].mxu0
    %v1155 = vpop.f32.mrb[0].mxu0
    %v1156 = vadd.f32 %v1067, %v1155
    %v1157 = vpop.f32.mrb[0].mxu0
    %1158 = vdwg.mxu0
    %v1159 = vld [vmem:[#allocation6] sm:$0x1]
    %v1161 = vlaneseq
    %v1162 = vshrl.u32 %v1161, 7
    %v1163 = vsub.s32 0, %v1162
    %v1164 = vrot.slane %v1159, %v1163
    %v1166 = vadd.f32 %v1153, %v1164
    %v1167 = vadd.f32 %v1156, %v1164
    %v1168 = vmax.f32 %v1166, 0.0
    %v1169 = vmax.f32 %v1167, 0.0
    %v1170 = vpack.c.bf16 %v1169, %v1168
    %v1171 = vld [vmem:[#allocation7] sm:$0xf]
    %v1172 = vld [vmem:[#allocation7 + $0x4] sm:$0xf]
    %v1173 = vld [vmem:[#allocation7 + $0x8] sm:$0xf]
    %v1174 = vld [vmem:[#allocation7 + $0xc] sm:$0xf]
    %v1175 = vld [vmem:[#allocation7 + $0x10] sm:$0xf]
    %v1176 = vld [vmem:[#allocation7 + $0x14] sm:$0xf]
    %v1177 = vld [vmem:[#allocation7 + $0x18] sm:$0xf]
    %v1178 = vld [vmem:[#allocation7 + $0x1c] sm:$0xf]
    %v1179 = vld [vmem:[#allocation7 + $0x20] sm:$0xf]
    %v1180 = vld [vmem:[#allocation7 + $0x24] sm:$0xf]
    %v1181 = vld [vmem:[#allocation7 + $0x28] sm:$0xf]
    %v1182 = vld [vmem:[#allocation7 + $0x2c] sm:$0xf]
    %v1183 = vld [vmem:[#allocation7 + $0x30] sm:$0xf]
    %v1184 = vld [vmem:[#allocation7 + $0x34] sm:$0xf]
    %v1185 = vld [vmem:[#allocation7 + $0x38] sm:$0xf]
    %v1186 = vld [vmem:[#allocation7 + $0x3c] sm:$0xf]
    %v1187 = vld [vmem:[#allocation9] sm:$0x1]
    %v1189 = vlaneseq
    %v1190 = vshrl.u32 %v1189, 7
    %v1191 = vsub.s32 0, %v1190
    %v1192 = vrot.slane %v1187, %v1191
    %v1210 = vunpack.c.l.b16 %v1171
    %v1211 = vunpack.c.l.b16 %v1172
    %v1212 = vunpack.c.l.b16 %v1173
    %v1213 = vunpack.c.l.b16 %v1174
    %v1214 = vunpack.c.l.b16 %v1175
    %v1215 = vunpack.c.l.b16 %v1176
    %v1216 = vunpack.c.l.b16 %v1177
    %v1217 = vunpack.c.l.b16 %v1178
    %v1218 = vunpack.c.l.b16 %v1179
    %v1219 = vunpack.c.l.b16 %v1180
    %v1220 = vunpack.c.l.b16 %v1181
    %v1221 = vunpack.c.l.b16 %v1182
    %v1222 = vunpack.c.l.b16 %v1183
    %v1223 = vunpack.c.l.b16 %v1184
    %v1224 = vunpack.c.l.b16 %v1185
    %v1225 = vunpack.c.l.b16 %v1186
    %v1226 = vpack.c.b16 %v1211, %v1210
    %v1227 = vpack.c.b16 %v1213, %v1212
    %v1228 = vpack.c.b16 %v1215, %v1214
    %v1229 = vpack.c.b16 %v1217, %v1216
    %v1230 = vpack.c.b16 %v1219, %v1218
    %v1231 = vpack.c.b16 %v1221, %v1220
    %v1232 = vpack.c.b16 %v1223, %v1222
    %v1233 = vpack.c.b16 %v1225, %v1224
    %1242 = vmatprep.subr.bf16.mxu0 0
    %1243 = vmatpush1.bf16.msra.mxu0 %v1226
    %1244 = vmatprep.subr.bf16.mxu0 0
    %1245 = vmatpush1.bf16.msra.mxu0 %v1227
    %1246 = vmatprep.subr.bf16.mxu0 0
    %1247 = vmatpush1.bf16.msra.mxu0 %v1228
    %1248 = vmatprep.subr.bf16.mxu0 0
    %1249 = vmatpush1.bf16.msra.mxu0 %v1229
    %1250 = vmatprep.subr.bf16.mxu0 0
    %1251 = vmatpush1.bf16.msra.mxu0 %v1230
    %1252 = vmatprep.subr.bf16.mxu0 0
    %1253 = vmatpush1.bf16.msra.mxu0 %v1231
    %1254 = vmatprep.subr.bf16.mxu0 0
    %1255 = vmatpush1.bf16.msra.mxu0 %v1232
    %1256 = vmatprep.subr.bf16.mxu0 0
    %1257 = vmatpush1.bf16.msra.mxu0 %v1233
    %1258 = vmatprep.subr.bf16.mxu0 0
    %1259 = vmatpush1.bf16.msra.mxu0 0
    %1260 = vmatprep.subr.bf16.mxu0 0
    %1261 = vmatpush1.bf16.msra.mxu0 0
    %1262 = vmatprep.subr.bf16.mxu0 0
    %1263 = vmatpush1.bf16.msra.mxu0 0
    %1264 = vmatprep.subr.bf16.mxu0 0
    %1265 = vmatpush1.bf16.msra.mxu0 0
    %1266 = vmatprep.subr.bf16.mxu0 0
    %1267 = vmatpush1.bf16.msra.mxu0 0
    %1268 = vmatprep.subr.bf16.mxu0 0
    %1269 = vmatpush1.bf16.msra.mxu0 0
    %1270 = vmatprep.subr.bf16.mxu0 0
    %1271 = vmatpush1.bf16.msra.mxu0 0
    %1272 = vmatprep.subr.bf16.mxu0 0
    %1273 = vmatpush1.bf16.msra.mxu0 0
    %1274 = vmatprep.mubr.bf16.mxu0 0
    %1275 = vmatmul.mubr.bf16.gmra.mrb[0].mxu0 %v1170
    %v1276 = vpop.f32.mrb[0].mxu0
    %v1277 = vadd.f32 %v1192, %v1276
    %v1278 = vpop.f32.mrb[0].mxu0
    %v1279 = vpop.f32.mrb[0].mxu0
    %v1280 = vadd.f32 %v1192, %v1279
    %v1281 = vpop.f32.mrb[0].mxu0
    %1282 = vdwg.mxu0
    %v1283 = vmax.f32 %v1277, 0.0
    %v1284 = vmax.f32 %v1280, 0.0
    %v1287 = vunpack.c.l.b16 %v941
    %v1288 = vunpack.c.l.b16 %v942
    %v1289 = vpack.c.b16 %v1288, %v1287
    %1291 = vmatprep.subr.bf16.mxu0 0
    %1292 = vmatpush1.bf16.msra.mxu0 %v1013
    %1293 = vmatprep.subr.bf16.mxu0 0
    %1294 = vmatpush1.bf16.msra.mxu0 %v1014
    %1295 = vmatprep.subr.bf16.mxu0 0
    %1296 = vmatpush1.bf16.msra.mxu0 %v1015
    %1297 = vmatprep.subr.bf16.mxu0 0
    %1298 = vmatpush1.bf16.msra.mxu0 %v1016
    %1299 = vmatprep.subr.bf16.mxu0 0
    %1300 = vmatpush1.bf16.msra.mxu0 %v1017
    %1301 = vmatprep.subr.bf16.mxu0 0
    %1302 = vmatpush1.bf16.msra.mxu0 %v1018
    %1303 = vmatprep.subr.bf16.mxu0 0
    %1304 = vmatpush1.bf16.msra.mxu0 %v1019
    %1305 = vmatprep.subr.bf16.mxu0 0
    %1306 = vmatpush1.bf16.msra.mxu0 %v1020
    %1307 = vmatprep.subr.bf16.mxu0 0
    %1308 = vmatpush1.bf16.msra.mxu0 0
    %1309 = vmatprep.subr.bf16.mxu0 0
    %1310 = vmatpush1.bf16.msra.mxu0 0
    %1311 = vmatprep.subr.bf16.mxu0 0
    %1312 = vmatpush1.bf16.msra.mxu0 0
    %1313 = vmatprep.subr.bf16.mxu0 0
    %1314 = vmatpush1.bf16.msra.mxu0 0
    %1315 = vmatprep.subr.bf16.mxu0 0
    %1316 = vmatpush1.bf16.msra.mxu0 0
    %1317 = vmatprep.subr.bf16.mxu0 0
    %1318 = vmatpush1.bf16.msra.mxu0 0
    %1319 = vmatprep.subr.bf16.mxu0 0
    %1320 = vmatpush1.bf16.msra.mxu0 0
    %1321 = vmatprep.subr.bf16.mxu0 0
    %1322 = vmatpush1.bf16.msra.mxu0 0
    %1323 = vmatprep.mubr.bf16.mxu0 0
    %1324 = vmatmul.mubr.bf16.gmra.mrb[0].mxu0 %v1289
    %v1325 = vpop.f32.mrb[0].mxu0
    %v1326 = vadd.f32 0.0, %v1325
    %v1327 = vpop.f32.mrb[0].mxu0
    %v1328 = vpop.f32.mrb[0].mxu0
    %v1329 = vadd.f32 0.0, %v1328
    %v1330 = vpop.f32.mrb[0].mxu0
    %1331 = vdwg.mxu0
    %1332 = vmatprep.subr.bf16.mxu0 0
    %1333 = vmatpush1.bf16.msra.mxu0 %v1102
    %1334 = vmatprep.subr.bf16.mxu0 0
    %1335 = vmatpush1.bf16.msra.mxu0 %v1103
    %1336 = vmatprep.subr.bf16.mxu0 0
    %1337 = vmatpush1.bf16.msra.mxu0 %v1104
    %1338 = vmatprep.subr.bf16.mxu0 0
    %1339 = vmatpush1.bf16.msra.mxu0 %v1105
    %1340 = vmatprep.subr.bf16.mxu0 0
    %1341 = vmatpush1.bf16.msra.mxu0 %v1106
    %1342 = vmatprep.subr.bf16.mxu0 0
    %1343 = vmatpush1.bf16.msra.mxu0 %v1107
    %1344 = vmatprep.subr.bf16.mxu0 0
    %1345 = vmatpush1.bf16.msra.mxu0 %v1108
    %1346 = vmatprep.subr.bf16.mxu0 0
    %1347 = vmatpush1.bf16.msra.mxu0 %v1109
    %1348 = vmatprep.subr.bf16.mxu0 0
    %1349 = vmatpush1.bf16.msra.mxu0 0
    %1350 = vmatprep.subr.bf16.mxu0 0
    %1351 = vmatpush1.bf16.msra.mxu0 0
    %1352 = vmatprep.subr.bf16.mxu0 0
    %1353 = vmatpush1.bf16.msra.mxu0 0
    %1354 = vmatprep.subr.bf16.mxu0 0
    %1355 = vmatpush1.bf16.msra.mxu0 0
    %1356 = vmatprep.subr.bf16.mxu0 0
    %1357 = vmatpush1.bf16.msra.mxu0 0
    %1358 = vmatprep.subr.bf16.mxu0 0
    %1359 = vmatpush1.bf16.msra.mxu0 0
    %1360 = vmatprep.subr.bf16.mxu0 0
    %1361 = vmatpush1.bf16.msra.mxu0 0
    %1362 = vmatprep.subr.bf16.mxu0 0
    %1363 = vmatpush1.bf16.msra.mxu0 0
    %1364 = vmatprep.mubr.bf16.mxu0 0
    %1365 = vmatmul.mubr.bf16.gmra.mrb[0].mxu0 %v448
    %v1366 = vpop.f32.mrb[0].mxu0
    %v1367 = vadd.f32 %v1326, %v1366
    %v1368 = vpop.f32.mrb[0].mxu0
    %v1369 = vpop.f32.mrb[0].mxu0
    %v1370 = vadd.f32 %v1329, %v1369
    %v1371 = vpop.f32.mrb[0].mxu0
    %1372 = vdwg.mxu0
    %v1373 = vadd.f32 %v1367, %v1164
    %v1374 = vadd.f32 %v1370, %v1164
    %v1375 = vmax.f32 %v1373, 0.0
    %v1376 = vmax.f32 %v1374, 0.0
    %v1377 = vpack.c.bf16 %v1376, %v1375
    %1378 = vmatprep.subr.bf16.mxu0 0
    %1379 = vmatpush1.bf16.msra.mxu0 %v1226
    %1380 = vmatprep.subr.bf16.mxu0 0
    %1381 = vmatpush1.bf16.msra.mxu0 %v1227
    %1382 = vmatprep.subr.bf16.mxu0 0
    %1383 = vmatpush1.bf16.msra.mxu0 %v1228
    %1384 = vmatprep.subr.bf16.mxu0 0
    %1385 = vmatpush1.bf16.msra.mxu0 %v1229
    %1386 = vmatprep.subr.bf16.mxu0 0
    %1387 = vmatpush1.bf16.msra.mxu0 %v1230
    %1388 = vmatprep.subr.bf16.mxu0 0
    %1389 = vmatpush1.bf16.msra.mxu0 %v1231
    %1390 = vmatprep.subr.bf16.mxu0 0
    %1391 = vmatpush1.bf16.msra.mxu0 %v1232
    %1392 = vmatprep.subr.bf16.mxu0 0
    %1393 = vmatpush1.bf16.msra.mxu0 %v1233
    %1394 = vmatprep.subr.bf16.mxu0 0
    %1395 = vmatpush1.bf16.msra.mxu0 0
    %1396 = vmatprep.subr.bf16.mxu0 0
    %1397 = vmatpush1.bf16.msra.mxu0 0
    %1398 = vmatprep.subr.bf16.mxu0 0
    %1399 = vmatpush1.bf16.msra.mxu0 0
    %1400 = vmatprep.subr.bf16.mxu0 0
    %1401 = vmatpush1.bf16.msra.mxu0 0
    %1402 = vmatprep.subr.bf16.mxu0 0
    %1403 = vmatpush1.bf16.msra.mxu0 0
    %1404 = vmatprep.subr.bf16.mxu0 0
    %1405 = vmatpush1.bf16.msra.mxu0 0
    %1406 = vmatprep.subr.bf16.mxu0 0
    %1407 = vmatpush1.bf16.msra.mxu0 0
    %1408 = vmatprep.subr.bf16.mxu0 0
    %1409 = vmatpush1.bf16.msra.mxu0 0
    %1410 = vmatprep.mubr.bf16.mxu0 0
    %1411 = vmatmul.mubr.bf16.gmra.mrb[0].mxu0 %v1377
    %v1412 = vpop.f32.mrb[0].mxu0
    %v1413 = vadd.f32 %v1192, %v1412
    %v1414 = vpop.f32.mrb[0].mxu0
    %v1415 = vpop.f32.mrb[0].mxu0
    %v1416 = vadd.f32 %v1192, %v1415
    %v1417 = vpop.f32.mrb[0].mxu0
    %1418 = vdwg.mxu0
    %v1419 = vmax.f32 %v1413, 0.0
    %v1420 = vmax.f32 %v1416, 0.0
    %v1421 = vrot.slane %v1283, 4
    %v1422 = vadd.f32 %v1283, %v1421
    %v1423 = vrot.slane %v1422, 2
    %v1424 = vadd.f32 %v1422, %v1423
    %v1425 = vrot.slane %v1424, 1
    %v1426 = vadd.f32 %v1424, %v1425
    %v1427 = vrot.slane %v1284, 4
    %v1428 = vadd.f32 %v1284, %v1427
    %v1429 = vrot.slane %v1428, 2
    %v1430 = vadd.f32 %v1428, %v1429
    %v1431 = vrot.slane %v1430, 1
    %v1432 = vadd.f32 %v1430, %v1431
    %v1433 = vpack.c.bf16 %v1426, %v1426
    %v1434 = vpack.c.bf16 %v1432, %v1432
    %v1435 = vrot.slane %v1419, 4
    %v1436 = vadd.f32 %v1419, %v1435
    %v1437 = vrot.slane %v1436, 2
    %v1438 = vadd.f32 %v1436, %v1437
    %v1439 = vrot.slane %v1438, 1
    %v1440 = vadd.f32 %v1438, %v1439
    %v1441 = vrot.slane %v1420, 4
    %v1442 = vadd.f32 %v1420, %v1441
    %v1443 = vrot.slane %v1442, 2
    %v1444 = vadd.f32 %v1442, %v1443
    %v1445 = vrot.slane %v1444, 1
    %v1446 = vadd.f32 %v1444, %v1445
    %v1447 = vpack.c.bf16 %v1440, %v1440
    %v1448 = vpack.c.bf16 %v1446, %v1446
    %v1449 = vld [vmem:[#allocation10] sm:$0xf]
    %v1450 = vld [vmem:[#allocation10 + $0x4] sm:$0xf]
    %v1451 = vld [vmem:[#allocation10 + $0x8] sm:$0xf]
    %v1452 = vld [vmem:[#allocation10 + $0xc] sm:$0xf]
    %v1453 = vld [vmem:[#allocation10 + $0x10] sm:$0xf]
    %v1454 = vld [vmem:[#allocation10 + $0x14] sm:$0xf]
    %v1455 = vld [vmem:[#allocation10 + $0x18] sm:$0xf]
    %v1456 = vld [vmem:[#allocation10 + $0x1c] sm:$0xf]
    %v1457 = vld [vmem:[#allocation10 + $0x20] sm:$0xf]
    %v1458 = vld [vmem:[#allocation10 + $0x24] sm:$0xf]
    %v1459 = vld [vmem:[#allocation10 + $0x28] sm:$0xf]
    %v1460 = vld [vmem:[#allocation10 + $0x2c] sm:$0xf]
    %v1461 = vld [vmem:[#allocation10 + $0x30] sm:$0xf]
    %v1462 = vld [vmem:[#allocation10 + $0x34] sm:$0xf]
    %v1463 = vld [vmem:[#allocation10 + $0x38] sm:$0xf]
    %v1464 = vld [vmem:[#allocation10 + $0x3c] sm:$0xf]
    %v1465 = vld [vmem:[#allocation12] sm:$0xf]
    %v1466 = vld [vmem:[#allocation12 + $0x4] sm:$0xf]
    %v1467 = vld [vmem:[#allocation12 + $0x8] sm:$0xf]
    %v1468 = vld [vmem:[#allocation12 + $0xc] sm:$0xf]
    %v1469 = vld [vmem:[#allocation12 + $0x10] sm:$0xf]
    %v1470 = vld [vmem:[#allocation12 + $0x14] sm:$0xf]
    %v1471 = vld [vmem:[#allocation12 + $0x18] sm:$0xf]
    %v1472 = vld [vmem:[#allocation12 + $0x1c] sm:$0xf]
    %v1473 = vld [vmem:[#allocation12 + $0x20] sm:$0xf]
    %v1474 = vld [vmem:[#allocation12 + $0x24] sm:$0xf]
    %v1475 = vld [vmem:[#allocation12 + $0x28] sm:$0xf]
    %v1476 = vld [vmem:[#allocation12 + $0x2c] sm:$0xf]
    %v1477 = vld [vmem:[#allocation12 + $0x30] sm:$0xf]
    %v1478 = vld [vmem:[#allocation12 + $0x34] sm:$0xf]
    %v1479 = vld [vmem:[#allocation12 + $0x38] sm:$0xf]
    %v1480 = vld [vmem:[#allocation12 + $0x3c] sm:$0xf]
    %v1483 = vunpack.c.l.b16 %v1447
    %v1484 = vunpack.c.l.b16 %v1448
    %vm1485 = vcmask 1041409
    %v1486 = vsel %vm1485, %v1484, %v1483
    %v1487 = vpack.c.b16 %v1486, %v1486
    %v1505 = vunpack.c.l.b16 %v1465
    %v1506 = vunpack.c.l.b16 %v1466
    %v1507 = vunpack.c.l.b16 %v1467
    %v1508 = vunpack.c.l.b16 %v1468
    %v1509 = vunpack.c.l.b16 %v1469
    %v1510 = vunpack.c.l.b16 %v1470
    %v1511 = vunpack.c.l.b16 %v1471
    %v1512 = vunpack.c.l.b16 %v1472
    %v1513 = vunpack.c.l.b16 %v1473
    %v1514 = vunpack.c.l.b16 %v1474
    %v1515 = vunpack.c.l.b16 %v1475
    %v1516 = vunpack.c.l.b16 %v1476
    %v1517 = vunpack.c.l.b16 %v1477
    %v1518 = vunpack.c.l.b16 %v1478
    %v1519 = vunpack.c.l.b16 %v1479
    %v1520 = vunpack.c.l.b16 %v1480
    %v1521 = vpack.c.b16 %v1506, %v1505
    %v1522 = vpack.c.b16 %v1508, %v1507
    %v1523 = vpack.c.b16 %v1510, %v1509
    %v1524 = vpack.c.b16 %v1512, %v1511
    %v1525 = vpack.c.b16 %v1514, %v1513
    %v1526 = vpack.c.b16 %v1516, %v1515
    %v1527 = vpack.c.b16 %v1518, %v1517
    %v1528 = vpack.c.b16 %v1520, %v1519
    %1537 = vmatprep.subr.bf16.mxu0 0
    %1538 = vmatpush1.bf16.msra.mxu0 %v1521
    %1539 = vmatprep.subr.bf16.mxu0 0
    %1540 = vmatpush1.bf16.msra.mxu0 %v1522
    %1541 = vmatprep.subr.bf16.mxu0 0
    %1542 = vmatpush1.bf16.msra.mxu0 %v1523
    %1543 = vmatprep.subr.bf16.mxu0 0
    %1544 = vmatpush1.bf16.msra.mxu0 %v1524
    %1545 = vmatprep.subr.bf16.mxu0 0
    %1546 = vmatpush1.bf16.msra.mxu0 %v1525
    %1547 = vmatprep.subr.bf16.mxu0 0
    %1548 = vmatpush1.bf16.msra.mxu0 %v1526
    %1549 = vmatprep.subr.bf16.mxu0 0
    %1550 = vmatpush1.bf16.msra.mxu0 %v1527
    %1551 = vmatprep.subr.bf16.mxu0 0
    %1552 = vmatpush1.bf16.msra.mxu0 %v1528
    %1553 = vmatprep.subr.bf16.mxu0 0
    %1554 = vmatpush1.bf16.msra.mxu0 0
    %1555 = vmatprep.subr.bf16.mxu0 0
    %1556 = vmatpush1.bf16.msra.mxu0 0
    %1557 = vmatprep.subr.bf16.mxu0 0
    %1558 = vmatpush1.bf16.msra.mxu0 0
    %1559 = vmatprep.subr.bf16.mxu0 0
    %1560 = vmatpush1.bf16.msra.mxu0 0
    %1561 = vmatprep.subr.bf16.mxu0 0
    %1562 = vmatpush1.bf16.msra.mxu0 0
    %1563 = vmatprep.subr.bf16.mxu0 0
    %1564 = vmatpush1.bf16.msra.mxu0 0
    %1565 = vmatprep.subr.bf16.mxu0 0
    %1566 = vmatpush1.bf16.msra.mxu0 0
    %1567 = vmatprep.subr.bf16.mxu0 0
    %1568 = vmatpush1.bf16.msra.mxu0 0
    %1569 = vmatprep.mubr.bf16.mxu0 0
    %1570 = vmatmul.mubr.bf16.gmra.mrb[0].mxu0 %v1487
    %v1571 = vpop.f32.mrb[0].mxu0
    %v1572 = vadd.f32 0.0, %v1571
    %v1573 = vpop.f32.mrb[0].mxu0
    %v1574 = vpop.f32.mrb[0].mxu0
    %v1575 = vpop.f32.mrb[0].mxu0
    %1576 = vdwg.mxu0
    %v1579 = vunpack.c.l.b16 %v1433
    %v1580 = vunpack.c.l.b16 %v1434
    %v1581 = vsel %vm1485, %v1580, %v1579
    %v1582 = vpack.c.b16 %v1581, %v1581
    %v1600 = vunpack.c.l.b16 %v1449
    %v1601 = vunpack.c.l.b16 %v1450
    %v1602 = vunpack.c.l.b16 %v1451
    %v1603 = vunpack.c.l.b16 %v1452
    %v1604 = vunpack.c.l.b16 %v1453
    %v1605 = vunpack.c.l.b16 %v1454
    %v1606 = vunpack.c.l.b16 %v1455
    %v1607 = vunpack.c.l.b16 %v1456
    %v1608 = vunpack.c.l.b16 %v1457
    %v1609 = vunpack.c.l.b16 %v1458
    %v1610 = vunpack.c.l.b16 %v1459
    %v1611 = vunpack.c.l.b16 %v1460
    %v1612 = vunpack.c.l.b16 %v1461
    %v1613 = vunpack.c.l.b16 %v1462
    %v1614 = vunpack.c.l.b16 %v1463
    %v1615 = vunpack.c.l.b16 %v1464
    %v1616 = vpack.c.b16 %v1601, %v1600
    %v1617 = vpack.c.b16 %v1603, %v1602
    %v1618 = vpack.c.b16 %v1605, %v1604
    %v1619 = vpack.c.b16 %v1607, %v1606
    %v1620 = vpack.c.b16 %v1609, %v1608
    %v1621 = vpack.c.b16 %v1611, %v1610
    %v1622 = vpack.c.b16 %v1613, %v1612
    %v1623 = vpack.c.b16 %v1615, %v1614
    %1632 = vmatprep.subr.bf16.mxu0 0
    %1633 = vmatpush1.bf16.msra.mxu0 %v1616
    %1634 = vmatprep.subr.bf16.mxu0 0
    %1635 = vmatpush1.bf16.msra.mxu0 %v1617
    %1636 = vmatprep.subr.bf16.mxu0 0
    %1637 = vmatpush1.bf16.msra.mxu0 %v1618
    %1638 = vmatprep.subr.bf16.mxu0 0
    %1639 = vmatpush1.bf16.msra.mxu0 %v1619
    %1640 = vmatprep.subr.bf16.mxu0 0
    %1641 = vmatpush1.bf16.msra.mxu0 %v1620
    %1642 = vmatprep.subr.bf16.mxu0 0
    %1643 = vmatpush1.bf16.msra.mxu0 %v1621
    %1644 = vmatprep.subr.bf16.mxu0 0
    %1645 = vmatpush1.bf16.msra.mxu0 %v1622
    %1646 = vmatprep.subr.bf16.mxu0 0
    %1647 = vmatpush1.bf16.msra.mxu0 %v1623
    %1648 = vmatprep.subr.bf16.mxu0 0
    %1649 = vmatpush1.bf16.msra.mxu0 0
    %1650 = vmatprep.subr.bf16.mxu0 0
    %1651 = vmatpush1.bf16.msra.mxu0 0
    %1652 = vmatprep.subr.bf16.mxu0 0
    %1653 = vmatpush1.bf16.msra.mxu0 0
    %1654 = vmatprep.subr.bf16.mxu0 0
    %1655 = vmatpush1.bf16.msra.mxu0 0
    %1656 = vmatprep.subr.bf16.mxu0 0
    %1657 = vmatpush1.bf16.msra.mxu0 0
    %1658 = vmatprep.subr.bf16.mxu0 0
    %1659 = vmatpush1.bf16.msra.mxu0 0
    %1660 = vmatprep.subr.bf16.mxu0 0
    %1661 = vmatpush1.bf16.msra.mxu0 0
    %1662 = vmatprep.subr.bf16.mxu0 0
    %1663 = vmatpush1.bf16.msra.mxu0 0
    %1664 = vmatprep.mubr.bf16.mxu0 0
    %1665 = vmatmul.mubr.bf16.gmra.mrb[0].mxu0 %v1582
    %v1666 = vpop.f32.mrb[0].mxu0
    %v1667 = vadd.f32 %v1572, %v1666
    %v1668 = vpop.f32.mrb[0].mxu0
    %v1669 = vpop.f32.mrb[0].mxu0
    %v1670 = vpop.f32.mrb[0].mxu0
    %1671 = vdwg.mxu0
    %v1672 = vld [vmem:[#allocation13] sm:$0x1]
    %v1674 = vlaneseq
    %v1675 = vshrl.u32 %v1674, 7
    %v1676 = vsub.s32 0, %v1675
    %v1677 = vrot.slane %v1672, %v1676
    %v1679 = vadd.f32 %v1667, %v1677
    %v1680 = vmax.f32 %v1679, 0.0
    %v1681 = vpack.c.bf16 %v1680, %v1680
    %v1682 = vld [vmem:[#allocation15] sm:$0xf]
    %v1683 = vld [vmem:[#allocation15 + $0x4] sm:$0xf]
    %v1684 = vld [vmem:[#allocation15 + $0x8] sm:$0xf]
    %v1685 = vld [vmem:[#allocation15 + $0xc] sm:$0xf]
    %v1686 = vld [vmem:[#allocation15 + $0x10] sm:$0xf]
    %v1687 = vld [vmem:[#allocation15 + $0x14] sm:$0xf]
    %v1688 = vld [vmem:[#allocation15 + $0x18] sm:$0xf]
    %v1689 = vld [vmem:[#allocation15 + $0x1c] sm:$0xf]
    %v1690 = vld [vmem:[#allocation15 + $0x20] sm:$0xf]
    %v1691 = vld [vmem:[#allocation15 + $0x24] sm:$0xf]
    %v1692 = vld [vmem:[#allocation15 + $0x28] sm:$0xf]
    %v1693 = vld [vmem:[#allocation15 + $0x2c] sm:$0xf]
    %v1694 = vld [vmem:[#allocation15 + $0x30] sm:$0xf]
    %v1695 = vld [vmem:[#allocation15 + $0x34] sm:$0xf]
    %v1696 = vld [vmem:[#allocation15 + $0x38] sm:$0xf]
    %v1697 = vld [vmem:[#allocation15 + $0x3c] sm:$0xf]
    %v1698 = vld [vmem:[#allocation16] sm:$0x1]
    %v1700 = vlaneseq
    %v1701 = vshrl.u32 %v1700, 7
    %v1702 = vsub.s32 0, %v1701
    %v1703 = vrot.slane %v1698, %v1702
    %v1721 = vunpack.c.l.b16 %v1682
    %v1722 = vunpack.c.l.b16 %v1683
    %v1723 = vunpack.c.l.b16 %v1684
    %v1724 = vunpack.c.l.b16 %v1685
    %v1725 = vunpack.c.l.b16 %v1686
    %v1726 = vunpack.c.l.b16 %v1687
    %v1727 = vunpack.c.l.b16 %v1688
    %v1728 = vunpack.c.l.b16 %v1689
    %v1729 = vunpack.c.l.b16 %v1690
    %v1730 = vunpack.c.l.b16 %v1691
    %v1731 = vunpack.c.l.b16 %v1692
    %v1732 = vunpack.c.l.b16 %v1693
    %v1733 = vunpack.c.l.b16 %v1694
    %v1734 = vunpack.c.l.b16 %v1695
    %v1735 = vunpack.c.l.b16 %v1696
    %v1736 = vunpack.c.l.b16 %v1697
    %v1737 = vpack.c.b16 %v1722, %v1721
    %v1738 = vpack.c.b16 %v1724, %v1723
    %v1739 = vpack.c.b16 %v1726, %v1725
    %v1740 = vpack.c.b16 %v1728, %v1727
    %v1741 = vpack.c.b16 %v1730, %v1729
    %v1742 = vpack.c.b16 %v1732, %v1731
    %v1743 = vpack.c.b16 %v1734, %v1733
    %v1744 = vpack.c.b16 %v1736, %v1735
    %1753 = vmatprep.subr.bf16.mxu0 0
    %1754 = vmatpush1.bf16.msra.mxu0 %v1737
    %1755 = vmatprep.subr.bf16.mxu0 0
    %1756 = vmatpush1.bf16.msra.mxu0 %v1738
    %1757 = vmatprep.subr.bf16.mxu0 0
    %1758 = vmatpush1.bf16.msra.mxu0 %v1739
    %1759 = vmatprep.subr.bf16.mxu0 0
    %1760 = vmatpush1.bf16.msra.mxu0 %v1740
    %1761 = vmatprep.subr.bf16.mxu0 0
    %1762 = vmatpush1.bf16.msra.mxu0 %v1741
    %1763 = vmatprep.subr.bf16.mxu0 0
    %1764 = vmatpush1.bf16.msra.mxu0 %v1742
    %1765 = vmatprep.subr.bf16.mxu0 0
    %1766 = vmatpush1.bf16.msra.mxu0 %v1743
    %1767 = vmatprep.subr.bf16.mxu0 0
    %1768 = vmatpush1.bf16.msra.mxu0 %v1744
    %1769 = vmatprep.subr.bf16.mxu0 0
    %1770 = vmatpush1.bf16.msra.mxu0 0
    %1771 = vmatprep.subr.bf16.mxu0 0
    %1772 = vmatpush1.bf16.msra.mxu0 0
    %1773 = vmatprep.subr.bf16.mxu0 0
    %1774 = vmatpush1.bf16.msra.mxu0 0
    %1775 = vmatprep.subr.bf16.mxu0 0
    %1776 = vmatpush1.bf16.msra.mxu0 0
    %1777 = vmatprep.subr.bf16.mxu0 0
    %1778 = vmatpush1.bf16.msra.mxu0 0
    %1779 = vmatprep.subr.bf16.mxu0 0
    %1780 = vmatpush1.bf16.msra.mxu0 0
    %1781 = vmatprep.subr.bf16.mxu0 0
    %1782 = vmatpush1.bf16.msra.mxu0 0
    %1783 = vmatprep.subr.bf16.mxu0 0
    %1784 = vmatpush1.bf16.msra.mxu0 0
    %1785 = vmatprep.mubr.bf16.mxu0 0
    %1786 = vmatmul.mubr.bf16.gmra.mrb[0].mxu0 %v1681
    %v1787 = vpop.f32.mrb[0].mxu0
    %v1788 = vadd.f32 %v1703, %v1787
    %v1789 = vpop.f32.mrb[0].mxu0
    %v1790 = vpop.f32.mrb[0].mxu0
    %v1791 = vpop.f32.mrb[0].mxu0
    %1792 = vdwg.mxu0
    %v1793 = vmax.f32 %v1788, 0.0
    %v1794 = vpack.c.bf16 %v1793, %v1793
    %v1795 = vld [vmem:[%s16] sm:$0xf]
    %v1796 = vld [vmem:[%s16 + $0x4] sm:$0xf]
    %v1797 = vld [vmem:[%s16 + $0x8] sm:$0xf]
    %v1798 = vld [vmem:[%s16 + $0xc] sm:$0xf]
    %v1799 = vld [vmem:[%s16 + $0x10] sm:$0xf]
    %v1800 = vld [vmem:[%s16 + $0x14] sm:$0xf]
    %v1801 = vld [vmem:[%s16 + $0x18] sm:$0xf]
    %v1802 = vld [vmem:[%s16 + $0x1c] sm:$0xf]
    %v1803 = vld [vmem:[%s16 + $0x20] sm:$0xf]
    %v1804 = vld [vmem:[%s16 + $0x24] sm:$0xf]
    %v1805 = vld [vmem:[%s16 + $0x28] sm:$0xf]
    %v1806 = vld [vmem:[%s16 + $0x2c] sm:$0xf]
    %v1807 = vld [vmem:[%s16 + $0x30] sm:$0xf]
    %v1808 = vld [vmem:[%s16 + $0x34] sm:$0xf]
    %v1809 = vld [vmem:[%s16 + $0x38] sm:$0xf]
    %v1810 = vld [vmem:[%s16 + $0x3c] sm:$0xf]
    %v1811 = vld [vmem:[#allocation18] sm:$0x1]
    %v1813 = vlaneseq
    %v1814 = vshrl.u32 %v1813, 7
    %v1815 = vsub.s32 0, %v1814
    %v1816 = vrot.slane %v1811, %v1815
    %v1834 = vunpack.c.l.b16 %v1795
    %v1835 = vunpack.c.l.b16 %v1796
    %v1836 = vunpack.c.l.b16 %v1797
    %v1837 = vunpack.c.l.b16 %v1798
    %v1838 = vunpack.c.l.b16 %v1799
    %v1839 = vunpack.c.l.b16 %v1800
    %v1840 = vunpack.c.l.b16 %v1801
    %v1841 = vunpack.c.l.b16 %v1802
    %v1842 = vunpack.c.l.b16 %v1803
    %v1843 = vunpack.c.l.b16 %v1804
    %v1844 = vunpack.c.l.b16 %v1805
    %v1845 = vunpack.c.l.b16 %v1806
    %v1846 = vunpack.c.l.b16 %v1807
    %v1847 = vunpack.c.l.b16 %v1808
    %v1848 = vunpack.c.l.b16 %v1809
    %v1849 = vunpack.c.l.b16 %v1810
    %v1850 = vpack.c.b16 %v1835, %v1834
    %v1851 = vpack.c.b16 %v1837, %v1836
    %v1852 = vpack.c.b16 %v1839, %v1838
    %v1853 = vpack.c.b16 %v1841, %v1840
    %v1854 = vpack.c.b16 %v1843, %v1842
    %v1855 = vpack.c.b16 %v1845, %v1844
    %v1856 = vpack.c.b16 %v1847, %v1846
    %v1857 = vpack.c.b16 %v1849, %v1848
    %1866 = vmatprep.subr.bf16.mxu0 0
    %1867 = vmatpush1.bf16.msra.mxu0 %v1850
    %1868 = vmatprep.subr.bf16.mxu0 0
    %1869 = vmatpush1.bf16.msra.mxu0 %v1851
    %1870 = vmatprep.subr.bf16.mxu0 0
    %1871 = vmatpush1.bf16.msra.mxu0 %v1852
    %1872 = vmatprep.subr.bf16.mxu0 0
    %1873 = vmatpush1.bf16.msra.mxu0 %v1853
    %1874 = vmatprep.subr.bf16.mxu0 0
    %1875 = vmatpush1.bf16.msra.mxu0 %v1854
    %1876 = vmatprep.subr.bf16.mxu0 0
    %1877 = vmatpush1.bf16.msra.mxu0 %v1855
    %1878 = vmatprep.subr.bf16.mxu0 0
    %1879 = vmatpush1.bf16.msra.mxu0 %v1856
    %1880 = vmatprep.subr.bf16.mxu0 0
    %1881 = vmatpush1.bf16.msra.mxu0 %v1857
    %1882 = vmatprep.subr.bf16.mxu0 0
    %1883 = vmatpush1.bf16.msra.mxu0 0
    %1884 = vmatprep.subr.bf16.mxu0 0
    %1885 = vmatpush1.bf16.msra.mxu0 0
    %1886 = vmatprep.subr.bf16.mxu0 0
    %1887 = vmatpush1.bf16.msra.mxu0 0
    %1888 = vmatprep.subr.bf16.mxu0 0
    %1889 = vmatpush1.bf16.msra.mxu0 0
    %1890 = vmatprep.subr.bf16.mxu0 0
    %1891 = vmatpush1.bf16.msra.mxu0 0
    %1892 = vmatprep.subr.bf16.mxu0 0
    %1893 = vmatpush1.bf16.msra.mxu0 0
    %1894 = vmatprep.subr.bf16.mxu0 0
    %1895 = vmatpush1.bf16.msra.mxu0 0
    %1896 = vmatprep.subr.bf16.mxu0 0
    %1897 = vmatpush1.bf16.msra.mxu0 0
    %1898 = vmatprep.mubr.bf16.mxu0 0
    %1899 = vmatmul.mubr.bf16.gmra.mrb[0].mxu0 %v1794
    %v1900 = vpop.f32.mrb[0].mxu0
    %v1901 = vadd.f32 %v1816, %v1900
    %v1902 = vpop.f32.mrb[0].mxu0
    %v1903 = vpop.f32.mrb[0].mxu0
    %v1904 = vpop.f32.mrb[0].mxu0
    %1905 = vdwg.mxu0
    %v1906 = vlaneseq
    %v1907 = vand.u32 %v1906, 127
    %vm1908 = vcmp.lt.s32.totalorder %v1907, 2
    %v1909 = vsel %vm1908, %v1901, -inf
    %vm1910 = vcmask 25600
    %v1911 = vsel %vm1910, %v1909, -inf
    %1912 = vmax.xlane.f32.xlu0 %v1911
    %v1913 = vpop.xlane.xlu0 %1912
    %v1914 = vsel %vm1908, -inf, %v1901
    %v1915 = vsel %vm1910, %v1914, -inf
    %1916 = vmax.xlane.f32.xlu0 %v1915
    %v1917 = vpop.xlane.xlu0 %1916
    %v1918 = vsel %vm1908, %v1913, %v1917
    %v1919 = vsub.f32 %v1901, %v1918
    %v1920 = vmul.f32 %v1919, 1.442695
    %v1921 = vpow.pop %v1920
    %v1922 = vsel %vm1908, %v1921, 0.0
    %v1923 = vsel %vm1910, %v1922, 0.0
    %1924 = vadd.xlane.f32.xlu0 %v1923
    %v1925 = vpop.xlane.xlu0 %1924
    %v1926 = vsel %vm1908, 0.0, %v1921
    %v1927 = vsel %vm1910, %v1926, 0.0
    %1928 = vadd.xlane.f32.xlu0 %v1927
    %v1929 = vpop.xlane.xlu0 %1928
    %v1930 = vsel %vm1908, %v1925, %v1929
    %v1931 = vlog2.pop %v1930
    %v1932 = vmul.f32 %v1931, 0.6931472
    %v1933 = vsub.f32 %v1919, %v1932
    %1934 = vst.msk [vmem:[%s18] sm:$0x3] %vm1910, %v1933
    // Predicated region
    $region118: #{binary_label_atten_forward.1} parent=1 // pred_check
      _
    $region119: #{binary_label_atten_forward.1} parent=1 // pred_check_branch
      %1936 = sbr.rel (0) target = $region121
    $region120: #{binary_label_atten_forward.1} parent=1 // pred_region
      _
    $region121: #{binary_label_atten_forward.1} parent=1 // pred_fallthru
      _
    // Predicated region
    $region122: #{binary_label_atten_forward.1} parent=1 // pred_check
      _
    $region123: #{binary_label_atten_forward.1} parent=1 // pred_check_branch
      %1938 = sbr.rel (0) target = $region125
    $region124: #{binary_label_atten_forward.1} parent=1 // pred_region
      _
    $region125: #{binary_label_atten_forward.1} parent=1 // pred_fallthru
      _
    %1939 = vsyncpa [#allocation3], 1
    %1940 = vsyncpa [#allocation5], 1
    %1941 = vsyncpa [#allocation8], 1
    %1942 = vsyncpa [#allocation11], 1
    %1943 = vsyncpa [#allocation14], 1
    %1944 = vsyncpa [#allocation17], 1

</llo_original>
